<compile_context>
chip_gen: v5e
topology: v5e:2x2
jax: 0.10.0
libtpu: 0.0.40
codegen_flags: <defaults>
</compile_context>

<pallas_src>
import math
import sys

import jax
import jax.numpy as jnp
from jax.experimental import pallas as pl
from jax.experimental.pallas import tpu as pltpu

# ---------------------------------------------------------------------------
# Problem sizes (small, consistent with the module's forward)
# ---------------------------------------------------------------------------
B = 2        # batch
Q = 8        # number of queries (curve proposals)
NC = 3       # num_classes per head (class 0 == background / no-lane)
NPTS = 8     # sample points per GT lane
GMAX = 4     # max GT lanes per image (rows with label<=0 are padding)

C = 2 * NC + 1            # logits channels
P = 7                     # curve params: lower, upper, breakpoint, a3, a2, a1, a0
T = 4 + 2 * NPTS          # GT row width
NFLAT = GMAX * NPTS       # lane-flattened GT point grid (g*NPTS + n)
OUT_LANES = 128           # lane-dense output rows (unmasked vst)

# Matcher weights (== weight_dict entries used by build_matcher in the reference)
W_CE0, W_CE1 = 3.0, 3.0
W_CURVES, W_LOWER, W_UPPER, W_BP = 5.0, 2.0, 2.0, 2.5
BIG = 1e9

WEIGHT_DICT = {
    'loss_ce0': 3.0, 'loss_ce1': 3.0, 'loss_curves': 5.0, 'loss_lowers': 2.0,
    'loss_uppers': 2.0, 'loss_breakpoints': 2.5, 'loss_exist_b': 2.0,
}


# ---------------------------------------------------------------------------
# Fused kernel: cost columns -> greedy matching -> loss sums, whole batch in one step.
#   gt_pack rows: 0..3 = label/lower/upper/breakpoint at lanes [0:GMAX]
#                 4    = xs flattened (lane = g*NPTS + n)
#                 5    = ys flattened
#   sums_ref[b,0,:8]   = [ce0, ce1, curves, lowers, uppers, breakpoints, exist_bce, card_err]
#   match_ref[b,0,:G]  = matched query index (-1 for padded GT rows)
# ---------------------------------------------------------------------------
def _fused_kernel(logits_ref, curves_ref, gtp_ref, sums_ref, match_ref):
    f32 = jnp.float32
    lane128 = jax.lax.broadcasted_iota(jnp.int32, (1, OUT_LANES), 1)
    iota_q = jax.lax.broadcasted_iota(jnp.int32, (Q, 1), 0)
    iota_nc = jax.lax.broadcasted_iota(jnp.int32, (Q, NC), 1)

    # TODO(synk): if B grows in production, reintroduce a ("parallel",) batch grid axis so
    # v7x's second TensorCore is used; at B=2 a single invocation minimizes overhead.
    for b in range(B):
        logits = logits_ref[b]          # (Q, C)
        curves = curves_ref[b]          # (Q, P)
        gp = gtp_ref[b]                 # (6, NFLAT)

        label_row = gp[0:1, 0:GMAX]     # (1, G)
        lower_row = gp[1:2, 0:GMAX]
        upper_row = gp[2:3, 0:GMAX]
        bp_row = gp[3:4, 0:GMAX]
        xs_flat = gp[4:5, :]            # (1, NFLAT)
        ys_flat = gp[5:6, :]            # (1, NFLAT)

        valid_row = label_row > 0.0                       # (1, G) bool
        c0_row = jnp.floor((label_row + 0.5) * 0.1)       # robust int decode of label
        c1_row = jnp.floor(label_row - 10.0 * c0_row + 0.5)

        # -- class-head probabilities for the matcher (approx reciprocal -> EUP slot)
        l0 = logits[:, 0:NC]
        l1 = logits[:, NC:2 * NC]
        e0 = jnp.exp(l0 - jnp.max(l0, axis=-1, keepdims=True))
        p0 = e0 * pl.reciprocal(jnp.sum(e0, axis=-1, keepdims=True), approx=True)
        e1 = jnp.exp(l1 - jnp.max(l1, axis=-1, keepdims=True))
        p1 = e1 * pl.reciprocal(jnp.sum(e1, axis=-1, keepdims=True), approx=True)

        # -- curve params
        low_p = curves[:, 0:1]
        up_p = curves[:, 1:2]
        bp_p = curves[:, 2:3]
        a3 = curves[:, 3:4]
        a2 = curves[:, 4:5]
        a1 = curves[:, 5:6]
        a0 = curves[:, 6:7]

        # -- cubic via Horner, evaluated once on the lane-flattened point grid
        pred_flat = ((a3 * ys_flat + a2) * ys_flat + a1) * ys_flat + a0   # (Q, NFLAT)
        adiff_flat = jnp.abs(pred_flat - xs_flat)                         # (Q, NFLAT)

        # -- pass 1: per-GT valid point masks / counts -> per-lane weights
        vm_list, vcnt_list, valid_list = [], [], []
        for g in range(GMAX):
            valid_g = valid_row[0:1, g:g + 1]                             # (1,1) bool
            xs_seg = xs_flat[0:1, g * NPTS:(g + 1) * NPTS]                # (1, NPTS)
            vm_seg = jnp.logical_and(xs_seg >= 0.0, valid_g).astype(f32)  # (1, NPTS)
            vm_list.append(vm_seg)
            vcnt_list.append(jnp.sum(vm_seg, keepdims=True))              # (1,1)
            valid_list.append(valid_g)
        total = vcnt_list[0] + vcnt_list[1] + vcnt_list[2] + vcnt_list[3]
        w_list = []
        for g in range(GMAX):
            w_g = jnp.sqrt(total / jnp.maximum(vcnt_list[g], 1.0))
            w_list.append(jnp.where(valid_list[g], w_g, 0.0))
        wmax = w_list[0]
        for g in range(1, GMAX):
            wmax = jnp.maximum(wmax, w_list[g])
        inv_wmax = 1.0 / jnp.maximum(wmax, 1e-6)
        w_list = [w * inv_wmax for w in w_list]

        # weighted polynomial cost columns (Q,1) per GT lane
        poly_cols = []
        for g in range(GMAX):
            seg = adiff_flat[:, g * NPTS:(g + 1) * NPTS] * vm_list[g]      # (Q, NPTS)
            poly_cols.append(jnp.sum(seg, axis=1, keepdims=True) * w_list[g])

        # -- vectorized cost matrices (Q, GMAX); classification via VPU compare/select
        cost_c0_mat = jnp.zeros((Q, GMAX), f32)
        cost_c1_mat = jnp.zeros((Q, GMAX), f32)
        for k in range(NC):
            cost_c0_mat = cost_c0_mat - p0[:, k:k + 1] * (c0_row == float(k)).astype(f32)
            cost_c1_mat = cost_c1_mat - p1[:, k:k + 1] * (c1_row == float(k)).astype(f32)
        d_low_mat = jnp.abs(low_p - lower_row)          # (Q, GMAX)
        d_up_mat = jnp.abs(up_p - upper_row)
        d_bp_mat = jnp.abs(bp_p - bp_row)
        base_cost = (W_CE0 * cost_c0_mat + W_CE1 * cost_c1_mat
                     + W_LOWER * d_low_mat + W_UPPER * d_up_mat + W_BP * d_bp_mat)

        # -- pass 2: greedy assignment over GT lanes -> loss accumulation
        # TODO(synk): exact Hungarian assignment (scipy linear_sum_assignment) has no
        # on-device equivalent; a greedy per-target assignment is used instead.
        penalty = jnp.zeros((Q, 1), f32)
        matched_q1 = jnp.zeros((Q, 1), f32)
        tc0_q1 = jnp.zeros((Q, 1), f32)
        tc1_q1 = jnp.zeros((Q, 1), f32)
        low_sum = jnp.zeros((1, 1), f32)
        up_sum = jnp.zeros((1, 1), f32)
        bp_sum = jnp.zeros((1, 1), f32)
        curves_sum = jnp.zeros((1, 1), f32)
        match_row = jnp.full((1, OUT_LANES), -1, jnp.int32)

        for g in range(GMAX):
            valid_g = valid_list[g]                                        # (1,1) bool
            cost_col = base_cost[:, g:g + 1] + W_CURVES * poly_cols[g]     # (Q, 1)
            cost_col = jnp.where(valid_g, cost_col, BIG)

            # greedy: cheapest not-yet-assigned query for this GT lane
            masked = cost_col + penalty
            q_min = jnp.min(jnp.where(masked <= jnp.min(masked), iota_q, Q))   # int32 scalar
            sel = jnp.logical_and(iota_q == q_min, valid_g).astype(f32)        # (Q,1)
            penalty = penalty + sel * BIG
            matched_q1 = matched_q1 + sel
            tc0_q1 = tc0_q1 + sel * c0_row[0:1, g:g + 1]
            tc1_q1 = tc1_q1 + sel * c1_row[0:1, g:g + 1]
            low_sum = low_sum + jnp.sum(sel * d_low_mat[:, g:g + 1], keepdims=True)
            up_sum = up_sum + jnp.sum(sel * d_up_mat[:, g:g + 1], keepdims=True)
            bp_sum = bp_sum + jnp.sum(sel * d_bp_mat[:, g:g + 1], keepdims=True)
            curves_sum = curves_sum + jnp.sum(sel * poly_cols[g], keepdims=True)

            valid_i = valid_g.astype(jnp.int32)
            mval = q_min * valid_i - (1 - valid_i)                             # (1,1) int32
            match_row = match_row + (mval + 1) * (lane128 == g).astype(jnp.int32)

        # -- cross entropy for both heads (eos_coef == 1.0 -> plain CE; unmatched -> class 0)
        ls0 = l0 - jnp.max(l0, axis=-1, keepdims=True)
        ls0 = ls0 - jnp.log(jnp.sum(jnp.exp(ls0), axis=-1, keepdims=True))
        ls1 = l1 - jnp.max(l1, axis=-1, keepdims=True)
        ls1 = ls1 - jnp.log(jnp.sum(jnp.exp(ls1), axis=-1, keepdims=True))
        oh_t0 = (iota_nc == tc0_q1.astype(jnp.int32)).astype(f32)
        oh_t1 = (iota_nc == tc1_q1.astype(jnp.int32)).astype(f32)
        ce0_sum = -jnp.sum(ls0 * oh_t0, keepdims=True)                         # (1,1)
        ce1_sum = -jnp.sum(ls1 * oh_t1, keepdims=True)

        # -- lane-existence BCE with logits (target = 1 for matched queries)
        xl = logits[:, 2 * NC:2 * NC + 1]
        bce = jnp.maximum(xl, 0.0) - xl * matched_q1 + jnp.log1p(jnp.exp(-jnp.abs(xl)))
        bce_sum = jnp.sum(bce, keepdims=True)

        # -- cardinality error: |#(argmax head0 != background) - #gt|
        rowmax = jnp.max(l0, axis=-1, keepdims=True)
        n_pred = jnp.sum((l0[:, 0:1] < rowmax).astype(f32), keepdims=True)
        n_gt = jnp.sum(valid_row.astype(f32), keepdims=True)
        card = jnp.abs(n_pred - n_gt)

        # -- pack the 8 per-image sums into one 128-lane row (unmasked store)
        vals = (ce0_sum, ce1_sum, curves_sum, low_sum, up_sum, bp_sum, bce_sum, card)
        out_row = jnp.zeros((1, OUT_LANES), f32)
        for i in range(8):
            out_row = out_row + vals[i] * (lane128 == i).astype(f32)

        sums_ref[b] = out_row
        match_ref[b] = match_row


_fused_call = pl.pallas_call(
    _fused_kernel,
    in_specs=[pl.BlockSpec(memory_space=pltpu.MemorySpace.VMEM),
              pl.BlockSpec(memory_space=pltpu.MemorySpace.VMEM),
              pl.BlockSpec(memory_space=pltpu.MemorySpace.VMEM)],
    out_specs=(pl.BlockSpec(memory_space=pltpu.MemorySpace.VMEM),
               pl.BlockSpec(memory_space=pltpu.MemorySpace.VMEM)),
    out_shape=(jax.ShapeDtypeStruct((B, 1, OUT_LANES), jnp.float32),
               jax.ShapeDtypeStruct((B, 1, OUT_LANES), jnp.int32)),
)


# ---------------------------------------------------------------------------
# JAX glue
# ---------------------------------------------------------------------------
def _pack_gt(gt):
    """Repack (B, GMAX, T) GT rows into the kernel's lane-dense (B, 6, GMAX*NPTS) slab.
    Pure layout plumbing (transpose / reshape / concat of a tiny tensor)."""
    head = jnp.swapaxes(gt[:, :, 0:4], 1, 2)                               # (B, 4, GMAX)
    head = jnp.pad(head, ((0, 0), (0, 0), (0, NFLAT - GMAX)))              # (B, 4, NFLAT)
    xs = gt[:, :, 4:4 + NPTS].reshape(B, 1, NFLAT)
    ys = gt[:, :, 4 + NPTS:4 + 2 * NPTS].reshape(B, 1, NFLAT)
    return jnp.concatenate([head, xs, ys], axis=1)                         # (B, 6, NFLAT)


@jax.jit
def _criterion(pred_logits, pred_curves, gt):
    gt_pack = _pack_gt(gt)
    sums, match = _fused_call(pred_logits, pred_curves, gt_pack)
    s = jnp.sum(sums[:, 0, :8], axis=0)                                    # (8,)
    valid = gt[:, :, 0] > 0.0
    num_curves = jnp.maximum(jnp.sum(valid.astype(jnp.float32)), 1.0)
    nq = float(B * Q)
    loss_dict = {
        'loss_ce0': s[0] / nq,
        'loss_ce1': s[1] / nq,
        'loss_curves': s[2] / num_curves,
        'loss_lowers': s[3] / num_curves,
        'loss_uppers': s[4] / num_curves,
        'loss_breakpoints': s[5] / num_curves,
        'loss_exist_b': s[6] / nq,
        'cardinality_error': s[7] / float(B),        # logged only (not in weight_dict)
    }
    return loss_dict, match[:, 0, :GMAX]


# ---------------------------------------------------------------------------
# AELoss module (forward-pass semantics of the PyTorch reference)
# ---------------------------------------------------------------------------
class AELoss:
    def __init__(self, debug_path=None, aux_loss=None, num_classes=None, dec_layers=None,
                 check_every=50):
        self.debug_path = debug_path
        self.num_class = num_classes
        # Perf: the reference does .item() + math.isfinite every step (blocking host sync);
        # we keep the check but only every `check_every` iterations.
        self.check_every = max(int(check_every), 1)
        weight_dict = dict(WEIGHT_DICT)
        if aux_loss:
            aux = {}
            for i in range(dec_layers - 1):
                aux.update({k + f'_{i}': v for k, v in WEIGHT_DICT.items()})
            weight_dict.update(aux)
        self.weight_dict = weight_dict

    def __call__(self, iteration, save, viz_split, outputs, targets):
        # targets[1]: padded GT lane tensor; the `tgt[tgt[:,0]>0]` filter is a mask in-kernel.
        gt = targets[1]
        loss_dict, indices = _criterion(outputs['pred_logits'], outputs['pred_curves'], gt)
        weight_dict = self.weight_dict
        losses = sum(loss_dict[k] * weight_dict[k] for k in loss_dict.keys() if k in weight_dict)

        # single-device: reduce_dict is the identity
        loss_dict_reduced = dict(loss_dict)
        loss_dict_reduced_unscaled = {f'{k}_unscaled': v for k, v in loss_dict_reduced.items()}
        loss_dict_reduced_scaled = {f'{k}_scaled': v * weight_dict[k]
                                    for k, v in loss_dict_reduced.items() if k in weight_dict}
        losses_reduced_scaled = sum(loss_dict_reduced_scaled.values())

        if iteration % self.check_every == 0:        # throttled host sync
            loss_value = float(losses_reduced_scaled)
            if not math.isfinite(loss_value):
                print('Loss is {}, stopping training'.format(loss_value))
                print(loss_dict_reduced)
                sys.exit(1)
        if save:
            pass  # TODO(synk): save_debug_images_boxes is host-side image I/O, not a kernel op.
        return (losses, loss_dict_reduced, loss_dict_reduced_unscaled,
                loss_dict_reduced_scaled, losses_reduced_scaled)


# ---------------------------------------------------------------------------
# Demo / smoke test
# ---------------------------------------------------------------------------
if __name__ == "__main__":
    key = jax.random.PRNGKey(0)
    k1, k2, k3 = jax.random.split(key, 3)

    pred_logits = jax.random.normal(k1, (B, Q, C), dtype=jnp.float32)
    pred_curves = 0.5 * jax.random.normal(k2, (B, Q, P), dtype=jnp.float32)

    # Deterministic synthetic GT lanes.  label = c0*10 + c1 (c0 in {1,2}, c1 in {0..NC-1});
    # label 0 rows are padding (filtered by the validity mask).
    lane_labels = [[12.0, 21.0, 11.0, 0.0],
                   [11.0, 22.0, 0.0, 0.0]]
    ys_grid = jnp.linspace(0.1, 0.9, NPTS, dtype=jnp.float32)
    xs_rand = jax.random.uniform(k3, (B, GMAX, NPTS), dtype=jnp.float32)
    pt_mask = jnp.arange(NPTS) < (NPTS - 2)              # last 2 sample points invalid (-1)
    xs_vals = jnp.where(pt_mask[None, None, :], xs_rand, -1.0)

    gt = jnp.zeros((B, GMAX, T), dtype=jnp.float32)
    for b in range(B):
        for g in range(GMAX):
            gt = gt.at[b, g, 0].set(lane_labels[b][g])
            gt = gt.at[b, g, 1].set(0.10 + 0.05 * g)     # lower
            gt = gt.at[b, g, 2].set(0.90 - 0.05 * g)     # upper
            gt = gt.at[b, g, 3].set(0.40 + 0.05 * g)     # breakpoint
            gt = gt.at[b, g, 4:4 + NPTS].set(xs_vals[b, g])
            gt = gt.at[b, g, 4 + NPTS:4 + 2 * NPTS].set(ys_grid)

    outputs = {'pred_logits': pred_logits, 'pred_curves': pred_curves}
    targets = (None, gt)   # targets[0] (viz images) unused since save=False

    ae_loss = AELoss(debug_path=None, aux_loss=None, num_classes=NC, dec_layers=None)
    (losses, loss_dict_reduced, loss_dict_unscaled,
     loss_dict_scaled, losses_reduced_scaled) = ae_loss(0, False, 'train', outputs, targets)

    jax.block_until_ready(losses)
    print("KERNEL_OK")
</pallas_src>

<mosaic_0001>
module attributes {stable_mosaic.version = 11 : i64} {
  func.func @_fused_kernel(%arg0: memref<2x8x7xf32, #tpu.memory_space<vmem>>, %arg1: memref<2x8x7xf32, #tpu.memory_space<vmem>>, %arg2: memref<2x6x32xf32, #tpu.memory_space<vmem>>, %arg3: memref<2x1x128xf32, #tpu.memory_space<vmem>>, %arg4: memref<2x1x128xi32, #tpu.memory_space<vmem>>) attributes {dimension_semantics = [], scalar_prefetch = 0 : i64, scratch_operands = 0 : i64, tpu.core_type = #tpu.core_type<tc>} {
    %0 = tpu.iota {dimensions = array<i32: 1>} : vector<1x128xi32>
    %1 = tpu.iota {dimensions = array<i32: 0>} : vector<8x1xi32>
    %2 = tpu.iota {dimensions = array<i32: 1>} : vector<8x3xi32>
    %c0 = arith.constant 0 : index
    %c0_0 = arith.constant 0 : index
    %c0_1 = arith.constant 0 : index
    %3 = vector.load %arg0[%c0, %c0_0, %c0_1] : memref<2x8x7xf32, #tpu.memory_space<vmem>>, vector<1x8x7xf32>
    %4 = vector.shape_cast %3 : vector<1x8x7xf32> to vector<8x7xf32>
    %c0_2 = arith.constant 0 : index
    %c0_3 = arith.constant 0 : index
    %c0_4 = arith.constant 0 : index
    %5 = vector.load %arg1[%c0_2, %c0_3, %c0_4] : memref<2x8x7xf32, #tpu.memory_space<vmem>>, vector<1x8x7xf32>
    %6 = vector.shape_cast %5 : vector<1x8x7xf32> to vector<8x7xf32>
    %c0_5 = arith.constant 0 : index
    %c0_6 = arith.constant 0 : index
    %c0_7 = arith.constant 0 : index
    %7 = vector.load %arg2[%c0_5, %c0_6, %c0_7] : memref<2x6x32xf32, #tpu.memory_space<vmem>>, vector<1x6x32xf32>
    %8 = vector.shape_cast %7 : vector<1x6x32xf32> to vector<6x32xf32>
    %9 = vector.extract_strided_slice %8 {offsets = [0, 0], sizes = [1, 4], strides = [1, 1]} : vector<6x32xf32> to vector<1x4xf32>
    %10 = vector.extract_strided_slice %8 {offsets = [1, 0], sizes = [1, 4], strides = [1, 1]} : vector<6x32xf32> to vector<1x4xf32>
    %11 = vector.extract_strided_slice %8 {offsets = [2, 0], sizes = [1, 4], strides = [1, 1]} : vector<6x32xf32> to vector<1x4xf32>
    %12 = vector.extract_strided_slice %8 {offsets = [3, 0], sizes = [1, 4], strides = [1, 1]} : vector<6x32xf32> to vector<1x4xf32>
    %13 = vector.extract_strided_slice %8 {offsets = [4, 0], sizes = [1, 32], strides = [1, 1]} : vector<6x32xf32> to vector<1x32xf32>
    %14 = vector.extract_strided_slice %8 {offsets = [5, 0], sizes = [1, 32], strides = [1, 1]} : vector<6x32xf32> to vector<1x32xf32>
    %cst = arith.constant 0.000000e+00 : f32
    %15 = vector.broadcast %cst : f32 to vector<1x4xf32>
    %16 = arith.cmpf ogt, %9, %15 : vector<1x4xf32>
    %cst_8 = arith.constant 5.000000e-01 : f32
    %17 = vector.broadcast %cst_8 : f32 to vector<1x4xf32>
    %18 = arith.addf %9, %17 : vector<1x4xf32>
    %cst_9 = arith.constant 1.000000e-01 : f32
    %19 = vector.broadcast %cst_9 : f32 to vector<1x4xf32>
    %20 = arith.mulf %18, %19 : vector<1x4xf32>
    %21 = math.floor %20 : vector<1x4xf32>
    %cst_10 = arith.constant 1.000000e+01 : f32
    %22 = vector.broadcast %cst_10 : f32 to vector<1x4xf32>
    %23 = arith.mulf %22, %21 : vector<1x4xf32>
    %24 = arith.subf %9, %23 : vector<1x4xf32>
    %cst_11 = arith.constant 5.000000e-01 : f32
    %25 = vector.broadcast %cst_11 : f32 to vector<1x4xf32>
    %26 = arith.addf %24, %25 : vector<1x4xf32>
    %27 = math.floor %26 : vector<1x4xf32>
    %28 = vector.extract_strided_slice %4 {offsets = [0, 0], sizes = [8, 3], strides = [1, 1]} : vector<8x7xf32> to vector<8x3xf32>
    %29 = vector.extract_strided_slice %4 {offsets = [0, 3], sizes = [8, 3], strides = [1, 1]} : vector<8x7xf32> to vector<8x3xf32>
    %cst_12 = arith.constant dense<0xFF800000> : vector<8xf32>
    %30 = vector.multi_reduction <maximumf>, %28, %cst_12 [1] : vector<8x3xf32> to vector<8xf32>
    %31 = vector.shape_cast %30 : vector<8xf32> to vector<8x1xf32>
    %32 = vector.broadcast %31 : vector<8x1xf32> to vector<8x3xf32>
    %33 = arith.subf %28, %32 : vector<8x3xf32>
    %34 = math.exp %33 : vector<8x3xf32>
    %cst_13 = arith.constant dense<0.000000e+00> : vector<8xf32>
    %35 = vector.multi_reduction <add>, %34, %cst_13 [1] : vector<8x3xf32> to vector<8xf32>
    %36 = vector.shape_cast %35 : vector<8xf32> to vector<8x1xf32>
    %37 = tpu.reciprocal %36 {approx = true} : vector<8x1xf32> -> vector<8x1xf32>
    %38 = vector.broadcast %37 : vector<8x1xf32> to vector<8x3xf32>
    %39 = arith.mulf %34, %38 : vector<8x3xf32>
    %cst_14 = arith.constant dense<0xFF800000> : vector<8xf32>
    %40 = vector.multi_reduction <maximumf>, %29, %cst_14 [1] : vector<8x3xf32> to vector<8xf32>
    %41 = vector.shape_cast %40 : vector<8xf32> to vector<8x1xf32>
    %42 = vector.broadcast %41 : vector<8x1xf32> to vector<8x3xf32>
    %43 = arith.subf %29, %42 : vector<8x3xf32>
    %44 = math.exp %43 : vector<8x3xf32>
    %cst_15 = arith.constant dense<0.000000e+00> : vector<8xf32>
    %45 = vector.multi_reduction <add>, %44, %cst_15 [1] : vector<8x3xf32> to vector<8xf32>
    %46 = vector.shape_cast %45 : vector<8xf32> to vector<8x1xf32>
    %47 = tpu.reciprocal %46 {approx = true} : vector<8x1xf32> -> vector<8x1xf32>
    %48 = vector.broadcast %47 : vector<8x1xf32> to vector<8x3xf32>
    %49 = arith.mulf %44, %48 : vector<8x3xf32>
    %50 = vector.extract_strided_slice %6 {offsets = [0, 0], sizes = [8, 1], strides = [1, 1]} : vector<8x7xf32> to vector<8x1xf32>
    %51 = vector.extract_strided_slice %6 {offsets = [0, 1], sizes = [8, 1], strides = [1, 1]} : vector<8x7xf32> to vector<8x1xf32>
    %52 = vector.extract_strided_slice %6 {offsets = [0, 2], sizes = [8, 1], strides = [1, 1]} : vector<8x7xf32> to vector<8x1xf32>
    %53 = vector.extract_strided_slice %6 {offsets = [0, 3], sizes = [8, 1], strides = [1, 1]} : vector<8x7xf32> to vector<8x1xf32>
    %54 = vector.extract_strided_slice %6 {offsets = [0, 4], sizes = [8, 1], strides = [1, 1]} : vector<8x7xf32> to vector<8x1xf32>
    %55 = vector.extract_strided_slice %6 {offsets = [0, 5], sizes = [8, 1], strides = [1, 1]} : vector<8x7xf32> to vector<8x1xf32>
    %56 = vector.extract_strided_slice %6 {offsets = [0, 6], sizes = [8, 1], strides = [1, 1]} : vector<8x7xf32> to vector<8x1xf32>
    %57 = vector.broadcast %53 : vector<8x1xf32> to vector<8x32xf32>
    %58 = vector.broadcast %14 : vector<1x32xf32> to vector<8x32xf32>
    %59 = arith.mulf %57, %58 : vector<8x32xf32>
    %60 = vector.broadcast %54 : vector<8x1xf32> to vector<8x32xf32>
    %61 = arith.addf %59, %60 : vector<8x32xf32>
    %62 = vector.broadcast %14 : vector<1x32xf32> to vector<8x32xf32>
    %63 = arith.mulf %61, %62 : vector<8x32xf32>
    %64 = vector.broadcast %55 : vector<8x1xf32> to vector<8x32xf32>
    %65 = arith.addf %63, %64 : vector<8x32xf32>
    %66 = vector.broadcast %14 : vector<1x32xf32> to vector<8x32xf32>
    %67 = arith.mulf %65, %66 : vector<8x32xf32>
    %68 = vector.broadcast %56 : vector<8x1xf32> to vector<8x32xf32>
    %69 = arith.addf %67, %68 : vector<8x32xf32>
    %70 = vector.broadcast %13 : vector<1x32xf32> to vector<8x32xf32>
    %71 = arith.subf %69, %70 : vector<8x32xf32>
    %72 = math.absf %71 : vector<8x32xf32>
    %73 = vector.extract_strided_slice %16 {offsets = [0, 0], sizes = [1, 1], strides = [1, 1]} : vector<1x4xi1> to vector<1x1xi1>
    %74 = vector.extract_strided_slice %13 {offsets = [0, 0], sizes = [1, 8], strides = [1, 1]} : vector<1x32xf32> to vector<1x8xf32>
    %cst_16 = arith.constant 0.000000e+00 : f32
    %75 = vector.broadcast %cst_16 : f32 to vector<1x8xf32>
    %76 = arith.cmpf oge, %74, %75 : vector<1x8xf32>
    %77 = vector.broadcast %73 : vector<1x1xi1> to vector<1x8xi1>
    %78 = arith.andi %76, %77 : vector<1x8xi1>
    %79 = arith.extui %78 : vector<1x8xi1> to vector<1x8xi32>
    %80 = arith.sitofp %79 : vector<1x8xi32> to vector<1x8xf32>
    %81 = vector.shape_cast %80 : vector<1x8xf32> to vector<1x1x8xf32>
    %cst_17 = arith.constant dense<0.000000e+00> : vector<1xf32>
    %82 = vector.multi_reduction <add>, %81, %cst_17 [1, 2] : vector<1x1x8xf32> to vector<1xf32>
    %83 = vector.shape_cast %82 : vector<1xf32> to vector<1x1x1xf32>
    %84 = vector.extract %83[0, 0, 0] : f32 from vector<1x1x1xf32>
    %85 = vector.broadcast %84 : f32 to vector<1x1xf32>
    %86 = vector.extract_strided_slice %16 {offsets = [0, 1], sizes = [1, 1], strides = [1, 1]} : vector<1x4xi1> to vector<1x1xi1>
    %87 = vector.extract_strided_slice %13 {offsets = [0, 8], sizes = [1, 8], strides = [1, 1]} : vector<1x32xf32> to vector<1x8xf32>
    %cst_18 = arith.constant 0.000000e+00 : f32
    %88 = vector.broadcast %cst_18 : f32 to vector<1x8xf32>
    %89 = arith.cmpf oge, %87, %88 : vector<1x8xf32>
    %90 = vector.broadcast %86 : vector<1x1xi1> to vector<1x8xi1>
    %91 = arith.andi %89, %90 : vector<1x8xi1>
    %92 = arith.extui %91 : vector<1x8xi1> to vector<1x8xi32>
    %93 = arith.sitofp %92 : vector<1x8xi32> to vector<1x8xf32>
    %94 = vector.shape_cast %93 : vector<1x8xf32> to vector<1x1x8xf32>
    %cst_19 = arith.constant dense<0.000000e+00> : vector<1xf32>
    %95 = vector.multi_reduction <add>, %94, %cst_19 [1, 2] : vector<1x1x8xf32> to vector<1xf32>
    %96 = vector.shape_cast %95 : vector<1xf32> to vector<1x1x1xf32>
    %97 = vector.extract %96[0, 0, 0] : f32 from vector<1x1x1xf32>
    %98 = vector.broadcast %97 : f32 to vector<1x1xf32>
    %99 = vector.extract_strided_slice %16 {offsets = [0, 2], sizes = [1, 1], strides = [1, 1]} : vector<1x4xi1> to vector<1x1xi1>
    %100 = vector.extract_strided_slice %13 {offsets = [0, 16], sizes = [1, 8], strides = [1, 1]} : vector<1x32xf32> to vector<1x8xf32>
    %cst_20 = arith.constant 0.000000e+00 : f32
    %101 = vector.broadcast %cst_20 : f32 to vector<1x8xf32>
    %102 = arith.cmpf oge, %100, %101 : vector<1x8xf32>
    %103 = vector.broadcast %99 : vector<1x1xi1> to vector<1x8xi1>
    %104 = arith.andi %102, %103 : vector<1x8xi1>
    %105 = arith.extui %104 : vector<1x8xi1> to vector<1x8xi32>
    %106 = arith.sitofp %105 : vector<1x8xi32> to vector<1x8xf32>
    %107 = vector.shape_cast %106 : vector<1x8xf32> to vector<1x1x8xf32>
    %cst_21 = arith.constant dense<0.000000e+00> : vector<1xf32>
    %108 = vector.multi_reduction <add>, %107, %cst_21 [1, 2] : vector<1x1x8xf32> to vector<1xf32>
    %109 = vector.shape_cast %108 : vector<1xf32> to vector<1x1x1xf32>
    %110 = vector.extract %109[0, 0, 0] : f32 from vector<1x1x1xf32>
    %111 = vector.broadcast %110 : f32 to vector<1x1xf32>
    %112 = vector.extract_strided_slice %16 {offsets = [0, 3], sizes = [1, 1], strides = [1, 1]} : vector<1x4xi1> to vector<1x1xi1>
    %113 = vector.extract_strided_slice %13 {offsets = [0, 24], sizes = [1, 8], strides = [1, 1]} : vector<1x32xf32> to vector<1x8xf32>
    %cst_22 = arith.constant 0.000000e+00 : f32
    %114 = vector.broadcast %cst_22 : f32 to vector<1x8xf32>
    %115 = arith.cmpf oge, %113, %114 : vector<1x8xf32>
    %116 = vector.broadcast %112 : vector<1x1xi1> to vector<1x8xi1>
    %117 = arith.andi %115, %116 : vector<1x8xi1>
    %118 = arith.extui %117 : vector<1x8xi1> to vector<1x8xi32>
    %119 = arith.sitofp %118 : vector<1x8xi32> to vector<1x8xf32>
    %120 = vector.shape_cast %119 : vector<1x8xf32> to vector<1x1x8xf32>
    %cst_23 = arith.constant dense<0.000000e+00> : vector<1xf32>
    %121 = vector.multi_reduction <add>, %120, %cst_23 [1, 2] : vector<1x1x8xf32> to vector<1xf32>
    %122 = vector.shape_cast %121 : vector<1xf32> to vector<1x1x1xf32>
    %123 = vector.extract %122[0, 0, 0] : f32 from vector<1x1x1xf32>
    %124 = vector.broadcast %123 : f32 to vector<1x1xf32>
    %125 = arith.addf %85, %98 : vector<1x1xf32>
    %126 = arith.addf %125, %111 : vector<1x1xf32>
    %127 = arith.addf %126, %124 : vector<1x1xf32>
    %cst_24 = arith.constant 1.000000e+00 : f32
    %128 = vector.broadcast %cst_24 : f32 to vector<1x1xf32>
    %129 = arith.maximumf %85, %128 : vector<1x1xf32>
    %130 = arith.divf %127, %129 : vector<1x1xf32>
    %131 = math.sqrt %130 : vector<1x1xf32>
    %cst_25 = arith.constant 0.000000e+00 : f32
    %132 = vector.broadcast %cst_25 : f32 to vector<1x1xf32>
    %133 = arith.select %73, %131, %132 : vector<1x1xi1>, vector<1x1xf32>
    %cst_26 = arith.constant 1.000000e+00 : f32
    %134 = vector.broadcast %cst_26 : f32 to vector<1x1xf32>
    %135 = arith.maximumf %98, %134 : vector<1x1xf32>
    %136 = arith.divf %127, %135 : vector<1x1xf32>
    %137 = math.sqrt %136 : vector<1x1xf32>
    %cst_27 = arith.constant 0.000000e+00 : f32
    %138 = vector.broadcast %cst_27 : f32 to vector<1x1xf32>
    %139 = arith.select %86, %137, %138 : vector<1x1xi1>, vector<1x1xf32>
    %cst_28 = arith.constant 1.000000e+00 : f32
    %140 = vector.broadcast %cst_28 : f32 to vector<1x1xf32>
    %141 = arith.maximumf %111, %140 : vector<1x1xf32>
    %142 = arith.divf %127, %141 : vector<1x1xf32>
    %143 = math.sqrt %142 : vector<1x1xf32>
    %cst_29 = arith.constant 0.000000e+00 : f32
    %144 = vector.broadcast %cst_29 : f32 to vector<1x1xf32>
    %145 = arith.select %99, %143, %144 : vector<1x1xi1>, vector<1x1xf32>
    %cst_30 = arith.constant 1.000000e+00 : f32
    %146 = vector.broadcast %cst_30 : f32 to vector<1x1xf32>
    %147 = arith.maximumf %124, %146 : vector<1x1xf32>
    %148 = arith.divf %127, %147 : vector<1x1xf32>
    %149 = math.sqrt %148 : vector<1x1xf32>
    %cst_31 = arith.constant 0.000000e+00 : f32
    %150 = vector.broadcast %cst_31 : f32 to vector<1x1xf32>
    %151 = arith.select %112, %149, %150 : vector<1x1xi1>, vector<1x1xf32>
    %152 = arith.maximumf %133, %139 : vector<1x1xf32>
    %153 = arith.maximumf %152, %145 : vector<1x1xf32>
    %154 = arith.maximumf %153, %151 : vector<1x1xf32>
    %cst_32 = arith.constant 9.99999997E-7 : f32
    %155 = vector.broadcast %cst_32 : f32 to vector<1x1xf32>
    %156 = arith.maximumf %154, %155 : vector<1x1xf32>
    %cst_33 = arith.constant 1.000000e+00 : f32
    %157 = vector.broadcast %cst_33 : f32 to vector<1x1xf32>
    %158 = arith.divf %157, %156 : vector<1x1xf32>
    %159 = arith.mulf %133, %158 : vector<1x1xf32>
    %160 = arith.mulf %139, %158 : vector<1x1xf32>
    %161 = arith.mulf %145, %158 : vector<1x1xf32>
    %162 = arith.mulf %151, %158 : vector<1x1xf32>
    %163 = vector.extract_strided_slice %72 {offsets = [0, 0], sizes = [8, 8], strides = [1, 1]} : vector<8x32xf32> to vector<8x8xf32>
    %164 = vector.broadcast %80 : vector<1x8xf32> to vector<8x8xf32>
    %165 = arith.mulf %163, %164 : vector<8x8xf32>
    %cst_34 = arith.constant dense<0.000000e+00> : vector<8xf32>
    %166 = vector.multi_reduction <add>, %165, %cst_34 [1] : vector<8x8xf32> to vector<8xf32>
    %167 = vector.shape_cast %166 : vector<8xf32> to vector<8x1xf32>
    %168 = vector.broadcast %159 : vector<1x1xf32> to vector<8x1xf32>
    %169 = arith.mulf %167, %168 : vector<8x1xf32>
    %170 = vector.extract_strided_slice %72 {offsets = [0, 8], sizes = [8, 8], strides = [1, 1]} : vector<8x32xf32> to vector<8x8xf32>
    %171 = vector.broadcast %93 : vector<1x8xf32> to vector<8x8xf32>
    %172 = arith.mulf %170, %171 : vector<8x8xf32>
    %cst_35 = arith.constant dense<0.000000e+00> : vector<8xf32>
    %173 = vector.multi_reduction <add>, %172, %cst_35 [1] : vector<8x8xf32> to vector<8xf32>
    %174 = vector.shape_cast %173 : vector<8xf32> to vector<8x1xf32>
    %175 = vector.broadcast %160 : vector<1x1xf32> to vector<8x1xf32>
    %176 = arith.mulf %174, %175 : vector<8x1xf32>
    %177 = vector.extract_strided_slice %72 {offsets = [0, 16], sizes = [8, 8], strides = [1, 1]} : vector<8x32xf32> to vector<8x8xf32>
    %178 = vector.broadcast %106 : vector<1x8xf32> to vector<8x8xf32>
    %179 = arith.mulf %177, %178 : vector<8x8xf32>
    %cst_36 = arith.constant dense<0.000000e+00> : vector<8xf32>
    %180 = vector.multi_reduction <add>, %179, %cst_36 [1] : vector<8x8xf32> to vector<8xf32>
    %181 = vector.shape_cast %180 : vector<8xf32> to vector<8x1xf32>
    %182 = vector.broadcast %161 : vector<1x1xf32> to vector<8x1xf32>
    %183 = arith.mulf %181, %182 : vector<8x1xf32>
    %184 = vector.extract_strided_slice %72 {offsets = [0, 24], sizes = [8, 8], strides = [1, 1]} : vector<8x32xf32> to vector<8x8xf32>
    %185 = vector.broadcast %119 : vector<1x8xf32> to vector<8x8xf32>
    %186 = arith.mulf %184, %185 : vector<8x8xf32>
    %cst_37 = arith.constant dense<0.000000e+00> : vector<8xf32>
    %187 = vector.multi_reduction <add>, %186, %cst_37 [1] : vector<8x8xf32> to vector<8xf32>
    %188 = vector.shape_cast %187 : vector<8xf32> to vector<8x1xf32>
    %189 = vector.broadcast %162 : vector<1x1xf32> to vector<8x1xf32>
    %190 = arith.mulf %188, %189 : vector<8x1xf32>
    %cst_38 = arith.constant 0.000000e+00 : f32
    %191 = vector.broadcast %cst_38 : f32 to vector<8x4xf32>
    %cst_39 = arith.constant 0.000000e+00 : f32
    %192 = vector.broadcast %cst_39 : f32 to vector<8x4xf32>
    %193 = vector.extract_strided_slice %39 {offsets = [0, 0], sizes = [8, 1], strides = [1, 1]} : vector<8x3xf32> to vector<8x1xf32>
    %cst_40 = arith.constant 0.000000e+00 : f32
    %194 = vector.broadcast %cst_40 : f32 to vector<1x4xf32>
    %195 = arith.cmpf oeq, %21, %194 : vector<1x4xf32>
    %196 = arith.extui %195 : vector<1x4xi1> to vector<1x4xi32>
    %197 = arith.sitofp %196 : vector<1x4xi32> to vector<1x4xf32>
    %198 = vector.broadcast %193 : vector<8x1xf32> to vector<8x4xf32>
    %199 = vector.broadcast %197 : vector<1x4xf32> to vector<8x4xf32>
    %200 = arith.mulf %198, %199 : vector<8x4xf32>
    %201 = arith.subf %191, %200 : vector<8x4xf32>
    %202 = vector.extract_strided_slice %49 {offsets = [0, 0], sizes = [8, 1], strides = [1, 1]} : vector<8x3xf32> to vector<8x1xf32>
    %cst_41 = arith.constant 0.000000e+00 : f32
    %203 = vector.broadcast %cst_41 : f32 to vector<1x4xf32>
    %204 = arith.cmpf oeq, %27, %203 : vector<1x4xf32>
    %205 = arith.extui %204 : vector<1x4xi1> to vector<1x4xi32>
    %206 = arith.sitofp %205 : vector<1x4xi32> to vector<1x4xf32>
    %207 = vector.broadcast %202 : vector<8x1xf32> to vector<8x4xf32>
    %208 = vector.broadcast %206 : vector<1x4xf32> to vector<8x4xf32>
    %209 = arith.mulf %207, %208 : vector<8x4xf32>
    %210 = arith.subf %192, %209 : vector<8x4xf32>
    %211 = vector.extract_strided_slice %39 {offsets = [0, 1], sizes = [8, 1], strides = [1, 1]} : vector<8x3xf32> to vector<8x1xf32>
    %cst_42 = arith.constant 1.000000e+00 : f32
    %212 = vector.broadcast %cst_42 : f32 to vector<1x4xf32>
    %213 = arith.cmpf oeq, %21, %212 : vector<1x4xf32>
    %214 = arith.extui %213 : vector<1x4xi1> to vector<1x4xi32>
    %215 = arith.sitofp %214 : vector<1x4xi32> to vector<1x4xf32>
    %216 = vector.broadcast %211 : vector<8x1xf32> to vector<8x4xf32>
    %217 = vector.broadcast %215 : vector<1x4xf32> to vector<8x4xf32>
    %218 = arith.mulf %216, %217 : vector<8x4xf32>
    %219 = arith.subf %201, %218 : vector<8x4xf32>
    %220 = vector.extract_strided_slice %49 {offsets = [0, 1], sizes = [8, 1], strides = [1, 1]} : vector<8x3xf32> to vector<8x1xf32>
    %cst_43 = arith.constant 1.000000e+00 : f32
    %221 = vector.broadcast %cst_43 : f32 to vector<1x4xf32>
    %222 = arith.cmpf oeq, %27, %221 : vector<1x4xf32>
    %223 = arith.extui %222 : vector<1x4xi1> to vector<1x4xi32>
    %224 = arith.sitofp %223 : vector<1x4xi32> to vector<1x4xf32>
    %225 = vector.broadcast %220 : vector<8x1xf32> to vector<8x4xf32>
    %226 = vector.broadcast %224 : vector<1x4xf32> to vector<8x4xf32>
    %227 = arith.mulf %225, %226 : vector<8x4xf32>
    %228 = arith.subf %210, %227 : vector<8x4xf32>
    %229 = vector.extract_strided_slice %39 {offsets = [0, 2], sizes = [8, 1], strides = [1, 1]} : vector<8x3xf32> to vector<8x1xf32>
    %cst_44 = arith.constant 2.000000e+00 : f32
    %230 = vector.broadcast %cst_44 : f32 to vector<1x4xf32>
    %231 = arith.cmpf oeq, %21, %230 : vector<1x4xf32>
    %232 = arith.extui %231 : vector<1x4xi1> to vector<1x4xi32>
    %233 = arith.sitofp %232 : vector<1x4xi32> to vector<1x4xf32>
    %234 = vector.broadcast %229 : vector<8x1xf32> to vector<8x4xf32>
    %235 = vector.broadcast %233 : vector<1x4xf32> to vector<8x4xf32>
    %236 = arith.mulf %234, %235 : vector<8x4xf32>
    %237 = arith.subf %219, %236 : vector<8x4xf32>
    %238 = vector.extract_strided_slice %49 {offsets = [0, 2], sizes = [8, 1], strides = [1, 1]} : vector<8x3xf32> to vector<8x1xf32>
    %cst_45 = arith.constant 2.000000e+00 : f32
    %239 = vector.broadcast %cst_45 : f32 to vector<1x4xf32>
    %240 = arith.cmpf oeq, %27, %239 : vector<1x4xf32>
    %241 = arith.extui %240 : vector<1x4xi1> to vector<1x4xi32>
    %242 = arith.sitofp %241 : vector<1x4xi32> to vector<1x4xf32>
    %243 = vector.broadcast %238 : vector<8x1xf32> to vector<8x4xf32>
    %244 = vector.broadcast %242 : vector<1x4xf32> to vector<8x4xf32>
    %245 = arith.mulf %243, %244 : vector<8x4xf32>
    %246 = arith.subf %228, %245 : vector<8x4xf32>
    %247 = vector.broadcast %50 : vector<8x1xf32> to vector<8x4xf32>
    %248 = vector.broadcast %10 : vector<1x4xf32> to vector<8x4xf32>
    %249 = arith.subf %247, %248 : vector<8x4xf32>
    %250 = math.absf %249 : vector<8x4xf32>
    %251 = vector.broadcast %51 : vector<8x1xf32> to vector<8x4xf32>
    %252 = vector.broadcast %11 : vector<1x4xf32> to vector<8x4xf32>
    %253 = arith.subf %251, %252 : vector<8x4xf32>
    %254 = math.absf %253 : vector<8x4xf32>
    %255 = vector.broadcast %52 : vector<8x1xf32> to vector<8x4xf32>
    %256 = vector.broadcast %12 : vector<1x4xf32> to vector<8x4xf32>
    %257 = arith.subf %255, %256 : vector<8x4xf32>
    %258 = math.absf %257 : vector<8x4xf32>
    %cst_46 = arith.constant 3.000000e+00 : f32
    %259 = vector.broadcast %cst_46 : f32 to vector<8x4xf32>
    %260 = arith.mulf %259, %237 : vector<8x4xf32>
    %cst_47 = arith.constant 3.000000e+00 : f32
    %261 = vector.broadcast %cst_47 : f32 to vector<8x4xf32>
    %262 = arith.mulf %261, %246 : vector<8x4xf32>
    %263 = arith.addf %260, %262 : vector<8x4xf32>
    %cst_48 = arith.constant 2.000000e+00 : f32
    %264 = vector.broadcast %cst_48 : f32 to vector<8x4xf32>
    %265 = arith.mulf %264, %250 : vector<8x4xf32>
    %266 = arith.addf %263, %265 : vector<8x4xf32>
    %cst_49 = arith.constant 2.000000e+00 : f32
    %267 = vector.broadcast %cst_49 : f32 to vector<8x4xf32>
    %268 = arith.mulf %267, %254 : vector<8x4xf32>
    %269 = arith.addf %266, %268 : vector<8x4xf32>
    %cst_50 = arith.constant 2.500000e+00 : f32
    %270 = vector.broadcast %cst_50 : f32 to vector<8x4xf32>
    %271 = arith.mulf %270, %258 : vector<8x4xf32>
    %272 = arith.addf %269, %271 : vector<8x4xf32>
    %cst_51 = arith.constant 0.000000e+00 : f32
    %273 = vector.broadcast %cst_51 : f32 to vector<8x1xf32>
    %cst_52 = arith.constant 0.000000e+00 : f32
    %274 = vector.broadcast %cst_52 : f32 to vector<8x1xf32>
    %cst_53 = arith.constant 0.000000e+00 : f32
    %275 = vector.broadcast %cst_53 : f32 to vector<8x1xf32>
    %cst_54 = arith.constant 0.000000e+00 : f32
    %276 = vector.broadcast %cst_54 : f32 to vector<8x1xf32>
    %cst_55 = arith.constant 0.000000e+00 : f32
    %277 = vector.broadcast %cst_55 : f32 to vector<1x1xf32>
    %cst_56 = arith.constant 0.000000e+00 : f32
    %278 = vector.broadcast %cst_56 : f32 to vector<1x1xf32>
    %cst_57 = arith.constant 0.000000e+00 : f32
    %279 = vector.broadcast %cst_57 : f32 to vector<1x1xf32>
    %cst_58 = arith.constant 0.000000e+00 : f32
    %280 = vector.broadcast %cst_58 : f32 to vector<1x1xf32>
    %c-1_i32 = arith.constant -1 : i32
    %281 = vector.broadcast %c-1_i32 : i32 to vector<1x128xi32>
    %282 = vector.extract_strided_slice %272 {offsets = [0, 0], sizes = [8, 1], strides = [1, 1]} : vector<8x4xf32> to vector<8x1xf32>
    %cst_59 = arith.constant 5.000000e+00 : f32
    %283 = vector.broadcast %cst_59 : f32 to vector<8x1xf32>
    %284 = arith.mulf %283, %169 : vector<8x1xf32>
    %285 = arith.addf %282, %284 : vector<8x1xf32>
    %cst_60 = arith.constant 1.000000e+09 : f32
    %286 = vector.shape_cast %73 : vector<1x1xi1> to vector<1x1xi1>
    %287 = vector.broadcast %286 : vector<1x1xi1> to vector<8x1xi1>
    %288 = vector.broadcast %cst_60 : f32 to vector<8x1xf32>
    %289 = arith.select %287, %285, %288 : vector<8x1xi1>, vector<8x1xf32>
    %290 = arith.addf %289, %273 : vector<8x1xf32>
    %291 = vector.shape_cast %290 : vector<8x1xf32> to vector<1x8x1xf32>
    %cst_61 = arith.constant dense<0x7F800000> : vector<1xf32>
    %292 = vector.multi_reduction <minimumf>, %291, %cst_61 [1, 2] : vector<1x8x1xf32> to vector<1xf32>
    %293 = vector.shape_cast %292 : vector<1xf32> to vector<1x1x1xf32>
    %294 = vector.extract %293[0, 0, 0] : f32 from vector<1x1x1xf32>
    %295 = vector.broadcast %294 : f32 to vector<8x1xf32>
    %296 = arith.cmpf ole, %290, %295 : vector<8x1xf32>
    %c8_i32 = arith.constant 8 : i32
    %297 = vector.broadcast %c8_i32 : i32 to vector<8x1xi32>
    %298 = arith.select %296, %1, %297 : vector<8x1xi1>, vector<8x1xi32>
    %299 = vector.shape_cast %298 : vector<8x1xi32> to vector<1x8x1xi32>
    %cst_62 = arith.constant dense<2147483647> : vector<1xi32>
    %300 = vector.multi_reduction <minsi>, %299, %cst_62 [1, 2] : vector<1x8x1xi32> to vector<1xi32>
    %301 = vector.shape_cast %300 : vector<1xi32> to vector<1x1x1xi32>
    %302 = vector.extract %301[0, 0, 0] : i32 from vector<1x1x1xi32>
    %303 = vector.broadcast %302 : i32 to vector<8x1xi32>
    %304 = arith.cmpi eq, %1, %303 : vector<8x1xi32>
    %305 = vector.broadcast %73 : vector<1x1xi1> to vector<8x1xi1>
    %306 = arith.andi %304, %305 : vector<8x1xi1>
    %307 = arith.extui %306 : vector<8x1xi1> to vector<8x1xi32>
    %308 = arith.sitofp %307 : vector<8x1xi32> to vector<8x1xf32>
    %cst_63 = arith.constant 1.000000e+09 : f32
    %309 = vector.broadcast %cst_63 : f32 to vector<8x1xf32>
    %310 = arith.mulf %308, %309 : vector<8x1xf32>
    %311 = arith.addf %273, %310 : vector<8x1xf32>
    %312 = arith.addf %274, %308 : vector<8x1xf32>
    %313 = vector.extract_strided_slice %21 {offsets = [0, 0], sizes = [1, 1], strides = [1, 1]} : vector<1x4xf32> to vector<1x1xf32>
    %314 = vector.broadcast %313 : vector<1x1xf32> to vector<8x1xf32>
    %315 = arith.mulf %308, %314 : vector<8x1xf32>
    %316 = arith.addf %275, %315 : vector<8x1xf32>
    %317 = vector.extract_strided_slice %27 {offsets = [0, 0], sizes = [1, 1], strides = [1, 1]} : vector<1x4xf32> to vector<1x1xf32>
    %318 = vector.broadcast %317 : vector<1x1xf32> to vector<8x1xf32>
    %319 = arith.mulf %308, %318 : vector<8x1xf32>
    %320 = arith.addf %276, %319 : vector<8x1xf32>
    %321 = vector.extract_strided_slice %250 {offsets = [0, 0], sizes = [8, 1], strides = [1, 1]} : vector<8x4xf32> to vector<8x1xf32>
    %322 = arith.mulf %308, %321 : vector<8x1xf32>
    %323 = vector.shape_cast %322 : vector<8x1xf32> to vector<1x8x1xf32>
    %cst_64 = arith.constant dense<0.000000e+00> : vector<1xf32>
    %324 = vector.multi_reduction <add>, %323, %cst_64 [1, 2] : vector<1x8x1xf32> to vector<1xf32>
    %325 = vector.shape_cast %324 : vector<1xf32> to vector<1x1x1xf32>
    %326 = vector.extract %325[0, 0, 0] : f32 from vector<1x1x1xf32>
    %327 = vector.broadcast %326 : f32 to vector<1x1xf32>
    %328 = arith.addf %277, %327 : vector<1x1xf32>
    %329 = vector.extract_strided_slice %254 {offsets = [0, 0], sizes = [8, 1], strides = [1, 1]} : vector<8x4xf32> to vector<8x1xf32>
    %330 = arith.mulf %308, %329 : vector<8x1xf32>
    %331 = vector.shape_cast %330 : vector<8x1xf32> to vector<1x8x1xf32>
    %cst_65 = arith.constant dense<0.000000e+00> : vector<1xf32>
    %332 = vector.multi_reduction <add>, %331, %cst_65 [1, 2] : vector<1x8x1xf32> to vector<1xf32>
    %333 = vector.shape_cast %332 : vector<1xf32> to vector<1x1x1xf32>
    %334 = vector.extract %333[0, 0, 0] : f32 from vector<1x1x1xf32>
    %335 = vector.broadcast %334 : f32 to vector<1x1xf32>
    %336 = arith.addf %278, %335 : vector<1x1xf32>
    %337 = vector.extract_strided_slice %258 {offsets = [0, 0], sizes = [8, 1], strides = [1, 1]} : vector<8x4xf32> to vector<8x1xf32>
    %338 = arith.mulf %308, %337 : vector<8x1xf32>
    %339 = vector.shape_cast %338 : vector<8x1xf32> to vector<1x8x1xf32>
    %cst_66 = arith.constant dense<0.000000e+00> : vector<1xf32>
    %340 = vector.multi_reduction <add>, %339, %cst_66 [1, 2] : vector<1x8x1xf32> to vector<1xf32>
    %341 = vector.shape_cast %340 : vector<1xf32> to vector<1x1x1xf32>
    %342 = vector.extract %341[0, 0, 0] : f32 from vector<1x1x1xf32>
    %343 = vector.broadcast %342 : f32 to vector<1x1xf32>
    %344 = arith.addf %279, %343 : vector<1x1xf32>
    %345 = arith.mulf %308, %169 : vector<8x1xf32>
    %346 = vector.shape_cast %345 : vector<8x1xf32> to vector<1x8x1xf32>
    %cst_67 = arith.constant dense<0.000000e+00> : vector<1xf32>
    %347 = vector.multi_reduction <add>, %346, %cst_67 [1, 2] : vector<1x8x1xf32> to vector<1xf32>
    %348 = vector.shape_cast %347 : vector<1xf32> to vector<1x1x1xf32>
    %349 = vector.extract %348[0, 0, 0] : f32 from vector<1x1x1xf32>
    %350 = vector.broadcast %349 : f32 to vector<1x1xf32>
    %351 = arith.addf %280, %350 : vector<1x1xf32>
    %352 = arith.extui %73 : vector<1x1xi1> to vector<1x1xi32>
    %353 = vector.broadcast %302 : i32 to vector<1x1xi32>
    %354 = arith.muli %353, %352 : vector<1x1xi32>
    %c1_i32 = arith.constant 1 : i32
    %355 = vector.broadcast %c1_i32 : i32 to vector<1x1xi32>
    %356 = arith.subi %355, %352 : vector<1x1xi32>
    %357 = arith.subi %354, %356 : vector<1x1xi32>
    %c1_i32_68 = arith.constant 1 : i32
    %358 = vector.broadcast %c1_i32_68 : i32 to vector<1x1xi32>
    %359 = arith.addi %357, %358 : vector<1x1xi32>
    %c0_i32 = arith.constant 0 : i32
    %360 = vector.broadcast %c0_i32 : i32 to vector<1x128xi32>
    %361 = arith.cmpi eq, %0, %360 : vector<1x128xi32>
    %362 = arith.extui %361 : vector<1x128xi1> to vector<1x128xi32>
    %363 = vector.broadcast %359 : vector<1x1xi32> to vector<1x128xi32>
    %364 = arith.muli %363, %362 : vector<1x128xi32>
    %365 = arith.addi %281, %364 : vector<1x128xi32>
    %366 = vector.extract_strided_slice %272 {offsets = [0, 1], sizes = [8, 1], strides = [1, 1]} : vector<8x4xf32> to vector<8x1xf32>
    %cst_69 = arith.constant 5.000000e+00 : f32
    %367 = vector.broadcast %cst_69 : f32 to vector<8x1xf32>
    %368 = arith.mulf %367, %176 : vector<8x1xf32>
    %369 = arith.addf %366, %368 : vector<8x1xf32>
    %cst_70 = arith.constant 1.000000e+09 : f32
    %370 = vector.shape_cast %86 : vector<1x1xi1> to vector<1x1xi1>
    %371 = vector.broadcast %370 : vector<1x1xi1> to vector<8x1xi1>
    %372 = vector.broadcast %cst_70 : f32 to vector<8x1xf32>
    %373 = arith.select %371, %369, %372 : vector<8x1xi1>, vector<8x1xf32>
    %374 = arith.addf %373, %311 : vector<8x1xf32>
    %375 = vector.shape_cast %374 : vector<8x1xf32> to vector<1x8x1xf32>
    %cst_71 = arith.constant dense<0x7F800000> : vector<1xf32>
    %376 = vector.multi_reduction <minimumf>, %375, %cst_71 [1, 2] : vector<1x8x1xf32> to vector<1xf32>
    %377 = vector.shape_cast %376 : vector<1xf32> to vector<1x1x1xf32>
    %378 = vector.extract %377[0, 0, 0] : f32 from vector<1x1x1xf32>
    %379 = vector.broadcast %378 : f32 to vector<8x1xf32>
    %380 = arith.cmpf ole, %374, %379 : vector<8x1xf32>
    %c8_i32_72 = arith.constant 8 : i32
    %381 = vector.broadcast %c8_i32_72 : i32 to vector<8x1xi32>
    %382 = arith.select %380, %1, %381 : vector<8x1xi1>, vector<8x1xi32>
    %383 = vector.shape_cast %382 : vector<8x1xi32> to vector<1x8x1xi32>
    %cst_73 = arith.constant dense<2147483647> : vector<1xi32>
    %384 = vector.multi_reduction <minsi>, %383, %cst_73 [1, 2] : vector<1x8x1xi32> to vector<1xi32>
    %385 = vector.shape_cast %384 : vector<1xi32> to vector<1x1x1xi32>
    %386 = vector.extract %385[0, 0, 0] : i32 from vector<1x1x1xi32>
    %387 = vector.broadcast %386 : i32 to vector<8x1xi32>
    %388 = arith.cmpi eq, %1, %387 : vector<8x1xi32>
    %389 = vector.broadcast %86 : vector<1x1xi1> to vector<8x1xi1>
    %390 = arith.andi %388, %389 : vector<8x1xi1>
    %391 = arith.extui %390 : vector<8x1xi1> to vector<8x1xi32>
    %392 = arith.sitofp %391 : vector<8x1xi32> to vector<8x1xf32>
    %cst_74 = arith.constant 1.000000e+09 : f32
    %393 = vector.broadcast %cst_74 : f32 to vector<8x1xf32>
    %394 = arith.mulf %392, %393 : vector<8x1xf32>
    %395 = arith.addf %311, %394 : vector<8x1xf32>
    %396 = arith.addf %312, %392 : vector<8x1xf32>
    %397 = vector.extract_strided_slice %21 {offsets = [0, 1], sizes = [1, 1], strides = [1, 1]} : vector<1x4xf32> to vector<1x1xf32>
    %398 = vector.broadcast %397 : vector<1x1xf32> to vector<8x1xf32>
    %399 = arith.mulf %392, %398 : vector<8x1xf32>
    %400 = arith.addf %316, %399 : vector<8x1xf32>
    %401 = vector.extract_strided_slice %27 {offsets = [0, 1], sizes = [1, 1], strides = [1, 1]} : vector<1x4xf32> to vector<1x1xf32>
    %402 = vector.broadcast %401 : vector<1x1xf32> to vector<8x1xf32>
    %403 = arith.mulf %392, %402 : vector<8x1xf32>
    %404 = arith.addf %320, %403 : vector<8x1xf32>
    %405 = vector.extract_strided_slice %250 {offsets = [0, 1], sizes = [8, 1], strides = [1, 1]} : vector<8x4xf32> to vector<8x1xf32>
    %406 = arith.mulf %392, %405 : vector<8x1xf32>
    %407 = vector.shape_cast %406 : vector<8x1xf32> to vector<1x8x1xf32>
    %cst_75 = arith.constant dense<0.000000e+00> : vector<1xf32>
    %408 = vector.multi_reduction <add>, %407, %cst_75 [1, 2] : vector<1x8x1xf32> to vector<1xf32>
    %409 = vector.shape_cast %408 : vector<1xf32> to vector<1x1x1xf32>
    %410 = vector.extract %409[0, 0, 0] : f32 from vector<1x1x1xf32>
    %411 = vector.broadcast %410 : f32 to vector<1x1xf32>
    %412 = arith.addf %328, %411 : vector<1x1xf32>
    %413 = vector.extract_strided_slice %254 {offsets = [0, 1], sizes = [8, 1], strides = [1, 1]} : vector<8x4xf32> to vector<8x1xf32>
    %414 = arith.mulf %392, %413 : vector<8x1xf32>
    %415 = vector.shape_cast %414 : vector<8x1xf32> to vector<1x8x1xf32>
    %cst_76 = arith.constant dense<0.000000e+00> : vector<1xf32>
    %416 = vector.multi_reduction <add>, %415, %cst_76 [1, 2] : vector<1x8x1xf32> to vector<1xf32>
    %417 = vector.shape_cast %416 : vector<1xf32> to vector<1x1x1xf32>
    %418 = vector.extract %417[0, 0, 0] : f32 from vector<1x1x1xf32>
    %419 = vector.broadcast %418 : f32 to vector<1x1xf32>
    %420 = arith.addf %336, %419 : vector<1x1xf32>
    %421 = vector.extract_strided_slice %258 {offsets = [0, 1], sizes = [8, 1], strides = [1, 1]} : vector<8x4xf32> to vector<8x1xf32>
    %422 = arith.mulf %392, %421 : vector<8x1xf32>
    %423 = vector.shape_cast %422 : vector<8x1xf32> to vector<1x8x1xf32>
    %cst_77 = arith.constant dense<0.000000e+00> : vector<1xf32>
    %424 = vector.multi_reduction <add>, %423, %cst_77 [1, 2] : vector<1x8x1xf32> to vector<1xf32>
    %425 = vector.shape_cast %424 : vector<1xf32> to vector<1x1x1xf32>
    %426 = vector.extract %425[0, 0, 0] : f32 from vector<1x1x1xf32>
    %427 = vector.broadcast %426 : f32 to vector<1x1xf32>
    %428 = arith.addf %344, %427 : vector<1x1xf32>
    %429 = arith.mulf %392, %176 : vector<8x1xf32>
    %430 = vector.shape_cast %429 : vector<8x1xf32> to vector<1x8x1xf32>
    %cst_78 = arith.constant dense<0.000000e+00> : vector<1xf32>
    %431 = vector.multi_reduction <add>, %430, %cst_78 [1, 2] : vector<1x8x1xf32> to vector<1xf32>
    %432 = vector.shape_cast %431 : vector<1xf32> to vector<1x1x1xf32>
    %433 = vector.extract %432[0, 0, 0] : f32 from vector<1x1x1xf32>
    %434 = vector.broadcast %433 : f32 to vector<1x1xf32>
    %435 = arith.addf %351, %434 : vector<1x1xf32>
    %436 = arith.extui %86 : vector<1x1xi1> to vector<1x1xi32>
    %437 = vector.broadcast %386 : i32 to vector<1x1xi32>
    %438 = arith.muli %437, %436 : vector<1x1xi32>
    %c1_i32_79 = arith.constant 1 : i32
    %439 = vector.broadcast %c1_i32_79 : i32 to vector<1x1xi32>
    %440 = arith.subi %439, %436 : vector<1x1xi32>
    %441 = arith.subi %438, %440 : vector<1x1xi32>
    %c1_i32_80 = arith.constant 1 : i32
    %442 = vector.broadcast %c1_i32_80 : i32 to vector<1x1xi32>
    %443 = arith.addi %441, %442 : vector<1x1xi32>
    %c1_i32_81 = arith.constant 1 : i32
    %444 = vector.broadcast %c1_i32_81 : i32 to vector<1x128xi32>
    %445 = arith.cmpi eq, %0, %444 : vector<1x128xi32>
    %446 = arith.extui %445 : vector<1x128xi1> to vector<1x128xi32>
    %447 = vector.broadcast %443 : vector<1x1xi32> to vector<1x128xi32>
    %448 = arith.muli %447, %446 : vector<1x128xi32>
    %449 = arith.addi %365, %448 : vector<1x128xi32>
    %450 = vector.extract_strided_slice %272 {offsets = [0, 2], sizes = [8, 1], strides = [1, 1]} : vector<8x4xf32> to vector<8x1xf32>
    %cst_82 = arith.constant 5.000000e+00 : f32
    %451 = vector.broadcast %cst_82 : f32 to vector<8x1xf32>
    %452 = arith.mulf %451, %183 : vector<8x1xf32>
    %453 = arith.addf %450, %452 : vector<8x1xf32>
    %cst_83 = arith.constant 1.000000e+09 : f32
    %454 = vector.shape_cast %99 : vector<1x1xi1> to vector<1x1xi1>
    %455 = vector.broadcast %454 : vector<1x1xi1> to vector<8x1xi1>
    %456 = vector.broadcast %cst_83 : f32 to vector<8x1xf32>
    %457 = arith.select %455, %453, %456 : vector<8x1xi1>, vector<8x1xf32>
    %458 = arith.addf %457, %395 : vector<8x1xf32>
    %459 = vector.shape_cast %458 : vector<8x1xf32> to vector<1x8x1xf32>
    %cst_84 = arith.constant dense<0x7F800000> : vector<1xf32>
    %460 = vector.multi_reduction <minimumf>, %459, %cst_84 [1, 2] : vector<1x8x1xf32> to vector<1xf32>
    %461 = vector.shape_cast %460 : vector<1xf32> to vector<1x1x1xf32>
    %462 = vector.extract %461[0, 0, 0] : f32 from vector<1x1x1xf32>
    %463 = vector.broadcast %462 : f32 to vector<8x1xf32>
    %464 = arith.cmpf ole, %458, %463 : vector<8x1xf32>
    %c8_i32_85 = arith.constant 8 : i32
    %465 = vector.broadcast %c8_i32_85 : i32 to vector<8x1xi32>
    %466 = arith.select %464, %1, %465 : vector<8x1xi1>, vector<8x1xi32>
    %467 = vector.shape_cast %466 : vector<8x1xi32> to vector<1x8x1xi32>
    %cst_86 = arith.constant dense<2147483647> : vector<1xi32>
    %468 = vector.multi_reduction <minsi>, %467, %cst_86 [1, 2] : vector<1x8x1xi32> to vector<1xi32>
    %469 = vector.shape_cast %468 : vector<1xi32> to vector<1x1x1xi32>
    %470 = vector.extract %469[0, 0, 0] : i32 from vector<1x1x1xi32>
    %471 = vector.broadcast %470 : i32 to vector<8x1xi32>
    %472 = arith.cmpi eq, %1, %471 : vector<8x1xi32>
    %473 = vector.broadcast %99 : vector<1x1xi1> to vector<8x1xi1>
    %474 = arith.andi %472, %473 : vector<8x1xi1>
    %475 = arith.extui %474 : vector<8x1xi1> to vector<8x1xi32>
    %476 = arith.sitofp %475 : vector<8x1xi32> to vector<8x1xf32>
    %cst_87 = arith.constant 1.000000e+09 : f32
    %477 = vector.broadcast %cst_87 : f32 to vector<8x1xf32>
    %478 = arith.mulf %476, %477 : vector<8x1xf32>
    %479 = arith.addf %395, %478 : vector<8x1xf32>
    %480 = arith.addf %396, %476 : vector<8x1xf32>
    %481 = vector.extract_strided_slice %21 {offsets = [0, 2], sizes = [1, 1], strides = [1, 1]} : vector<1x4xf32> to vector<1x1xf32>
    %482 = vector.broadcast %481 : vector<1x1xf32> to vector<8x1xf32>
    %483 = arith.mulf %476, %482 : vector<8x1xf32>
    %484 = arith.addf %400, %483 : vector<8x1xf32>
    %485 = vector.extract_strided_slice %27 {offsets = [0, 2], sizes = [1, 1], strides = [1, 1]} : vector<1x4xf32> to vector<1x1xf32>
    %486 = vector.broadcast %485 : vector<1x1xf32> to vector<8x1xf32>
    %487 = arith.mulf %476, %486 : vector<8x1xf32>
    %488 = arith.addf %404, %487 : vector<8x1xf32>
    %489 = vector.extract_strided_slice %250 {offsets = [0, 2], sizes = [8, 1], strides = [1, 1]} : vector<8x4xf32> to vector<8x1xf32>
    %490 = arith.mulf %476, %489 : vector<8x1xf32>
    %491 = vector.shape_cast %490 : vector<8x1xf32> to vector<1x8x1xf32>
    %cst_88 = arith.constant dense<0.000000e+00> : vector<1xf32>
    %492 = vector.multi_reduction <add>, %491, %cst_88 [1, 2] : vector<1x8x1xf32> to vector<1xf32>
    %493 = vector.shape_cast %492 : vector<1xf32> to vector<1x1x1xf32>
    %494 = vector.extract %493[0, 0, 0] : f32 from vector<1x1x1xf32>
    %495 = vector.broadcast %494 : f32 to vector<1x1xf32>
    %496 = arith.addf %412, %495 : vector<1x1xf32>
    %497 = vector.extract_strided_slice %254 {offsets = [0, 2], sizes = [8, 1], strides = [1, 1]} : vector<8x4xf32> to vector<8x1xf32>
    %498 = arith.mulf %476, %497 : vector<8x1xf32>
    %499 = vector.shape_cast %498 : vector<8x1xf32> to vector<1x8x1xf32>
    %cst_89 = arith.constant dense<0.000000e+00> : vector<1xf32>
    %500 = vector.multi_reduction <add>, %499, %cst_89 [1, 2] : vector<1x8x1xf32> to vector<1xf32>
    %501 = vector.shape_cast %500 : vector<1xf32> to vector<1x1x1xf32>
    %502 = vector.extract %501[0, 0, 0] : f32 from vector<1x1x1xf32>
    %503 = vector.broadcast %502 : f32 to vector<1x1xf32>
    %504 = arith.addf %420, %503 : vector<1x1xf32>
    %505 = vector.extract_strided_slice %258 {offsets = [0, 2], sizes = [8, 1], strides = [1, 1]} : vector<8x4xf32> to vector<8x1xf32>
    %506 = arith.mulf %476, %505 : vector<8x1xf32>
    %507 = vector.shape_cast %506 : vector<8x1xf32> to vector<1x8x1xf32>
    %cst_90 = arith.constant dense<0.000000e+00> : vector<1xf32>
    %508 = vector.multi_reduction <add>, %507, %cst_90 [1, 2] : vector<1x8x1xf32> to vector<1xf32>
    %509 = vector.shape_cast %508 : vector<1xf32> to vector<1x1x1xf32>
    %510 = vector.extract %509[0, 0, 0] : f32 from vector<1x1x1xf32>
    %511 = vector.broadcast %510 : f32 to vector<1x1xf32>
    %512 = arith.addf %428, %511 : vector<1x1xf32>
    %513 = arith.mulf %476, %183 : vector<8x1xf32>
    %514 = vector.shape_cast %513 : vector<8x1xf32> to vector<1x8x1xf32>
    %cst_91 = arith.constant dense<0.000000e+00> : vector<1xf32>
    %515 = vector.multi_reduction <add>, %514, %cst_91 [1, 2] : vector<1x8x1xf32> to vector<1xf32>
    %516 = vector.shape_cast %515 : vector<1xf32> to vector<1x1x1xf32>
    %517 = vector.extract %516[0, 0, 0] : f32 from vector<1x1x1xf32>
    %518 = vector.broadcast %517 : f32 to vector<1x1xf32>
    %519 = arith.addf %435, %518 : vector<1x1xf32>
    %520 = arith.extui %99 : vector<1x1xi1> to vector<1x1xi32>
    %521 = vector.broadcast %470 : i32 to vector<1x1xi32>
    %522 = arith.muli %521, %520 : vector<1x1xi32>
    %c1_i32_92 = arith.constant 1 : i32
    %523 = vector.broadcast %c1_i32_92 : i32 to vector<1x1xi32>
    %524 = arith.subi %523, %520 : vector<1x1xi32>
    %525 = arith.subi %522, %524 : vector<1x1xi32>
    %c1_i32_93 = arith.constant 1 : i32
    %526 = vector.broadcast %c1_i32_93 : i32 to vector<1x1xi32>
    %527 = arith.addi %525, %526 : vector<1x1xi32>
    %c2_i32 = arith.constant 2 : i32
    %528 = vector.broadcast %c2_i32 : i32 to vector<1x128xi32>
    %529 = arith.cmpi eq, %0, %528 : vector<1x128xi32>
    %530 = arith.extui %529 : vector<1x128xi1> to vector<1x128xi32>
    %531 = vector.broadcast %527 : vector<1x1xi32> to vector<1x128xi32>
    %532 = arith.muli %531, %530 : vector<1x128xi32>
    %533 = arith.addi %449, %532 : vector<1x128xi32>
    %534 = vector.extract_strided_slice %272 {offsets = [0, 3], sizes = [8, 1], strides = [1, 1]} : vector<8x4xf32> to vector<8x1xf32>
    %cst_94 = arith.constant 5.000000e+00 : f32
    %535 = vector.broadcast %cst_94 : f32 to vector<8x1xf32>
    %536 = arith.mulf %535, %190 : vector<8x1xf32>
    %537 = arith.addf %534, %536 : vector<8x1xf32>
    %cst_95 = arith.constant 1.000000e+09 : f32
    %538 = vector.shape_cast %112 : vector<1x1xi1> to vector<1x1xi1>
    %539 = vector.broadcast %538 : vector<1x1xi1> to vector<8x1xi1>
    %540 = vector.broadcast %cst_95 : f32 to vector<8x1xf32>
    %541 = arith.select %539, %537, %540 : vector<8x1xi1>, vector<8x1xf32>
    %542 = arith.addf %541, %479 : vector<8x1xf32>
    %543 = vector.shape_cast %542 : vector<8x1xf32> to vector<1x8x1xf32>
    %cst_96 = arith.constant dense<0x7F800000> : vector<1xf32>
    %544 = vector.multi_reduction <minimumf>, %543, %cst_96 [1, 2] : vector<1x8x1xf32> to vector<1xf32>
    %545 = vector.shape_cast %544 : vector<1xf32> to vector<1x1x1xf32>
    %546 = vector.extract %545[0, 0, 0] : f32 from vector<1x1x1xf32>
    %547 = vector.broadcast %546 : f32 to vector<8x1xf32>
    %548 = arith.cmpf ole, %542, %547 : vector<8x1xf32>
    %c8_i32_97 = arith.constant 8 : i32
    %549 = vector.broadcast %c8_i32_97 : i32 to vector<8x1xi32>
    %550 = arith.select %548, %1, %549 : vector<8x1xi1>, vector<8x1xi32>
    %551 = vector.shape_cast %550 : vector<8x1xi32> to vector<1x8x1xi32>
    %cst_98 = arith.constant dense<2147483647> : vector<1xi32>
    %552 = vector.multi_reduction <minsi>, %551, %cst_98 [1, 2] : vector<1x8x1xi32> to vector<1xi32>
    %553 = vector.shape_cast %552 : vector<1xi32> to vector<1x1x1xi32>
    %554 = vector.extract %553[0, 0, 0] : i32 from vector<1x1x1xi32>
    %555 = vector.broadcast %554 : i32 to vector<8x1xi32>
    %556 = arith.cmpi eq, %1, %555 : vector<8x1xi32>
    %557 = vector.broadcast %112 : vector<1x1xi1> to vector<8x1xi1>
    %558 = arith.andi %556, %557 : vector<8x1xi1>
    %559 = arith.extui %558 : vector<8x1xi1> to vector<8x1xi32>
    %560 = arith.sitofp %559 : vector<8x1xi32> to vector<8x1xf32>
    %561 = arith.addf %480, %560 : vector<8x1xf32>
    %562 = vector.extract_strided_slice %21 {offsets = [0, 3], sizes = [1, 1], strides = [1, 1]} : vector<1x4xf32> to vector<1x1xf32>
    %563 = vector.broadcast %562 : vector<1x1xf32> to vector<8x1xf32>
    %564 = arith.mulf %560, %563 : vector<8x1xf32>
    %565 = arith.addf %484, %564 : vector<8x1xf32>
    %566 = vector.extract_strided_slice %27 {offsets = [0, 3], sizes = [1, 1], strides = [1, 1]} : vector<1x4xf32> to vector<1x1xf32>
    %567 = vector.broadcast %566 : vector<1x1xf32> to vector<8x1xf32>
    %568 = arith.mulf %560, %567 : vector<8x1xf32>
    %569 = arith.addf %488, %568 : vector<8x1xf32>
    %570 = vector.extract_strided_slice %250 {offsets = [0, 3], sizes = [8, 1], strides = [1, 1]} : vector<8x4xf32> to vector<8x1xf32>
    %571 = arith.mulf %560, %570 : vector<8x1xf32>
    %572 = vector.shape_cast %571 : vector<8x1xf32> to vector<1x8x1xf32>
    %cst_99 = arith.constant dense<0.000000e+00> : vector<1xf32>
    %573 = vector.multi_reduction <add>, %572, %cst_99 [1, 2] : vector<1x8x1xf32> to vector<1xf32>
    %574 = vector.shape_cast %573 : vector<1xf32> to vector<1x1x1xf32>
    %575 = vector.extract %574[0, 0, 0] : f32 from vector<1x1x1xf32>
    %576 = vector.broadcast %575 : f32 to vector<1x1xf32>
    %577 = arith.addf %496, %576 : vector<1x1xf32>
    %578 = vector.extract_strided_slice %254 {offsets = [0, 3], sizes = [8, 1], strides = [1, 1]} : vector<8x4xf32> to vector<8x1xf32>
    %579 = arith.mulf %560, %578 : vector<8x1xf32>
    %580 = vector.shape_cast %579 : vector<8x1xf32> to vector<1x8x1xf32>
    %cst_100 = arith.constant dense<0.000000e+00> : vector<1xf32>
    %581 = vector.multi_reduction <add>, %580, %cst_100 [1, 2] : vector<1x8x1xf32> to vector<1xf32>
    %582 = vector.shape_cast %581 : vector<1xf32> to vector<1x1x1xf32>
    %583 = vector.extract %582[0, 0, 0] : f32 from vector<1x1x1xf32>
    %584 = vector.broadcast %583 : f32 to vector<1x1xf32>
    %585 = arith.addf %504, %584 : vector<1x1xf32>
    %586 = vector.extract_strided_slice %258 {offsets = [0, 3], sizes = [8, 1], strides = [1, 1]} : vector<8x4xf32> to vector<8x1xf32>
    %587 = arith.mulf %560, %586 : vector<8x1xf32>
    %588 = vector.shape_cast %587 : vector<8x1xf32> to vector<1x8x1xf32>
    %cst_101 = arith.constant dense<0.000000e+00> : vector<1xf32>
    %589 = vector.multi_reduction <add>, %588, %cst_101 [1, 2] : vector<1x8x1xf32> to vector<1xf32>
    %590 = vector.shape_cast %589 : vector<1xf32> to vector<1x1x1xf32>
    %591 = vector.extract %590[0, 0, 0] : f32 from vector<1x1x1xf32>
    %592 = vector.broadcast %591 : f32 to vector<1x1xf32>
    %593 = arith.addf %512, %592 : vector<1x1xf32>
    %594 = arith.mulf %560, %190 : vector<8x1xf32>
    %595 = vector.shape_cast %594 : vector<8x1xf32> to vector<1x8x1xf32>
    %cst_102 = arith.constant dense<0.000000e+00> : vector<1xf32>
    %596 = vector.multi_reduction <add>, %595, %cst_102 [1, 2] : vector<1x8x1xf32> to vector<1xf32>
    %597 = vector.shape_cast %596 : vector<1xf32> to vector<1x1x1xf32>
    %598 = vector.extract %597[0, 0, 0] : f32 from vector<1x1x1xf32>
    %599 = vector.broadcast %598 : f32 to vector<1x1xf32>
    %600 = arith.addf %519, %599 : vector<1x1xf32>
    %601 = arith.extui %112 : vector<1x1xi1> to vector<1x1xi32>
    %602 = vector.broadcast %554 : i32 to vector<1x1xi32>
    %603 = arith.muli %602, %601 : vector<1x1xi32>
    %c1_i32_103 = arith.constant 1 : i32
    %604 = vector.broadcast %c1_i32_103 : i32 to vector<1x1xi32>
    %605 = arith.subi %604, %601 : vector<1x1xi32>
    %606 = arith.subi %603, %605 : vector<1x1xi32>
    %c1_i32_104 = arith.constant 1 : i32
    %607 = vector.broadcast %c1_i32_104 : i32 to vector<1x1xi32>
    %608 = arith.addi %606, %607 : vector<1x1xi32>
    %c3_i32 = arith.constant 3 : i32
    %609 = vector.broadcast %c3_i32 : i32 to vector<1x128xi32>
    %610 = arith.cmpi eq, %0, %609 : vector<1x128xi32>
    %611 = arith.extui %610 : vector<1x128xi1> to vector<1x128xi32>
    %612 = vector.broadcast %608 : vector<1x1xi32> to vector<1x128xi32>
    %613 = arith.muli %612, %611 : vector<1x128xi32>
    %614 = arith.addi %533, %613 : vector<1x128xi32>
    %cst_105 = arith.constant dense<0xFF800000> : vector<8xf32>
    %615 = vector.multi_reduction <maximumf>, %28, %cst_105 [1] : vector<8x3xf32> to vector<8xf32>
    %616 = vector.shape_cast %615 : vector<8xf32> to vector<8x1xf32>
    %617 = vector.broadcast %616 : vector<8x1xf32> to vector<8x3xf32>
    %618 = arith.subf %28, %617 : vector<8x3xf32>
    %619 = math.exp %618 : vector<8x3xf32>
    %cst_106 = arith.constant dense<0.000000e+00> : vector<8xf32>
    %620 = vector.multi_reduction <add>, %619, %cst_106 [1] : vector<8x3xf32> to vector<8xf32>
    %621 = vector.shape_cast %620 : vector<8xf32> to vector<8x1xf32>
    %622 = math.log %621 : vector<8x1xf32>
    %623 = vector.broadcast %622 : vector<8x1xf32> to vector<8x3xf32>
    %624 = arith.subf %618, %623 : vector<8x3xf32>
    %cst_107 = arith.constant dense<0xFF800000> : vector<8xf32>
    %625 = vector.multi_reduction <maximumf>, %29, %cst_107 [1] : vector<8x3xf32> to vector<8xf32>
    %626 = vector.shape_cast %625 : vector<8xf32> to vector<8x1xf32>
    %627 = vector.broadcast %626 : vector<8x1xf32> to vector<8x3xf32>
    %628 = arith.subf %29, %627 : vector<8x3xf32>
    %629 = math.exp %628 : vector<8x3xf32>
    %cst_108 = arith.constant dense<0.000000e+00> : vector<8xf32>
    %630 = vector.multi_reduction <add>, %629, %cst_108 [1] : vector<8x3xf32> to vector<8xf32>
    %631 = vector.shape_cast %630 : vector<8xf32> to vector<8x1xf32>
    %632 = math.log %631 : vector<8x1xf32>
    %633 = vector.broadcast %632 : vector<8x1xf32> to vector<8x3xf32>
    %634 = arith.subf %628, %633 : vector<8x3xf32>
    %635 = arith.fptosi %565 : vector<8x1xf32> to vector<8x1xi32>
    %636 = vector.broadcast %635 : vector<8x1xi32> to vector<8x3xi32>
    %637 = arith.cmpi eq, %2, %636 : vector<8x3xi32>
    %638 = arith.extui %637 : vector<8x3xi1> to vector<8x3xi32>
    %639 = arith.sitofp %638 : vector<8x3xi32> to vector<8x3xf32>
    %640 = arith.fptosi %569 : vector<8x1xf32> to vector<8x1xi32>
    %641 = vector.broadcast %640 : vector<8x1xi32> to vector<8x3xi32>
    %642 = arith.cmpi eq, %2, %641 : vector<8x3xi32>
    %643 = arith.extui %642 : vector<8x3xi1> to vector<8x3xi32>
    %644 = arith.sitofp %643 : vector<8x3xi32> to vector<8x3xf32>
    %645 = arith.mulf %624, %639 : vector<8x3xf32>
    %646 = vector.shape_cast %645 : vector<8x3xf32> to vector<1x8x3xf32>
    %cst_109 = arith.constant dense<0.000000e+00> : vector<1xf32>
    %647 = vector.multi_reduction <add>, %646, %cst_109 [1, 2] : vector<1x8x3xf32> to vector<1xf32>
    %648 = vector.shape_cast %647 : vector<1xf32> to vector<1x1x1xf32>
    %649 = vector.extract %648[0, 0, 0] : f32 from vector<1x1x1xf32>
    %650 = vector.broadcast %649 : f32 to vector<1x1xf32>
    %cst_110 = arith.constant 0.000000e+00 : f32
    %651 = vector.broadcast %cst_110 : f32 to vector<1x1xf32>
    %652 = arith.subf %651, %650 : vector<1x1xf32>
    %653 = arith.mulf %634, %644 : vector<8x3xf32>
    %654 = vector.shape_cast %653 : vector<8x3xf32> to vector<1x8x3xf32>
    %cst_111 = arith.constant dense<0.000000e+00> : vector<1xf32>
    %655 = vector.multi_reduction <add>, %654, %cst_111 [1, 2] : vector<1x8x3xf32> to vector<1xf32>
    %656 = vector.shape_cast %655 : vector<1xf32> to vector<1x1x1xf32>
    %657 = vector.extract %656[0, 0, 0] : f32 from vector<1x1x1xf32>
    %658 = vector.broadcast %657 : f32 to vector<1x1xf32>
    %cst_112 = arith.constant 0.000000e+00 : f32
    %659 = vector.broadcast %cst_112 : f32 to vector<1x1xf32>
    %660 = arith.subf %659, %658 : vector<1x1xf32>
    %661 = vector.extract_strided_slice %4 {offsets = [0, 6], sizes = [8, 1], strides = [1, 1]} : vector<8x7xf32> to vector<8x1xf32>
    %cst_113 = arith.constant 0.000000e+00 : f32
    %662 = vector.broadcast %cst_113 : f32 to vector<8x1xf32>
    %663 = arith.maximumf %661, %662 : vector<8x1xf32>
    %664 = arith.mulf %661, %561 : vector<8x1xf32>
    %665 = arith.subf %663, %664 : vector<8x1xf32>
    %666 = math.absf %661 : vector<8x1xf32>
    %cst_114 = arith.constant 0.000000e+00 : f32
    %667 = vector.broadcast %cst_114 : f32 to vector<8x1xf32>
    %668 = arith.subf %667, %666 : vector<8x1xf32>
    %669 = math.exp %668 : vector<8x1xf32>
    %670 = math.log1p %669 : vector<8x1xf32>
    %671 = arith.addf %665, %670 : vector<8x1xf32>
    %672 = vector.shape_cast %671 : vector<8x1xf32> to vector<1x8x1xf32>
    %cst_115 = arith.constant dense<0.000000e+00> : vector<1xf32>
    %673 = vector.multi_reduction <add>, %672, %cst_115 [1, 2] : vector<1x8x1xf32> to vector<1xf32>
    %674 = vector.shape_cast %673 : vector<1xf32> to vector<1x1x1xf32>
    %675 = vector.extract %674[0, 0, 0] : f32 from vector<1x1x1xf32>
    %676 = vector.broadcast %675 : f32 to vector<1x1xf32>
    %cst_116 = arith.constant dense<0xFF800000> : vector<8xf32>
    %677 = vector.multi_reduction <maximumf>, %28, %cst_116 [1] : vector<8x3xf32> to vector<8xf32>
    %678 = vector.shape_cast %677 : vector<8xf32> to vector<8x1xf32>
    %679 = vector.extract_strided_slice %28 {offsets = [0, 0], sizes = [8, 1], strides = [1, 1]} : vector<8x3xf32> to vector<8x1xf32>
    %680 = arith.cmpf olt, %679, %678 : vector<8x1xf32>
    %681 = arith.extui %680 : vector<8x1xi1> to vector<8x1xi32>
    %682 = arith.sitofp %681 : vector<8x1xi32> to vector<8x1xf32>
    %683 = vector.shape_cast %682 : vector<8x1xf32> to vector<1x8x1xf32>
    %cst_117 = arith.constant dense<0.000000e+00> : vector<1xf32>
    %684 = vector.multi_reduction <add>, %683, %cst_117 [1, 2] : vector<1x8x1xf32> to vector<1xf32>
    %685 = vector.shape_cast %684 : vector<1xf32> to vector<1x1x1xf32>
    %686 = vector.extract %685[0, 0, 0] : f32 from vector<1x1x1xf32>
    %687 = vector.broadcast %686 : f32 to vector<1x1xf32>
    %688 = arith.extui %16 : vector<1x4xi1> to vector<1x4xi32>
    %689 = arith.sitofp %688 : vector<1x4xi32> to vector<1x4xf32>
    %690 = vector.shape_cast %689 : vector<1x4xf32> to vector<1x1x4xf32>
    %cst_118 = arith.constant dense<0.000000e+00> : vector<1xf32>
    %691 = vector.multi_reduction <add>, %690, %cst_118 [1, 2] : vector<1x1x4xf32> to vector<1xf32>
    %692 = vector.shape_cast %691 : vector<1xf32> to vector<1x1x1xf32>
    %693 = vector.extract %692[0, 0, 0] : f32 from vector<1x1x1xf32>
    %694 = vector.broadcast %693 : f32 to vector<1x1xf32>
    %695 = arith.subf %687, %694 : vector<1x1xf32>
    %696 = math.absf %695 : vector<1x1xf32>
    %cst_119 = arith.constant 0.000000e+00 : f32
    %697 = vector.broadcast %cst_119 : f32 to vector<1x128xf32>
    %c0_i32_120 = arith.constant 0 : i32
    %698 = vector.broadcast %c0_i32_120 : i32 to vector<1x128xi32>
    %699 = arith.cmpi eq, %0, %698 : vector<1x128xi32>
    %700 = arith.extui %699 : vector<1x128xi1> to vector<1x128xi32>
    %701 = arith.sitofp %700 : vector<1x128xi32> to vector<1x128xf32>
    %702 = vector.broadcast %652 : vector<1x1xf32> to vector<1x128xf32>
    %703 = arith.mulf %702, %701 : vector<1x128xf32>
    %704 = arith.addf %697, %703 : vector<1x128xf32>
    %c1_i32_121 = arith.constant 1 : i32
    %705 = vector.broadcast %c1_i32_121 : i32 to vector<1x128xi32>
    %706 = arith.cmpi eq, %0, %705 : vector<1x128xi32>
    %707 = arith.extui %706 : vector<1x128xi1> to vector<1x128xi32>
    %708 = arith.sitofp %707 : vector<1x128xi32> to vector<1x128xf32>
    %709 = vector.broadcast %660 : vector<1x1xf32> to vector<1x128xf32>
    %710 = arith.mulf %709, %708 : vector<1x128xf32>
    %711 = arith.addf %704, %710 : vector<1x128xf32>
    %c2_i32_122 = arith.constant 2 : i32
    %712 = vector.broadcast %c2_i32_122 : i32 to vector<1x128xi32>
    %713 = arith.cmpi eq, %0, %712 : vector<1x128xi32>
    %714 = arith.extui %713 : vector<1x128xi1> to vector<1x128xi32>
    %715 = arith.sitofp %714 : vector<1x128xi32> to vector<1x128xf32>
    %716 = vector.broadcast %600 : vector<1x1xf32> to vector<1x128xf32>
    %717 = arith.mulf %716, %715 : vector<1x128xf32>
    %718 = arith.addf %711, %717 : vector<1x128xf32>
    %c3_i32_123 = arith.constant 3 : i32
    %719 = vector.broadcast %c3_i32_123 : i32 to vector<1x128xi32>
    %720 = arith.cmpi eq, %0, %719 : vector<1x128xi32>
    %721 = arith.extui %720 : vector<1x128xi1> to vector<1x128xi32>
    %722 = arith.sitofp %721 : vector<1x128xi32> to vector<1x128xf32>
    %723 = vector.broadcast %577 : vector<1x1xf32> to vector<1x128xf32>
    %724 = arith.mulf %723, %722 : vector<1x128xf32>
    %725 = arith.addf %718, %724 : vector<1x128xf32>
    %c4_i32 = arith.constant 4 : i32
    %726 = vector.broadcast %c4_i32 : i32 to vector<1x128xi32>
    %727 = arith.cmpi eq, %0, %726 : vector<1x128xi32>
    %728 = arith.extui %727 : vector<1x128xi1> to vector<1x128xi32>
    %729 = arith.sitofp %728 : vector<1x128xi32> to vector<1x128xf32>
    %730 = vector.broadcast %585 : vector<1x1xf32> to vector<1x128xf32>
    %731 = arith.mulf %730, %729 : vector<1x128xf32>
    %732 = arith.addf %725, %731 : vector<1x128xf32>
    %c5_i32 = arith.constant 5 : i32
    %733 = vector.broadcast %c5_i32 : i32 to vector<1x128xi32>
    %734 = arith.cmpi eq, %0, %733 : vector<1x128xi32>
    %735 = arith.extui %734 : vector<1x128xi1> to vector<1x128xi32>
    %736 = arith.sitofp %735 : vector<1x128xi32> to vector<1x128xf32>
    %737 = vector.broadcast %593 : vector<1x1xf32> to vector<1x128xf32>
    %738 = arith.mulf %737, %736 : vector<1x128xf32>
    %739 = arith.addf %732, %738 : vector<1x128xf32>
    %c6_i32 = arith.constant 6 : i32
    %740 = vector.broadcast %c6_i32 : i32 to vector<1x128xi32>
    %741 = arith.cmpi eq, %0, %740 : vector<1x128xi32>
    %742 = arith.extui %741 : vector<1x128xi1> to vector<1x128xi32>
    %743 = arith.sitofp %742 : vector<1x128xi32> to vector<1x128xf32>
    %744 = vector.broadcast %676 : vector<1x1xf32> to vector<1x128xf32>
    %745 = arith.mulf %744, %743 : vector<1x128xf32>
    %746 = arith.addf %739, %745 : vector<1x128xf32>
    %c7_i32 = arith.constant 7 : i32
    %747 = vector.broadcast %c7_i32 : i32 to vector<1x128xi32>
    %748 = arith.cmpi eq, %0, %747 : vector<1x128xi32>
    %749 = arith.extui %748 : vector<1x128xi1> to vector<1x128xi32>
    %750 = arith.sitofp %749 : vector<1x128xi32> to vector<1x128xf32>
    %751 = vector.broadcast %696 : vector<1x1xf32> to vector<1x128xf32>
    %752 = arith.mulf %751, %750 : vector<1x128xf32>
    %753 = arith.addf %746, %752 : vector<1x128xf32>
    %c0_124 = arith.constant 0 : index
    %c0_125 = arith.constant 0 : index
    %c0_126 = arith.constant 0 : index
    %754 = vector.load %arg3[%c0_124, %c0_125, %c0_126] : memref<2x1x128xf32, #tpu.memory_space<vmem>>, vector<1x1x128xf32>
    %755 = vector.shape_cast %754 : vector<1x1x128xf32> to vector<1x128xf32>
    %756 = vector.shape_cast %753 : vector<1x128xf32> to vector<1x1x128xf32>
    tpu.vector_store %arg3[%c0_124, %c0_125, %c0_126], %756 {strides = array<i32>} : memref<2x1x128xf32, #tpu.memory_space<vmem>>, vector<1x1x128xf32>,
    %c0_127 = arith.constant 0 : index
    %c0_128 = arith.constant 0 : index
    %c0_129 = arith.constant 0 : index
    %757 = vector.load %arg4[%c0_127, %c0_128, %c0_129] : memref<2x1x128xi32, #tpu.memory_space<vmem>>, vector<1x1x128xi32>
    %758 = vector.shape_cast %757 : vector<1x1x128xi32> to vector<1x128xi32>
    %759 = vector.shape_cast %614 : vector<1x128xi32> to vector<1x1x128xi32>
    tpu.vector_store %arg4[%c0_127, %c0_128, %c0_129], %759 {strides = array<i32>} : memref<2x1x128xi32, #tpu.memory_space<vmem>>, vector<1x1x128xi32>,
    %c1 = arith.constant 1 : index
    %c0_130 = arith.constant 0 : index
    %c0_131 = arith.constant 0 : index
    %760 = vector.load %arg0[%c1, %c0_130, %c0_131] : memref<2x8x7xf32, #tpu.memory_space<vmem>>, vector<1x8x7xf32>
    %761 = vector.shape_cast %760 : vector<1x8x7xf32> to vector<8x7xf32>
    %c1_132 = arith.constant 1 : index
    %c0_133 = arith.constant 0 : index
    %c0_134 = arith.constant 0 : index
    %762 = vector.load %arg1[%c1_132, %c0_133, %c0_134] : memref<2x8x7xf32, #tpu.memory_space<vmem>>, vector<1x8x7xf32>
    %763 = vector.shape_cast %762 : vector<1x8x7xf32> to vector<8x7xf32>
    %c1_135 = arith.constant 1 : index
    %c0_136 = arith.constant 0 : index
    %c0_137 = arith.constant 0 : index
    %764 = vector.load %arg2[%c1_135, %c0_136, %c0_137] : memref<2x6x32xf32, #tpu.memory_space<vmem>>, vector<1x6x32xf32>
    %765 = vector.shape_cast %764 : vector<1x6x32xf32> to vector<6x32xf32>
    %766 = vector.extract_strided_slice %765 {offsets = [0, 0], sizes = [1, 4], strides = [1, 1]} : vector<6x32xf32> to vector<1x4xf32>
    %767 = vector.extract_strided_slice %765 {offsets = [1, 0], sizes = [1, 4], strides = [1, 1]} : vector<6x32xf32> to vector<1x4xf32>
    %768 = vector.extract_strided_slice %765 {offsets = [2, 0], sizes = [1, 4], strides = [1, 1]} : vector<6x32xf32> to vector<1x4xf32>
    %769 = vector.extract_strided_slice %765 {offsets = [3, 0], sizes = [1, 4], strides = [1, 1]} : vector<6x32xf32> to vector<1x4xf32>
    %770 = vector.extract_strided_slice %765 {offsets = [4, 0], sizes = [1, 32], strides = [1, 1]} : vector<6x32xf32> to vector<1x32xf32>
    %771 = vector.extract_strided_slice %765 {offsets = [5, 0], sizes = [1, 32], strides = [1, 1]} : vector<6x32xf32> to vector<1x32xf32>
    %cst_138 = arith.constant 0.000000e+00 : f32
    %772 = vector.broadcast %cst_138 : f32 to vector<1x4xf32>
    %773 = arith.cmpf ogt, %766, %772 : vector<1x4xf32>
    %cst_139 = arith.constant 5.000000e-01 : f32
    %774 = vector.broadcast %cst_139 : f32 to vector<1x4xf32>
    %775 = arith.addf %766, %774 : vector<1x4xf32>
    %cst_140 = arith.constant 1.000000e-01 : f32
    %776 = vector.broadcast %cst_140 : f32 to vector<1x4xf32>
    %777 = arith.mulf %775, %776 : vector<1x4xf32>
    %778 = math.floor %777 : vector<1x4xf32>
    %cst_141 = arith.constant 1.000000e+01 : f32
    %779 = vector.broadcast %cst_141 : f32 to vector<1x4xf32>
    %780 = arith.mulf %779, %778 : vector<1x4xf32>
    %781 = arith.subf %766, %780 : vector<1x4xf32>
    %cst_142 = arith.constant 5.000000e-01 : f32
    %782 = vector.broadcast %cst_142 : f32 to vector<1x4xf32>
    %783 = arith.addf %781, %782 : vector<1x4xf32>
    %784 = math.floor %783 : vector<1x4xf32>
    %785 = vector.extract_strided_slice %761 {offsets = [0, 0], sizes = [8, 3], strides = [1, 1]} : vector<8x7xf32> to vector<8x3xf32>
    %786 = vector.extract_strided_slice %761 {offsets = [0, 3], sizes = [8, 3], strides = [1, 1]} : vector<8x7xf32> to vector<8x3xf32>
    %cst_143 = arith.constant dense<0xFF800000> : vector<8xf32>
    %787 = vector.multi_reduction <maximumf>, %785, %cst_143 [1] : vector<8x3xf32> to vector<8xf32>
    %788 = vector.shape_cast %787 : vector<8xf32> to vector<8x1xf32>
    %789 = vector.broadcast %788 : vector<8x1xf32> to vector<8x3xf32>
    %790 = arith.subf %785, %789 : vector<8x3xf32>
    %791 = math.exp %790 : vector<8x3xf32>
    %cst_144 = arith.constant dense<0.000000e+00> : vector<8xf32>
    %792 = vector.multi_reduction <add>, %791, %cst_144 [1] : vector<8x3xf32> to vector<8xf32>
    %793 = vector.shape_cast %792 : vector<8xf32> to vector<8x1xf32>
    %794 = tpu.reciprocal %793 {approx = true} : vector<8x1xf32> -> vector<8x1xf32>
    %795 = vector.broadcast %794 : vector<8x1xf32> to vector<8x3xf32>
    %796 = arith.mulf %791, %795 : vector<8x3xf32>
    %cst_145 = arith.constant dense<0xFF800000> : vector<8xf32>
    %797 = vector.multi_reduction <maximumf>, %786, %cst_145 [1] : vector<8x3xf32> to vector<8xf32>
    %798 = vector.shape_cast %797 : vector<8xf32> to vector<8x1xf32>
    %799 = vector.broadcast %798 : vector<8x1xf32> to vector<8x3xf32>
    %800 = arith.subf %786, %799 : vector<8x3xf32>
    %801 = math.exp %800 : vector<8x3xf32>
    %cst_146 = arith.constant dense<0.000000e+00> : vector<8xf32>
    %802 = vector.multi_reduction <add>, %801, %cst_146 [1] : vector<8x3xf32> to vector<8xf32>
    %803 = vector.shape_cast %802 : vector<8xf32> to vector<8x1xf32>
    %804 = tpu.reciprocal %803 {approx = true} : vector<8x1xf32> -> vector<8x1xf32>
    %805 = vector.broadcast %804 : vector<8x1xf32> to vector<8x3xf32>
    %806 = arith.mulf %801, %805 : vector<8x3xf32>
    %807 = vector.extract_strided_slice %763 {offsets = [0, 0], sizes = [8, 1], strides = [1, 1]} : vector<8x7xf32> to vector<8x1xf32>
    %808 = vector.extract_strided_slice %763 {offsets = [0, 1], sizes = [8, 1], strides = [1, 1]} : vector<8x7xf32> to vector<8x1xf32>
    %809 = vector.extract_strided_slice %763 {offsets = [0, 2], sizes = [8, 1], strides = [1, 1]} : vector<8x7xf32> to vector<8x1xf32>
    %810 = vector.extract_strided_slice %763 {offsets = [0, 3], sizes = [8, 1], strides = [1, 1]} : vector<8x7xf32> to vector<8x1xf32>
    %811 = vector.extract_strided_slice %763 {offsets = [0, 4], sizes = [8, 1], strides = [1, 1]} : vector<8x7xf32> to vector<8x1xf32>
    %812 = vector.extract_strided_slice %763 {offsets = [0, 5], sizes = [8, 1], strides = [1, 1]} : vector<8x7xf32> to vector<8x1xf32>
    %813 = vector.extract_strided_slice %763 {offsets = [0, 6], sizes = [8, 1], strides = [1, 1]} : vector<8x7xf32> to vector<8x1xf32>
    %814 = vector.broadcast %810 : vector<8x1xf32> to vector<8x32xf32>
    %815 = vector.broadcast %771 : vector<1x32xf32> to vector<8x32xf32>
    %816 = arith.mulf %814, %815 : vector<8x32xf32>
    %817 = vector.broadcast %811 : vector<8x1xf32> to vector<8x32xf32>
    %818 = arith.addf %816, %817 : vector<8x32xf32>
    %819 = vector.broadcast %771 : vector<1x32xf32> to vector<8x32xf32>
    %820 = arith.mulf %818, %819 : vector<8x32xf32>
    %821 = vector.broadcast %812 : vector<8x1xf32> to vector<8x32xf32>
    %822 = arith.addf %820, %821 : vector<8x32xf32>
    %823 = vector.broadcast %771 : vector<1x32xf32> to vector<8x32xf32>
    %824 = arith.mulf %822, %823 : vector<8x32xf32>
    %825 = vector.broadcast %813 : vector<8x1xf32> to vector<8x32xf32>
    %826 = arith.addf %824, %825 : vector<8x32xf32>
    %827 = vector.broadcast %770 : vector<1x32xf32> to vector<8x32xf32>
    %828 = arith.subf %826, %827 : vector<8x32xf32>
    %829 = math.absf %828 : vector<8x32xf32>
    %830 = vector.extract_strided_slice %773 {offsets = [0, 0], sizes = [1, 1], strides = [1, 1]} : vector<1x4xi1> to vector<1x1xi1>
    %831 = vector.extract_strided_slice %770 {offsets = [0, 0], sizes = [1, 8], strides = [1, 1]} : vector<1x32xf32> to vector<1x8xf32>
    %cst_147 = arith.constant 0.000000e+00 : f32
    %832 = vector.broadcast %cst_147 : f32 to vector<1x8xf32>
    %833 = arith.cmpf oge, %831, %832 : vector<1x8xf32>
    %834 = vector.broadcast %830 : vector<1x1xi1> to vector<1x8xi1>
    %835 = arith.andi %833, %834 : vector<1x8xi1>
    %836 = arith.extui %835 : vector<1x8xi1> to vector<1x8xi32>
    %837 = arith.sitofp %836 : vector<1x8xi32> to vector<1x8xf32>
    %838 = vector.shape_cast %837 : vector<1x8xf32> to vector<1x1x8xf32>
    %cst_148 = arith.constant dense<0.000000e+00> : vector<1xf32>
    %839 = vector.multi_reduction <add>, %838, %cst_148 [1, 2] : vector<1x1x8xf32> to vector<1xf32>
    %840 = vector.shape_cast %839 : vector<1xf32> to vector<1x1x1xf32>
    %841 = vector.extract %840[0, 0, 0] : f32 from vector<1x1x1xf32>
    %842 = vector.broadcast %841 : f32 to vector<1x1xf32>
    %843 = vector.extract_strided_slice %773 {offsets = [0, 1], sizes = [1, 1], strides = [1, 1]} : vector<1x4xi1> to vector<1x1xi1>
    %844 = vector.extract_strided_slice %770 {offsets = [0, 8], sizes = [1, 8], strides = [1, 1]} : vector<1x32xf32> to vector<1x8xf32>
    %cst_149 = arith.constant 0.000000e+00 : f32
    %845 = vector.broadcast %cst_149 : f32 to vector<1x8xf32>
    %846 = arith.cmpf oge, %844, %845 : vector<1x8xf32>
    %847 = vector.broadcast %843 : vector<1x1xi1> to vector<1x8xi1>
    %848 = arith.andi %846, %847 : vector<1x8xi1>
    %849 = arith.extui %848 : vector<1x8xi1> to vector<1x8xi32>
    %850 = arith.sitofp %849 : vector<1x8xi32> to vector<1x8xf32>
    %851 = vector.shape_cast %850 : vector<1x8xf32> to vector<1x1x8xf32>
    %cst_150 = arith.constant dense<0.000000e+00> : vector<1xf32>
    %852 = vector.multi_reduction <add>, %851, %cst_150 [1, 2] : vector<1x1x8xf32> to vector<1xf32>
    %853 = vector.shape_cast %852 : vector<1xf32> to vector<1x1x1xf32>
    %854 = vector.extract %853[0, 0, 0] : f32 from vector<1x1x1xf32>
    %855 = vector.broadcast %854 : f32 to vector<1x1xf32>
    %856 = vector.extract_strided_slice %773 {offsets = [0, 2], sizes = [1, 1], strides = [1, 1]} : vector<1x4xi1> to vector<1x1xi1>
    %857 = vector.extract_strided_slice %770 {offsets = [0, 16], sizes = [1, 8], strides = [1, 1]} : vector<1x32xf32> to vector<1x8xf32>
    %cst_151 = arith.constant 0.000000e+00 : f32
    %858 = vector.broadcast %cst_151 : f32 to vector<1x8xf32>
    %859 = arith.cmpf oge, %857, %858 : vector<1x8xf32>
    %860 = vector.broadcast %856 : vector<1x1xi1> to vector<1x8xi1>
    %861 = arith.andi %859, %860 : vector<1x8xi1>
    %862 = arith.extui %861 : vector<1x8xi1> to vector<1x8xi32>
    %863 = arith.sitofp %862 : vector<1x8xi32> to vector<1x8xf32>
    %864 = vector.shape_cast %863 : vector<1x8xf32> to vector<1x1x8xf32>
    %cst_152 = arith.constant dense<0.000000e+00> : vector<1xf32>
    %865 = vector.multi_reduction <add>, %864, %cst_152 [1, 2] : vector<1x1x8xf32> to vector<1xf32>
    %866 = vector.shape_cast %865 : vector<1xf32> to vector<1x1x1xf32>
    %867 = vector.extract %866[0, 0, 0] : f32 from vector<1x1x1xf32>
    %868 = vector.broadcast %867 : f32 to vector<1x1xf32>
    %869 = vector.extract_strided_slice %773 {offsets = [0, 3], sizes = [1, 1], strides = [1, 1]} : vector<1x4xi1> to vector<1x1xi1>
    %870 = vector.extract_strided_slice %770 {offsets = [0, 24], sizes = [1, 8], strides = [1, 1]} : vector<1x32xf32> to vector<1x8xf32>
    %cst_153 = arith.constant 0.000000e+00 : f32
    %871 = vector.broadcast %cst_153 : f32 to vector<1x8xf32>
    %872 = arith.cmpf oge, %870, %871 : vector<1x8xf32>
    %873 = vector.broadcast %869 : vector<1x1xi1> to vector<1x8xi1>
    %874 = arith.andi %872, %873 : vector<1x8xi1>
    %875 = arith.extui %874 : vector<1x8xi1> to vector<1x8xi32>
    %876 = arith.sitofp %875 : vector<1x8xi32> to vector<1x8xf32>
    %877 = vector.shape_cast %876 : vector<1x8xf32> to vector<1x1x8xf32>
    %cst_154 = arith.constant dense<0.000000e+00> : vector<1xf32>
    %878 = vector.multi_reduction <add>, %877, %cst_154 [1, 2] : vector<1x1x8xf32> to vector<1xf32>
    %879 = vector.shape_cast %878 : vector<1xf32> to vector<1x1x1xf32>
    %880 = vector.extract %879[0, 0, 0] : f32 from vector<1x1x1xf32>
    %881 = vector.broadcast %880 : f32 to vector<1x1xf32>
    %882 = arith.addf %842, %855 : vector<1x1xf32>
    %883 = arith.addf %882, %868 : vector<1x1xf32>
    %884 = arith.addf %883, %881 : vector<1x1xf32>
    %cst_155 = arith.constant 1.000000e+00 : f32
    %885 = vector.broadcast %cst_155 : f32 to vector<1x1xf32>
    %886 = arith.maximumf %842, %885 : vector<1x1xf32>
    %887 = arith.divf %884, %886 : vector<1x1xf32>
    %888 = math.sqrt %887 : vector<1x1xf32>
    %cst_156 = arith.constant 0.000000e+00 : f32
    %889 = vector.broadcast %cst_156 : f32 to vector<1x1xf32>
    %890 = arith.select %830, %888, %889 : vector<1x1xi1>, vector<1x1xf32>
    %cst_157 = arith.constant 1.000000e+00 : f32
    %891 = vector.broadcast %cst_157 : f32 to vector<1x1xf32>
    %892 = arith.maximumf %855, %891 : vector<1x1xf32>
    %893 = arith.divf %884, %892 : vector<1x1xf32>
    %894 = math.sqrt %893 : vector<1x1xf32>
    %cst_158 = arith.constant 0.000000e+00 : f32
    %895 = vector.broadcast %cst_158 : f32 to vector<1x1xf32>
    %896 = arith.select %843, %894, %895 : vector<1x1xi1>, vector<1x1xf32>
    %cst_159 = arith.constant 1.000000e+00 : f32
    %897 = vector.broadcast %cst_159 : f32 to vector<1x1xf32>
    %898 = arith.maximumf %868, %897 : vector<1x1xf32>
    %899 = arith.divf %884, %898 : vector<1x1xf32>
    %900 = math.sqrt %899 : vector<1x1xf32>
    %cst_160 = arith.constant 0.000000e+00 : f32
    %901 = vector.broadcast %cst_160 : f32 to vector<1x1xf32>
    %902 = arith.select %856, %900, %901 : vector<1x1xi1>, vector<1x1xf32>
    %cst_161 = arith.constant 1.000000e+00 : f32
    %903 = vector.broadcast %cst_161 : f32 to vector<1x1xf32>
    %904 = arith.maximumf %881, %903 : vector<1x1xf32>
    %905 = arith.divf %884, %904 : vector<1x1xf32>
    %906 = math.sqrt %905 : vector<1x1xf32>
    %cst_162 = arith.constant 0.000000e+00 : f32
    %907 = vector.broadcast %cst_162 : f32 to vector<1x1xf32>
    %908 = arith.select %869, %906, %907 : vector<1x1xi1>, vector<1x1xf32>
    %909 = arith.maximumf %890, %896 : vector<1x1xf32>
    %910 = arith.maximumf %909, %902 : vector<1x1xf32>
    %911 = arith.maximumf %910, %908 : vector<1x1xf32>
    %cst_163 = arith.constant 9.99999997E-7 : f32
    %912 = vector.broadcast %cst_163 : f32 to vector<1x1xf32>
    %913 = arith.maximumf %911, %912 : vector<1x1xf32>
    %cst_164 = arith.constant 1.000000e+00 : f32
    %914 = vector.broadcast %cst_164 : f32 to vector<1x1xf32>
    %915 = arith.divf %914, %913 : vector<1x1xf32>
    %916 = arith.mulf %890, %915 : vector<1x1xf32>
    %917 = arith.mulf %896, %915 : vector<1x1xf32>
    %918 = arith.mulf %902, %915 : vector<1x1xf32>
    %919 = arith.mulf %908, %915 : vector<1x1xf32>
    %920 = vector.extract_strided_slice %829 {offsets = [0, 0], sizes = [8, 8], strides = [1, 1]} : vector<8x32xf32> to vector<8x8xf32>
    %921 = vector.broadcast %837 : vector<1x8xf32> to vector<8x8xf32>
    %922 = arith.mulf %920, %921 : vector<8x8xf32>
    %cst_165 = arith.constant dense<0.000000e+00> : vector<8xf32>
    %923 = vector.multi_reduction <add>, %922, %cst_165 [1] : vector<8x8xf32> to vector<8xf32>
    %924 = vector.shape_cast %923 : vector<8xf32> to vector<8x1xf32>
    %925 = vector.broadcast %916 : vector<1x1xf32> to vector<8x1xf32>
    %926 = arith.mulf %924, %925 : vector<8x1xf32>
    %927 = vector.extract_strided_slice %829 {offsets = [0, 8], sizes = [8, 8], strides = [1, 1]} : vector<8x32xf32> to vector<8x8xf32>
    %928 = vector.broadcast %850 : vector<1x8xf32> to vector<8x8xf32>
    %929 = arith.mulf %927, %928 : vector<8x8xf32>
    %cst_166 = arith.constant dense<0.000000e+00> : vector<8xf32>
    %930 = vector.multi_reduction <add>, %929, %cst_166 [1] : vector<8x8xf32> to vector<8xf32>
    %931 = vector.shape_cast %930 : vector<8xf32> to vector<8x1xf32>
    %932 = vector.broadcast %917 : vector<1x1xf32> to vector<8x1xf32>
    %933 = arith.mulf %931, %932 : vector<8x1xf32>
    %934 = vector.extract_strided_slice %829 {offsets = [0, 16], sizes = [8, 8], strides = [1, 1]} : vector<8x32xf32> to vector<8x8xf32>
    %935 = vector.broadcast %863 : vector<1x8xf32> to vector<8x8xf32>
    %936 = arith.mulf %934, %935 : vector<8x8xf32>
    %cst_167 = arith.constant dense<0.000000e+00> : vector<8xf32>
    %937 = vector.multi_reduction <add>, %936, %cst_167 [1] : vector<8x8xf32> to vector<8xf32>
    %938 = vector.shape_cast %937 : vector<8xf32> to vector<8x1xf32>
    %939 = vector.broadcast %918 : vector<1x1xf32> to vector<8x1xf32>
    %940 = arith.mulf %938, %939 : vector<8x1xf32>
    %941 = vector.extract_strided_slice %829 {offsets = [0, 24], sizes = [8, 8], strides = [1, 1]} : vector<8x32xf32> to vector<8x8xf32>
    %942 = vector.broadcast %876 : vector<1x8xf32> to vector<8x8xf32>
    %943 = arith.mulf %941, %942 : vector<8x8xf32>
    %cst_168 = arith.constant dense<0.000000e+00> : vector<8xf32>
    %944 = vector.multi_reduction <add>, %943, %cst_168 [1] : vector<8x8xf32> to vector<8xf32>
    %945 = vector.shape_cast %944 : vector<8xf32> to vector<8x1xf32>
    %946 = vector.broadcast %919 : vector<1x1xf32> to vector<8x1xf32>
    %947 = arith.mulf %945, %946 : vector<8x1xf32>
    %cst_169 = arith.constant 0.000000e+00 : f32
    %948 = vector.broadcast %cst_169 : f32 to vector<8x4xf32>
    %cst_170 = arith.constant 0.000000e+00 : f32
    %949 = vector.broadcast %cst_170 : f32 to vector<8x4xf32>
    %950 = vector.extract_strided_slice %796 {offsets = [0, 0], sizes = [8, 1], strides = [1, 1]} : vector<8x3xf32> to vector<8x1xf32>
    %cst_171 = arith.constant 0.000000e+00 : f32
    %951 = vector.broadcast %cst_171 : f32 to vector<1x4xf32>
    %952 = arith.cmpf oeq, %778, %951 : vector<1x4xf32>
    %953 = arith.extui %952 : vector<1x4xi1> to vector<1x4xi32>
    %954 = arith.sitofp %953 : vector<1x4xi32> to vector<1x4xf32>
    %955 = vector.broadcast %950 : vector<8x1xf32> to vector<8x4xf32>
    %956 = vector.broadcast %954 : vector<1x4xf32> to vector<8x4xf32>
    %957 = arith.mulf %955, %956 : vector<8x4xf32>
    %958 = arith.subf %948, %957 : vector<8x4xf32>
    %959 = vector.extract_strided_slice %806 {offsets = [0, 0], sizes = [8, 1], strides = [1, 1]} : vector<8x3xf32> to vector<8x1xf32>
    %cst_172 = arith.constant 0.000000e+00 : f32
    %960 = vector.broadcast %cst_172 : f32 to vector<1x4xf32>
    %961 = arith.cmpf oeq, %784, %960 : vector<1x4xf32>
    %962 = arith.extui %961 : vector<1x4xi1> to vector<1x4xi32>
    %963 = arith.sitofp %962 : vector<1x4xi32> to vector<1x4xf32>
    %964 = vector.broadcast %959 : vector<8x1xf32> to vector<8x4xf32>
    %965 = vector.broadcast %963 : vector<1x4xf32> to vector<8x4xf32>
    %966 = arith.mulf %964, %965 : vector<8x4xf32>
    %967 = arith.subf %949, %966 : vector<8x4xf32>
    %968 = vector.extract_strided_slice %796 {offsets = [0, 1], sizes = [8, 1], strides = [1, 1]} : vector<8x3xf32> to vector<8x1xf32>
    %cst_173 = arith.constant 1.000000e+00 : f32
    %969 = vector.broadcast %cst_173 : f32 to vector<1x4xf32>
    %970 = arith.cmpf oeq, %778, %969 : vector<1x4xf32>
    %971 = arith.extui %970 : vector<1x4xi1> to vector<1x4xi32>
    %972 = arith.sitofp %971 : vector<1x4xi32> to vector<1x4xf32>
    %973 = vector.broadcast %968 : vector<8x1xf32> to vector<8x4xf32>
    %974 = vector.broadcast %972 : vector<1x4xf32> to vector<8x4xf32>
    %975 = arith.mulf %973, %974 : vector<8x4xf32>
    %976 = arith.subf %958, %975 : vector<8x4xf32>
    %977 = vector.extract_strided_slice %806 {offsets = [0, 1], sizes = [8, 1], strides = [1, 1]} : vector<8x3xf32> to vector<8x1xf32>
    %cst_174 = arith.constant 1.000000e+00 : f32
    %978 = vector.broadcast %cst_174 : f32 to vector<1x4xf32>
    %979 = arith.cmpf oeq, %784, %978 : vector<1x4xf32>
    %980 = arith.extui %979 : vector<1x4xi1> to vector<1x4xi32>
    %981 = arith.sitofp %980 : vector<1x4xi32> to vector<1x4xf32>
    %982 = vector.broadcast %977 : vector<8x1xf32> to vector<8x4xf32>
    %983 = vector.broadcast %981 : vector<1x4xf32> to vector<8x4xf32>
    %984 = arith.mulf %982, %983 : vector<8x4xf32>
    %985 = arith.subf %967, %984 : vector<8x4xf32>
    %986 = vector.extract_strided_slice %796 {offsets = [0, 2], sizes = [8, 1], strides = [1, 1]} : vector<8x3xf32> to vector<8x1xf32>
    %cst_175 = arith.constant 2.000000e+00 : f32
    %987 = vector.broadcast %cst_175 : f32 to vector<1x4xf32>
    %988 = arith.cmpf oeq, %778, %987 : vector<1x4xf32>
    %989 = arith.extui %988 : vector<1x4xi1> to vector<1x4xi32>
    %990 = arith.sitofp %989 : vector<1x4xi32> to vector<1x4xf32>
    %991 = vector.broadcast %986 : vector<8x1xf32> to vector<8x4xf32>
    %992 = vector.broadcast %990 : vector<1x4xf32> to vector<8x4xf32>
    %993 = arith.mulf %991, %992 : vector<8x4xf32>
    %994 = arith.subf %976, %993 : vector<8x4xf32>
    %995 = vector.extract_strided_slice %806 {offsets = [0, 2], sizes = [8, 1], strides = [1, 1]} : vector<8x3xf32> to vector<8x1xf32>
    %cst_176 = arith.constant 2.000000e+00 : f32
    %996 = vector.broadcast %cst_176 : f32 to vector<1x4xf32>
    %997 = arith.cmpf oeq, %784, %996 : vector<1x4xf32>
    %998 = arith.extui %997 : vector<1x4xi1> to vector<1x4xi32>
    %999 = arith.sitofp %998 : vector<1x4xi32> to vector<1x4xf32>
    %1000 = vector.broadcast %995 : vector<8x1xf32> to vector<8x4xf32>
    %1001 = vector.broadcast %999 : vector<1x4xf32> to vector<8x4xf32>
    %1002 = arith.mulf %1000, %1001 : vector<8x4xf32>
    %1003 = arith.subf %985, %1002 : vector<8x4xf32>
    %1004 = vector.broadcast %807 : vector<8x1xf32> to vector<8x4xf32>
    %1005 = vector.broadcast %767 : vector<1x4xf32> to vector<8x4xf32>
    %1006 = arith.subf %1004, %1005 : vector<8x4xf32>
    %1007 = math.absf %1006 : vector<8x4xf32>
    %1008 = vector.broadcast %808 : vector<8x1xf32> to vector<8x4xf32>
    %1009 = vector.broadcast %768 : vector<1x4xf32> to vector<8x4xf32>
    %1010 = arith.subf %1008, %1009 : vector<8x4xf32>
    %1011 = math.absf %1010 : vector<8x4xf32>
    %1012 = vector.broadcast %809 : vector<8x1xf32> to vector<8x4xf32>
    %1013 = vector.broadcast %769 : vector<1x4xf32> to vector<8x4xf32>
    %1014 = arith.subf %1012, %1013 : vector<8x4xf32>
    %1015 = math.absf %1014 : vector<8x4xf32>
    %cst_177 = arith.constant 3.000000e+00 : f32
    %1016 = vector.broadcast %cst_177 : f32 to vector<8x4xf32>
    %1017 = arith.mulf %1016, %994 : vector<8x4xf32>
    %cst_178 = arith.constant 3.000000e+00 : f32
    %1018 = vector.broadcast %cst_178 : f32 to vector<8x4xf32>
    %1019 = arith.mulf %1018, %1003 : vector<8x4xf32>
    %1020 = arith.addf %1017, %1019 : vector<8x4xf32>
    %cst_179 = arith.constant 2.000000e+00 : f32
    %1021 = vector.broadcast %cst_179 : f32 to vector<8x4xf32>
    %1022 = arith.mulf %1021, %1007 : vector<8x4xf32>
    %1023 = arith.addf %1020, %1022 : vector<8x4xf32>
    %cst_180 = arith.constant 2.000000e+00 : f32
    %1024 = vector.broadcast %cst_180 : f32 to vector<8x4xf32>
    %1025 = arith.mulf %1024, %1011 : vector<8x4xf32>
    %1026 = arith.addf %1023, %1025 : vector<8x4xf32>
    %cst_181 = arith.constant 2.500000e+00 : f32
    %1027 = vector.broadcast %cst_181 : f32 to vector<8x4xf32>
    %1028 = arith.mulf %1027, %1015 : vector<8x4xf32>
    %1029 = arith.addf %1026, %1028 : vector<8x4xf32>
    %cst_182 = arith.constant 0.000000e+00 : f32
    %1030 = vector.broadcast %cst_182 : f32 to vector<8x1xf32>
    %cst_183 = arith.constant 0.000000e+00 : f32
    %1031 = vector.broadcast %cst_183 : f32 to vector<8x1xf32>
    %cst_184 = arith.constant 0.000000e+00 : f32
    %1032 = vector.broadcast %cst_184 : f32 to vector<8x1xf32>
    %cst_185 = arith.constant 0.000000e+00 : f32
    %1033 = vector.broadcast %cst_185 : f32 to vector<8x1xf32>
    %cst_186 = arith.constant 0.000000e+00 : f32
    %1034 = vector.broadcast %cst_186 : f32 to vector<1x1xf32>
    %cst_187 = arith.constant 0.000000e+00 : f32
    %1035 = vector.broadcast %cst_187 : f32 to vector<1x1xf32>
    %cst_188 = arith.constant 0.000000e+00 : f32
    %1036 = vector.broadcast %cst_188 : f32 to vector<1x1xf32>
    %cst_189 = arith.constant 0.000000e+00 : f32
    %1037 = vector.broadcast %cst_189 : f32 to vector<1x1xf32>
    %c-1_i32_190 = arith.constant -1 : i32
    %1038 = vector.broadcast %c-1_i32_190 : i32 to vector<1x128xi32>
    %1039 = vector.extract_strided_slice %1029 {offsets = [0, 0], sizes = [8, 1], strides = [1, 1]} : vector<8x4xf32> to vector<8x1xf32>
    %cst_191 = arith.constant 5.000000e+00 : f32
    %1040 = vector.broadcast %cst_191 : f32 to vector<8x1xf32>
    %1041 = arith.mulf %1040, %926 : vector<8x1xf32>
    %1042 = arith.addf %1039, %1041 : vector<8x1xf32>
    %cst_192 = arith.constant 1.000000e+09 : f32
    %1043 = vector.shape_cast %830 : vector<1x1xi1> to vector<1x1xi1>
    %1044 = vector.broadcast %1043 : vector<1x1xi1> to vector<8x1xi1>
    %1045 = vector.broadcast %cst_192 : f32 to vector<8x1xf32>
    %1046 = arith.select %1044, %1042, %1045 : vector<8x1xi1>, vector<8x1xf32>
    %1047 = arith.addf %1046, %1030 : vector<8x1xf32>
    %1048 = vector.shape_cast %1047 : vector<8x1xf32> to vector<1x8x1xf32>
    %cst_193 = arith.constant dense<0x7F800000> : vector<1xf32>
    %1049 = vector.multi_reduction <minimumf>, %1048, %cst_193 [1, 2] : vector<1x8x1xf32> to vector<1xf32>
    %1050 = vector.shape_cast %1049 : vector<1xf32> to vector<1x1x1xf32>
    %1051 = vector.extract %1050[0, 0, 0] : f32 from vector<1x1x1xf32>
    %1052 = vector.broadcast %1051 : f32 to vector<8x1xf32>
    %1053 = arith.cmpf ole, %1047, %1052 : vector<8x1xf32>
    %c8_i32_194 = arith.constant 8 : i32
    %1054 = vector.broadcast %c8_i32_194 : i32 to vector<8x1xi32>
    %1055 = arith.select %1053, %1, %1054 : vector<8x1xi1>, vector<8x1xi32>
    %1056 = vector.shape_cast %1055 : vector<8x1xi32> to vector<1x8x1xi32>
    %cst_195 = arith.constant dense<2147483647> : vector<1xi32>
    %1057 = vector.multi_reduction <minsi>, %1056, %cst_195 [1, 2] : vector<1x8x1xi32> to vector<1xi32>
    %1058 = vector.shape_cast %1057 : vector<1xi32> to vector<1x1x1xi32>
    %1059 = vector.extract %1058[0, 0, 0] : i32 from vector<1x1x1xi32>
    %1060 = vector.broadcast %1059 : i32 to vector<8x1xi32>
    %1061 = arith.cmpi eq, %1, %1060 : vector<8x1xi32>
    %1062 = vector.broadcast %830 : vector<1x1xi1> to vector<8x1xi1>
    %1063 = arith.andi %1061, %1062 : vector<8x1xi1>
    %1064 = arith.extui %1063 : vector<8x1xi1> to vector<8x1xi32>
    %1065 = arith.sitofp %1064 : vector<8x1xi32> to vector<8x1xf32>
    %cst_196 = arith.constant 1.000000e+09 : f32
    %1066 = vector.broadcast %cst_196 : f32 to vector<8x1xf32>
    %1067 = arith.mulf %1065, %1066 : vector<8x1xf32>
    %1068 = arith.addf %1030, %1067 : vector<8x1xf32>
    %1069 = arith.addf %1031, %1065 : vector<8x1xf32>
    %1070 = vector.extract_strided_slice %778 {offsets = [0, 0], sizes = [1, 1], strides = [1, 1]} : vector<1x4xf32> to vector<1x1xf32>
    %1071 = vector.broadcast %1070 : vector<1x1xf32> to vector<8x1xf32>
    %1072 = arith.mulf %1065, %1071 : vector<8x1xf32>
    %1073 = arith.addf %1032, %1072 : vector<8x1xf32>
    %1074 = vector.extract_strided_slice %784 {offsets = [0, 0], sizes = [1, 1], strides = [1, 1]} : vector<1x4xf32> to vector<1x1xf32>
    %1075 = vector.broadcast %1074 : vector<1x1xf32> to vector<8x1xf32>
    %1076 = arith.mulf %1065, %1075 : vector<8x1xf32>
    %1077 = arith.addf %1033, %1076 : vector<8x1xf32>
    %1078 = vector.extract_strided_slice %1007 {offsets = [0, 0], sizes = [8, 1], strides = [1, 1]} : vector<8x4xf32> to vector<8x1xf32>
    %1079 = arith.mulf %1065, %1078 : vector<8x1xf32>
    %1080 = vector.shape_cast %1079 : vector<8x1xf32> to vector<1x8x1xf32>
    %cst_197 = arith.constant dense<0.000000e+00> : vector<1xf32>
    %1081 = vector.multi_reduction <add>, %1080, %cst_197 [1, 2] : vector<1x8x1xf32> to vector<1xf32>
    %1082 = vector.shape_cast %1081 : vector<1xf32> to vector<1x1x1xf32>
    %1083 = vector.extract %1082[0, 0, 0] : f32 from vector<1x1x1xf32>
    %1084 = vector.broadcast %1083 : f32 to vector<1x1xf32>
    %1085 = arith.addf %1034, %1084 : vector<1x1xf32>
    %1086 = vector.extract_strided_slice %1011 {offsets = [0, 0], sizes = [8, 1], strides = [1, 1]} : vector<8x4xf32> to vector<8x1xf32>
    %1087 = arith.mulf %1065, %1086 : vector<8x1xf32>
    %1088 = vector.shape_cast %1087 : vector<8x1xf32> to vector<1x8x1xf32>
    %cst_198 = arith.constant dense<0.000000e+00> : vector<1xf32>
    %1089 = vector.multi_reduction <add>, %1088, %cst_198 [1, 2] : vector<1x8x1xf32> to vector<1xf32>
    %1090 = vector.shape_cast %1089 : vector<1xf32> to vector<1x1x1xf32>
    %1091 = vector.extract %1090[0, 0, 0] : f32 from vector<1x1x1xf32>
    %1092 = vector.broadcast %1091 : f32 to vector<1x1xf32>
    %1093 = arith.addf %1035, %1092 : vector<1x1xf32>
    %1094 = vector.extract_strided_slice %1015 {offsets = [0, 0], sizes = [8, 1], strides = [1, 1]} : vector<8x4xf32> to vector<8x1xf32>
    %1095 = arith.mulf %1065, %1094 : vector<8x1xf32>
    %1096 = vector.shape_cast %1095 : vector<8x1xf32> to vector<1x8x1xf32>
    %cst_199 = arith.constant dense<0.000000e+00> : vector<1xf32>
    %1097 = vector.multi_reduction <add>, %1096, %cst_199 [1, 2] : vector<1x8x1xf32> to vector<1xf32>
    %1098 = vector.shape_cast %1097 : vector<1xf32> to vector<1x1x1xf32>
    %1099 = vector.extract %1098[0, 0, 0] : f32 from vector<1x1x1xf32>
    %1100 = vector.broadcast %1099 : f32 to vector<1x1xf32>
    %1101 = arith.addf %1036, %1100 : vector<1x1xf32>
    %1102 = arith.mulf %1065, %926 : vector<8x1xf32>
    %1103 = vector.shape_cast %1102 : vector<8x1xf32> to vector<1x8x1xf32>
    %cst_200 = arith.constant dense<0.000000e+00> : vector<1xf32>
    %1104 = vector.multi_reduction <add>, %1103, %cst_200 [1, 2] : vector<1x8x1xf32> to vector<1xf32>
    %1105 = vector.shape_cast %1104 : vector<1xf32> to vector<1x1x1xf32>
    %1106 = vector.extract %1105[0, 0, 0] : f32 from vector<1x1x1xf32>
    %1107 = vector.broadcast %1106 : f32 to vector<1x1xf32>
    %1108 = arith.addf %1037, %1107 : vector<1x1xf32>
    %1109 = arith.extui %830 : vector<1x1xi1> to vector<1x1xi32>
    %1110 = vector.broadcast %1059 : i32 to vector<1x1xi32>
    %1111 = arith.muli %1110, %1109 : vector<1x1xi32>
    %c1_i32_201 = arith.constant 1 : i32
    %1112 = vector.broadcast %c1_i32_201 : i32 to vector<1x1xi32>
    %1113 = arith.subi %1112, %1109 : vector<1x1xi32>
    %1114 = arith.subi %1111, %1113 : vector<1x1xi32>
    %c1_i32_202 = arith.constant 1 : i32
    %1115 = vector.broadcast %c1_i32_202 : i32 to vector<1x1xi32>
    %1116 = arith.addi %1114, %1115 : vector<1x1xi32>
    %c0_i32_203 = arith.constant 0 : i32
    %1117 = vector.broadcast %c0_i32_203 : i32 to vector<1x128xi32>
    %1118 = arith.cmpi eq, %0, %1117 : vector<1x128xi32>
    %1119 = arith.extui %1118 : vector<1x128xi1> to vector<1x128xi32>
    %1120 = vector.broadcast %1116 : vector<1x1xi32> to vector<1x128xi32>
    %1121 = arith.muli %1120, %1119 : vector<1x128xi32>
    %1122 = arith.addi %1038, %1121 : vector<1x128xi32>
    %1123 = vector.extract_strided_slice %1029 {offsets = [0, 1], sizes = [8, 1], strides = [1, 1]} : vector<8x4xf32> to vector<8x1xf32>
    %cst_204 = arith.constant 5.000000e+00 : f32
    %1124 = vector.broadcast %cst_204 : f32 to vector<8x1xf32>
    %1125 = arith.mulf %1124, %933 : vector<8x1xf32>
    %1126 = arith.addf %1123, %1125 : vector<8x1xf32>
    %cst_205 = arith.constant 1.000000e+09 : f32
    %1127 = vector.shape_cast %843 : vector<1x1xi1> to vector<1x1xi1>
    %1128 = vector.broadcast %1127 : vector<1x1xi1> to vector<8x1xi1>
    %1129 = vector.broadcast %cst_205 : f32 to vector<8x1xf32>
    %1130 = arith.select %1128, %1126, %1129 : vector<8x1xi1>, vector<8x1xf32>
    %1131 = arith.addf %1130, %1068 : vector<8x1xf32>
    %1132 = vector.shape_cast %1131 : vector<8x1xf32> to vector<1x8x1xf32>
    %cst_206 = arith.constant dense<0x7F800000> : vector<1xf32>
    %1133 = vector.multi_reduction <minimumf>, %1132, %cst_206 [1, 2] : vector<1x8x1xf32> to vector<1xf32>
    %1134 = vector.shape_cast %1133 : vector<1xf32> to vector<1x1x1xf32>
    %1135 = vector.extract %1134[0, 0, 0] : f32 from vector<1x1x1xf32>
    %1136 = vector.broadcast %1135 : f32 to vector<8x1xf32>
    %1137 = arith.cmpf ole, %1131, %1136 : vector<8x1xf32>
    %c8_i32_207 = arith.constant 8 : i32
    %1138 = vector.broadcast %c8_i32_207 : i32 to vector<8x1xi32>
    %1139 = arith.select %1137, %1, %1138 : vector<8x1xi1>, vector<8x1xi32>
    %1140 = vector.shape_cast %1139 : vector<8x1xi32> to vector<1x8x1xi32>
    %cst_208 = arith.constant dense<2147483647> : vector<1xi32>
    %1141 = vector.multi_reduction <minsi>, %1140, %cst_208 [1, 2] : vector<1x8x1xi32> to vector<1xi32>
    %1142 = vector.shape_cast %1141 : vector<1xi32> to vector<1x1x1xi32>
    %1143 = vector.extract %1142[0, 0, 0] : i32 from vector<1x1x1xi32>
    %1144 = vector.broadcast %1143 : i32 to vector<8x1xi32>
    %1145 = arith.cmpi eq, %1, %1144 : vector<8x1xi32>
    %1146 = vector.broadcast %843 : vector<1x1xi1> to vector<8x1xi1>
    %1147 = arith.andi %1145, %1146 : vector<8x1xi1>
    %1148 = arith.extui %1147 : vector<8x1xi1> to vector<8x1xi32>
    %1149 = arith.sitofp %1148 : vector<8x1xi32> to vector<8x1xf32>
    %cst_209 = arith.constant 1.000000e+09 : f32
    %1150 = vector.broadcast %cst_209 : f32 to vector<8x1xf32>
    %1151 = arith.mulf %1149, %1150 : vector<8x1xf32>
    %1152 = arith.addf %1068, %1151 : vector<8x1xf32>
    %1153 = arith.addf %1069, %1149 : vector<8x1xf32>
    %1154 = vector.extract_strided_slice %778 {offsets = [0, 1], sizes = [1, 1], strides = [1, 1]} : vector<1x4xf32> to vector<1x1xf32>
    %1155 = vector.broadcast %1154 : vector<1x1xf32> to vector<8x1xf32>
    %1156 = arith.mulf %1149, %1155 : vector<8x1xf32>
    %1157 = arith.addf %1073, %1156 : vector<8x1xf32>
    %1158 = vector.extract_strided_slice %784 {offsets = [0, 1], sizes = [1, 1], strides = [1, 1]} : vector<1x4xf32> to vector<1x1xf32>
    %1159 = vector.broadcast %1158 : vector<1x1xf32> to vector<8x1xf32>
    %1160 = arith.mulf %1149, %1159 : vector<8x1xf32>
    %1161 = arith.addf %1077, %1160 : vector<8x1xf32>
    %1162 = vector.extract_strided_slice %1007 {offsets = [0, 1], sizes = [8, 1], strides = [1, 1]} : vector<8x4xf32> to vector<8x1xf32>
    %1163 = arith.mulf %1149, %1162 : vector<8x1xf32>
    %1164 = vector.shape_cast %1163 : vector<8x1xf32> to vector<1x8x1xf32>
    %cst_210 = arith.constant dense<0.000000e+00> : vector<1xf32>
    %1165 = vector.multi_reduction <add>, %1164, %cst_210 [1, 2] : vector<1x8x1xf32> to vector<1xf32>
    %1166 = vector.shape_cast %1165 : vector<1xf32> to vector<1x1x1xf32>
    %1167 = vector.extract %1166[0, 0, 0] : f32 from vector<1x1x1xf32>
    %1168 = vector.broadcast %1167 : f32 to vector<1x1xf32>
    %1169 = arith.addf %1085, %1168 : vector<1x1xf32>
    %1170 = vector.extract_strided_slice %1011 {offsets = [0, 1], sizes = [8, 1], strides = [1, 1]} : vector<8x4xf32> to vector<8x1xf32>
    %1171 = arith.mulf %1149, %1170 : vector<8x1xf32>
    %1172 = vector.shape_cast %1171 : vector<8x1xf32> to vector<1x8x1xf32>
    %cst_211 = arith.constant dense<0.000000e+00> : vector<1xf32>
    %1173 = vector.multi_reduction <add>, %1172, %cst_211 [1, 2] : vector<1x8x1xf32> to vector<1xf32>
    %1174 = vector.shape_cast %1173 : vector<1xf32> to vector<1x1x1xf32>
    %1175 = vector.extract %1174[0, 0, 0] : f32 from vector<1x1x1xf32>
    %1176 = vector.broadcast %1175 : f32 to vector<1x1xf32>
    %1177 = arith.addf %1093, %1176 : vector<1x1xf32>
    %1178 = vector.extract_strided_slice %1015 {offsets = [0, 1], sizes = [8, 1], strides = [1, 1]} : vector<8x4xf32> to vector<8x1xf32>
    %1179 = arith.mulf %1149, %1178 : vector<8x1xf32>
    %1180 = vector.shape_cast %1179 : vector<8x1xf32> to vector<1x8x1xf32>
    %cst_212 = arith.constant dense<0.000000e+00> : vector<1xf32>
    %1181 = vector.multi_reduction <add>, %1180, %cst_212 [1, 2] : vector<1x8x1xf32> to vector<1xf32>
    %1182 = vector.shape_cast %1181 : vector<1xf32> to vector<1x1x1xf32>
    %1183 = vector.extract %1182[0, 0, 0] : f32 from vector<1x1x1xf32>
    %1184 = vector.broadcast %1183 : f32 to vector<1x1xf32>
    %1185 = arith.addf %1101, %1184 : vector<1x1xf32>
    %1186 = arith.mulf %1149, %933 : vector<8x1xf32>
    %1187 = vector.shape_cast %1186 : vector<8x1xf32> to vector<1x8x1xf32>
    %cst_213 = arith.constant dense<0.000000e+00> : vector<1xf32>
    %1188 = vector.multi_reduction <add>, %1187, %cst_213 [1, 2] : vector<1x8x1xf32> to vector<1xf32>
    %1189 = vector.shape_cast %1188 : vector<1xf32> to vector<1x1x1xf32>
    %1190 = vector.extract %1189[0, 0, 0] : f32 from vector<1x1x1xf32>
    %1191 = vector.broadcast %1190 : f32 to vector<1x1xf32>
    %1192 = arith.addf %1108, %1191 : vector<1x1xf32>
    %1193 = arith.extui %843 : vector<1x1xi1> to vector<1x1xi32>
    %1194 = vector.broadcast %1143 : i32 to vector<1x1xi32>
    %1195 = arith.muli %1194, %1193 : vector<1x1xi32>
    %c1_i32_214 = arith.constant 1 : i32
    %1196 = vector.broadcast %c1_i32_214 : i32 to vector<1x1xi32>
    %1197 = arith.subi %1196, %1193 : vector<1x1xi32>
    %1198 = arith.subi %1195, %1197 : vector<1x1xi32>
    %c1_i32_215 = arith.constant 1 : i32
    %1199 = vector.broadcast %c1_i32_215 : i32 to vector<1x1xi32>
    %1200 = arith.addi %1198, %1199 : vector<1x1xi32>
    %c1_i32_216 = arith.constant 1 : i32
    %1201 = vector.broadcast %c1_i32_216 : i32 to vector<1x128xi32>
    %1202 = arith.cmpi eq, %0, %1201 : vector<1x128xi32>
    %1203 = arith.extui %1202 : vector<1x128xi1> to vector<1x128xi32>
    %1204 = vector.broadcast %1200 : vector<1x1xi32> to vector<1x128xi32>
    %1205 = arith.muli %1204, %1203 : vector<1x128xi32>
    %1206 = arith.addi %1122, %1205 : vector<1x128xi32>
    %1207 = vector.extract_strided_slice %1029 {offsets = [0, 2], sizes = [8, 1], strides = [1, 1]} : vector<8x4xf32> to vector<8x1xf32>
    %cst_217 = arith.constant 5.000000e+00 : f32
    %1208 = vector.broadcast %cst_217 : f32 to vector<8x1xf32>
    %1209 = arith.mulf %1208, %940 : vector<8x1xf32>
    %1210 = arith.addf %1207, %1209 : vector<8x1xf32>
    %cst_218 = arith.constant 1.000000e+09 : f32
    %1211 = vector.shape_cast %856 : vector<1x1xi1> to vector<1x1xi1>
    %1212 = vector.broadcast %1211 : vector<1x1xi1> to vector<8x1xi1>
    %1213 = vector.broadcast %cst_218 : f32 to vector<8x1xf32>
    %1214 = arith.select %1212, %1210, %1213 : vector<8x1xi1>, vector<8x1xf32>
    %1215 = arith.addf %1214, %1152 : vector<8x1xf32>
    %1216 = vector.shape_cast %1215 : vector<8x1xf32> to vector<1x8x1xf32>
    %cst_219 = arith.constant dense<0x7F800000> : vector<1xf32>
    %1217 = vector.multi_reduction <minimumf>, %1216, %cst_219 [1, 2] : vector<1x8x1xf32> to vector<1xf32>
    %1218 = vector.shape_cast %1217 : vector<1xf32> to vector<1x1x1xf32>
    %1219 = vector.extract %1218[0, 0, 0] : f32 from vector<1x1x1xf32>
    %1220 = vector.broadcast %1219 : f32 to vector<8x1xf32>
    %1221 = arith.cmpf ole, %1215, %1220 : vector<8x1xf32>
    %c8_i32_220 = arith.constant 8 : i32
    %1222 = vector.broadcast %c8_i32_220 : i32 to vector<8x1xi32>
    %1223 = arith.select %1221, %1, %1222 : vector<8x1xi1>, vector<8x1xi32>
    %1224 = vector.shape_cast %1223 : vector<8x1xi32> to vector<1x8x1xi32>
    %cst_221 = arith.constant dense<2147483647> : vector<1xi32>
    %1225 = vector.multi_reduction <minsi>, %1224, %cst_221 [1, 2] : vector<1x8x1xi32> to vector<1xi32>
    %1226 = vector.shape_cast %1225 : vector<1xi32> to vector<1x1x1xi32>
    %1227 = vector.extract %1226[0, 0, 0] : i32 from vector<1x1x1xi32>
    %1228 = vector.broadcast %1227 : i32 to vector<8x1xi32>
    %1229 = arith.cmpi eq, %1, %1228 : vector<8x1xi32>
    %1230 = vector.broadcast %856 : vector<1x1xi1> to vector<8x1xi1>
    %1231 = arith.andi %1229, %1230 : vector<8x1xi1>
    %1232 = arith.extui %1231 : vector<8x1xi1> to vector<8x1xi32>
    %1233 = arith.sitofp %1232 : vector<8x1xi32> to vector<8x1xf32>
    %cst_222 = arith.constant 1.000000e+09 : f32
    %1234 = vector.broadcast %cst_222 : f32 to vector<8x1xf32>
    %1235 = arith.mulf %1233, %1234 : vector<8x1xf32>
    %1236 = arith.addf %1152, %1235 : vector<8x1xf32>
    %1237 = arith.addf %1153, %1233 : vector<8x1xf32>
    %1238 = vector.extract_strided_slice %778 {offsets = [0, 2], sizes = [1, 1], strides = [1, 1]} : vector<1x4xf32> to vector<1x1xf32>
    %1239 = vector.broadcast %1238 : vector<1x1xf32> to vector<8x1xf32>
    %1240 = arith.mulf %1233, %1239 : vector<8x1xf32>
    %1241 = arith.addf %1157, %1240 : vector<8x1xf32>
    %1242 = vector.extract_strided_slice %784 {offsets = [0, 2], sizes = [1, 1], strides = [1, 1]} : vector<1x4xf32> to vector<1x1xf32>
    %1243 = vector.broadcast %1242 : vector<1x1xf32> to vector<8x1xf32>
    %1244 = arith.mulf %1233, %1243 : vector<8x1xf32>
    %1245 = arith.addf %1161, %1244 : vector<8x1xf32>
    %1246 = vector.extract_strided_slice %1007 {offsets = [0, 2], sizes = [8, 1], strides = [1, 1]} : vector<8x4xf32> to vector<8x1xf32>
    %1247 = arith.mulf %1233, %1246 : vector<8x1xf32>
    %1248 = vector.shape_cast %1247 : vector<8x1xf32> to vector<1x8x1xf32>
    %cst_223 = arith.constant dense<0.000000e+00> : vector<1xf32>
    %1249 = vector.multi_reduction <add>, %1248, %cst_223 [1, 2] : vector<1x8x1xf32> to vector<1xf32>
    %1250 = vector.shape_cast %1249 : vector<1xf32> to vector<1x1x1xf32>
    %1251 = vector.extract %1250[0, 0, 0] : f32 from vector<1x1x1xf32>
    %1252 = vector.broadcast %1251 : f32 to vector<1x1xf32>
    %1253 = arith.addf %1169, %1252 : vector<1x1xf32>
    %1254 = vector.extract_strided_slice %1011 {offsets = [0, 2], sizes = [8, 1], strides = [1, 1]} : vector<8x4xf32> to vector<8x1xf32>
    %1255 = arith.mulf %1233, %1254 : vector<8x1xf32>
    %1256 = vector.shape_cast %1255 : vector<8x1xf32> to vector<1x8x1xf32>
    %cst_224 = arith.constant dense<0.000000e+00> : vector<1xf32>
    %1257 = vector.multi_reduction <add>, %1256, %cst_224 [1, 2] : vector<1x8x1xf32> to vector<1xf32>
    %1258 = vector.shape_cast %1257 : vector<1xf32> to vector<1x1x1xf32>
    %1259 = vector.extract %1258[0, 0, 0] : f32 from vector<1x1x1xf32>
    %1260 = vector.broadcast %1259 : f32 to vector<1x1xf32>
    %1261 = arith.addf %1177, %1260 : vector<1x1xf32>
    %1262 = vector.extract_strided_slice %1015 {offsets = [0, 2], sizes = [8, 1], strides = [1, 1]} : vector<8x4xf32> to vector<8x1xf32>
    %1263 = arith.mulf %1233, %1262 : vector<8x1xf32>
    %1264 = vector.shape_cast %1263 : vector<8x1xf32> to vector<1x8x1xf32>
    %cst_225 = arith.constant dense<0.000000e+00> : vector<1xf32>
    %1265 = vector.multi_reduction <add>, %1264, %cst_225 [1, 2] : vector<1x8x1xf32> to vector<1xf32>
    %1266 = vector.shape_cast %1265 : vector<1xf32> to vector<1x1x1xf32>
    %1267 = vector.extract %1266[0, 0, 0] : f32 from vector<1x1x1xf32>
    %1268 = vector.broadcast %1267 : f32 to vector<1x1xf32>
    %1269 = arith.addf %1185, %1268 : vector<1x1xf32>
    %1270 = arith.mulf %1233, %940 : vector<8x1xf32>
    %1271 = vector.shape_cast %1270 : vector<8x1xf32> to vector<1x8x1xf32>
    %cst_226 = arith.constant dense<0.000000e+00> : vector<1xf32>
    %1272 = vector.multi_reduction <add>, %1271, %cst_226 [1, 2] : vector<1x8x1xf32> to vector<1xf32>
    %1273 = vector.shape_cast %1272 : vector<1xf32> to vector<1x1x1xf32>
    %1274 = vector.extract %1273[0, 0, 0] : f32 from vector<1x1x1xf32>
    %1275 = vector.broadcast %1274 : f32 to vector<1x1xf32>
    %1276 = arith.addf %1192, %1275 : vector<1x1xf32>
    %1277 = arith.extui %856 : vector<1x1xi1> to vector<1x1xi32>
    %1278 = vector.broadcast %1227 : i32 to vector<1x1xi32>
    %1279 = arith.muli %1278, %1277 : vector<1x1xi32>
    %c1_i32_227 = arith.constant 1 : i32
    %1280 = vector.broadcast %c1_i32_227 : i32 to vector<1x1xi32>
    %1281 = arith.subi %1280, %1277 : vector<1x1xi32>
    %1282 = arith.subi %1279, %1281 : vector<1x1xi32>
    %c1_i32_228 = arith.constant 1 : i32
    %1283 = vector.broadcast %c1_i32_228 : i32 to vector<1x1xi32>
    %1284 = arith.addi %1282, %1283 : vector<1x1xi32>
    %c2_i32_229 = arith.constant 2 : i32
    %1285 = vector.broadcast %c2_i32_229 : i32 to vector<1x128xi32>
    %1286 = arith.cmpi eq, %0, %1285 : vector<1x128xi32>
    %1287 = arith.extui %1286 : vector<1x128xi1> to vector<1x128xi32>
    %1288 = vector.broadcast %1284 : vector<1x1xi32> to vector<1x128xi32>
    %1289 = arith.muli %1288, %1287 : vector<1x128xi32>
    %1290 = arith.addi %1206, %1289 : vector<1x128xi32>
    %1291 = vector.extract_strided_slice %1029 {offsets = [0, 3], sizes = [8, 1], strides = [1, 1]} : vector<8x4xf32> to vector<8x1xf32>
    %cst_230 = arith.constant 5.000000e+00 : f32
    %1292 = vector.broadcast %cst_230 : f32 to vector<8x1xf32>
    %1293 = arith.mulf %1292, %947 : vector<8x1xf32>
    %1294 = arith.addf %1291, %1293 : vector<8x1xf32>
    %cst_231 = arith.constant 1.000000e+09 : f32
    %1295 = vector.shape_cast %869 : vector<1x1xi1> to vector<1x1xi1>
    %1296 = vector.broadcast %1295 : vector<1x1xi1> to vector<8x1xi1>
    %1297 = vector.broadcast %cst_231 : f32 to vector<8x1xf32>
    %1298 = arith.select %1296, %1294, %1297 : vector<8x1xi1>, vector<8x1xf32>
    %1299 = arith.addf %1298, %1236 : vector<8x1xf32>
    %1300 = vector.shape_cast %1299 : vector<8x1xf32> to vector<1x8x1xf32>
    %cst_232 = arith.constant dense<0x7F800000> : vector<1xf32>
    %1301 = vector.multi_reduction <minimumf>, %1300, %cst_232 [1, 2] : vector<1x8x1xf32> to vector<1xf32>
    %1302 = vector.shape_cast %1301 : vector<1xf32> to vector<1x1x1xf32>
    %1303 = vector.extract %1302[0, 0, 0] : f32 from vector<1x1x1xf32>
    %1304 = vector.broadcast %1303 : f32 to vector<8x1xf32>
    %1305 = arith.cmpf ole, %1299, %1304 : vector<8x1xf32>
    %c8_i32_233 = arith.constant 8 : i32
    %1306 = vector.broadcast %c8_i32_233 : i32 to vector<8x1xi32>
    %1307 = arith.select %1305, %1, %1306 : vector<8x1xi1>, vector<8x1xi32>
    %1308 = vector.shape_cast %1307 : vector<8x1xi32> to vector<1x8x1xi32>
    %cst_234 = arith.constant dense<2147483647> : vector<1xi32>
    %1309 = vector.multi_reduction <minsi>, %1308, %cst_234 [1, 2] : vector<1x8x1xi32> to vector<1xi32>
    %1310 = vector.shape_cast %1309 : vector<1xi32> to vector<1x1x1xi32>
    %1311 = vector.extract %1310[0, 0, 0] : i32 from vector<1x1x1xi32>
    %1312 = vector.broadcast %1311 : i32 to vector<8x1xi32>
    %1313 = arith.cmpi eq, %1, %1312 : vector<8x1xi32>
    %1314 = vector.broadcast %869 : vector<1x1xi1> to vector<8x1xi1>
    %1315 = arith.andi %1313, %1314 : vector<8x1xi1>
    %1316 = arith.extui %1315 : vector<8x1xi1> to vector<8x1xi32>
    %1317 = arith.sitofp %1316 : vector<8x1xi32> to vector<8x1xf32>
    %1318 = arith.addf %1237, %1317 : vector<8x1xf32>
    %1319 = vector.extract_strided_slice %778 {offsets = [0, 3], sizes = [1, 1], strides = [1, 1]} : vector<1x4xf32> to vector<1x1xf32>
    %1320 = vector.broadcast %1319 : vector<1x1xf32> to vector<8x1xf32>
    %1321 = arith.mulf %1317, %1320 : vector<8x1xf32>
    %1322 = arith.addf %1241, %1321 : vector<8x1xf32>
    %1323 = vector.extract_strided_slice %784 {offsets = [0, 3], sizes = [1, 1], strides = [1, 1]} : vector<1x4xf32> to vector<1x1xf32>
    %1324 = vector.broadcast %1323 : vector<1x1xf32> to vector<8x1xf32>
    %1325 = arith.mulf %1317, %1324 : vector<8x1xf32>
    %1326 = arith.addf %1245, %1325 : vector<8x1xf32>
    %1327 = vector.extract_strided_slice %1007 {offsets = [0, 3], sizes = [8, 1], strides = [1, 1]} : vector<8x4xf32> to vector<8x1xf32>
    %1328 = arith.mulf %1317, %1327 : vector<8x1xf32>
    %1329 = vector.shape_cast %1328 : vector<8x1xf32> to vector<1x8x1xf32>
    %cst_235 = arith.constant dense<0.000000e+00> : vector<1xf32>
    %1330 = vector.multi_reduction <add>, %1329, %cst_235 [1, 2] : vector<1x8x1xf32> to vector<1xf32>
    %1331 = vector.shape_cast %1330 : vector<1xf32> to vector<1x1x1xf32>
    %1332 = vector.extract %1331[0, 0, 0] : f32 from vector<1x1x1xf32>
    %1333 = vector.broadcast %1332 : f32 to vector<1x1xf32>
    %1334 = arith.addf %1253, %1333 : vector<1x1xf32>
    %1335 = vector.extract_strided_slice %1011 {offsets = [0, 3], sizes = [8, 1], strides = [1, 1]} : vector<8x4xf32> to vector<8x1xf32>
    %1336 = arith.mulf %1317, %1335 : vector<8x1xf32>
    %1337 = vector.shape_cast %1336 : vector<8x1xf32> to vector<1x8x1xf32>
    %cst_236 = arith.constant dense<0.000000e+00> : vector<1xf32>
    %1338 = vector.multi_reduction <add>, %1337, %cst_236 [1, 2] : vector<1x8x1xf32> to vector<1xf32>
    %1339 = vector.shape_cast %1338 : vector<1xf32> to vector<1x1x1xf32>
    %1340 = vector.extract %1339[0, 0, 0] : f32 from vector<1x1x1xf32>
    %1341 = vector.broadcast %1340 : f32 to vector<1x1xf32>
    %1342 = arith.addf %1261, %1341 : vector<1x1xf32>
    %1343 = vector.extract_strided_slice %1015 {offsets = [0, 3], sizes = [8, 1], strides = [1, 1]} : vector<8x4xf32> to vector<8x1xf32>
    %1344 = arith.mulf %1317, %1343 : vector<8x1xf32>
    %1345 = vector.shape_cast %1344 : vector<8x1xf32> to vector<1x8x1xf32>
    %cst_237 = arith.constant dense<0.000000e+00> : vector<1xf32>
    %1346 = vector.multi_reduction <add>, %1345, %cst_237 [1, 2] : vector<1x8x1xf32> to vector<1xf32>
    %1347 = vector.shape_cast %1346 : vector<1xf32> to vector<1x1x1xf32>
    %1348 = vector.extract %1347[0, 0, 0] : f32 from vector<1x1x1xf32>
    %1349 = vector.broadcast %1348 : f32 to vector<1x1xf32>
    %1350 = arith.addf %1269, %1349 : vector<1x1xf32>
    %1351 = arith.mulf %1317, %947 : vector<8x1xf32>
    %1352 = vector.shape_cast %1351 : vector<8x1xf32> to vector<1x8x1xf32>
    %cst_238 = arith.constant dense<0.000000e+00> : vector<1xf32>
    %1353 = vector.multi_reduction <add>, %1352, %cst_238 [1, 2] : vector<1x8x1xf32> to vector<1xf32>
    %1354 = vector.shape_cast %1353 : vector<1xf32> to vector<1x1x1xf32>
    %1355 = vector.extract %1354[0, 0, 0] : f32 from vector<1x1x1xf32>
    %1356 = vector.broadcast %1355 : f32 to vector<1x1xf32>
    %1357 = arith.addf %1276, %1356 : vector<1x1xf32>
    %1358 = arith.extui %869 : vector<1x1xi1> to vector<1x1xi32>
    %1359 = vector.broadcast %1311 : i32 to vector<1x1xi32>
    %1360 = arith.muli %1359, %1358 : vector<1x1xi32>
    %c1_i32_239 = arith.constant 1 : i32
    %1361 = vector.broadcast %c1_i32_239 : i32 to vector<1x1xi32>
    %1362 = arith.subi %1361, %1358 : vector<1x1xi32>
    %1363 = arith.subi %1360, %1362 : vector<1x1xi32>
    %c1_i32_240 = arith.constant 1 : i32
    %1364 = vector.broadcast %c1_i32_240 : i32 to vector<1x1xi32>
    %1365 = arith.addi %1363, %1364 : vector<1x1xi32>
    %c3_i32_241 = arith.constant 3 : i32
    %1366 = vector.broadcast %c3_i32_241 : i32 to vector<1x128xi32>
    %1367 = arith.cmpi eq, %0, %1366 : vector<1x128xi32>
    %1368 = arith.extui %1367 : vector<1x128xi1> to vector<1x128xi32>
    %1369 = vector.broadcast %1365 : vector<1x1xi32> to vector<1x128xi32>
    %1370 = arith.muli %1369, %1368 : vector<1x128xi32>
    %1371 = arith.addi %1290, %1370 : vector<1x128xi32>
    %cst_242 = arith.constant dense<0xFF800000> : vector<8xf32>
    %1372 = vector.multi_reduction <maximumf>, %785, %cst_242 [1] : vector<8x3xf32> to vector<8xf32>
    %1373 = vector.shape_cast %1372 : vector<8xf32> to vector<8x1xf32>
    %1374 = vector.broadcast %1373 : vector<8x1xf32> to vector<8x3xf32>
    %1375 = arith.subf %785, %1374 : vector<8x3xf32>
    %1376 = math.exp %1375 : vector<8x3xf32>
    %cst_243 = arith.constant dense<0.000000e+00> : vector<8xf32>
    %1377 = vector.multi_reduction <add>, %1376, %cst_243 [1] : vector<8x3xf32> to vector<8xf32>
    %1378 = vector.shape_cast %1377 : vector<8xf32> to vector<8x1xf32>
    %1379 = math.log %1378 : vector<8x1xf32>
    %1380 = vector.broadcast %1379 : vector<8x1xf32> to vector<8x3xf32>
    %1381 = arith.subf %1375, %1380 : vector<8x3xf32>
    %cst_244 = arith.constant dense<0xFF800000> : vector<8xf32>
    %1382 = vector.multi_reduction <maximumf>, %786, %cst_244 [1] : vector<8x3xf32> to vector<8xf32>
    %1383 = vector.shape_cast %1382 : vector<8xf32> to vector<8x1xf32>
    %1384 = vector.broadcast %1383 : vector<8x1xf32> to vector<8x3xf32>
    %1385 = arith.subf %786, %1384 : vector<8x3xf32>
    %1386 = math.exp %1385 : vector<8x3xf32>
    %cst_245 = arith.constant dense<0.000000e+00> : vector<8xf32>
    %1387 = vector.multi_reduction <add>, %1386, %cst_245 [1] : vector<8x3xf32> to vector<8xf32>
    %1388 = vector.shape_cast %1387 : vector<8xf32> to vector<8x1xf32>
    %1389 = math.log %1388 : vector<8x1xf32>
    %1390 = vector.broadcast %1389 : vector<8x1xf32> to vector<8x3xf32>
    %1391 = arith.subf %1385, %1390 : vector<8x3xf32>
    %1392 = arith.fptosi %1322 : vector<8x1xf32> to vector<8x1xi32>
    %1393 = vector.broadcast %1392 : vector<8x1xi32> to vector<8x3xi32>
    %1394 = arith.cmpi eq, %2, %1393 : vector<8x3xi32>
    %1395 = arith.extui %1394 : vector<8x3xi1> to vector<8x3xi32>
    %1396 = arith.sitofp %1395 : vector<8x3xi32> to vector<8x3xf32>
    %1397 = arith.fptosi %1326 : vector<8x1xf32> to vector<8x1xi32>
    %1398 = vector.broadcast %1397 : vector<8x1xi32> to vector<8x3xi32>
    %1399 = arith.cmpi eq, %2, %1398 : vector<8x3xi32>
    %1400 = arith.extui %1399 : vector<8x3xi1> to vector<8x3xi32>
    %1401 = arith.sitofp %1400 : vector<8x3xi32> to vector<8x3xf32>
    %1402 = arith.mulf %1381, %1396 : vector<8x3xf32>
    %1403 = vector.shape_cast %1402 : vector<8x3xf32> to vector<1x8x3xf32>
    %cst_246 = arith.constant dense<0.000000e+00> : vector<1xf32>
    %1404 = vector.multi_reduction <add>, %1403, %cst_246 [1, 2] : vector<1x8x3xf32> to vector<1xf32>
    %1405 = vector.shape_cast %1404 : vector<1xf32> to vector<1x1x1xf32>
    %1406 = vector.extract %1405[0, 0, 0] : f32 from vector<1x1x1xf32>
    %1407 = vector.broadcast %1406 : f32 to vector<1x1xf32>
    %cst_247 = arith.constant 0.000000e+00 : f32
    %1408 = vector.broadcast %cst_247 : f32 to vector<1x1xf32>
    %1409 = arith.subf %1408, %1407 : vector<1x1xf32>
    %1410 = arith.mulf %1391, %1401 : vector<8x3xf32>
    %1411 = vector.shape_cast %1410 : vector<8x3xf32> to vector<1x8x3xf32>
    %cst_248 = arith.constant dense<0.000000e+00> : vector<1xf32>
    %1412 = vector.multi_reduction <add>, %1411, %cst_248 [1, 2] : vector<1x8x3xf32> to vector<1xf32>
    %1413 = vector.shape_cast %1412 : vector<1xf32> to vector<1x1x1xf32>
    %1414 = vector.extract %1413[0, 0, 0] : f32 from vector<1x1x1xf32>
    %1415 = vector.broadcast %1414 : f32 to vector<1x1xf32>
    %cst_249 = arith.constant 0.000000e+00 : f32
    %1416 = vector.broadcast %cst_249 : f32 to vector<1x1xf32>
    %1417 = arith.subf %1416, %1415 : vector<1x1xf32>
    %1418 = vector.extract_strided_slice %761 {offsets = [0, 6], sizes = [8, 1], strides = [1, 1]} : vector<8x7xf32> to vector<8x1xf32>
    %cst_250 = arith.constant 0.000000e+00 : f32
    %1419 = vector.broadcast %cst_250 : f32 to vector<8x1xf32>
    %1420 = arith.maximumf %1418, %1419 : vector<8x1xf32>
    %1421 = arith.mulf %1418, %1318 : vector<8x1xf32>
    %1422 = arith.subf %1420, %1421 : vector<8x1xf32>
    %1423 = math.absf %1418 : vector<8x1xf32>
    %cst_251 = arith.constant 0.000000e+00 : f32
    %1424 = vector.broadcast %cst_251 : f32 to vector<8x1xf32>
    %1425 = arith.subf %1424, %1423 : vector<8x1xf32>
    %1426 = math.exp %1425 : vector<8x1xf32>
    %1427 = math.log1p %1426 : vector<8x1xf32>
    %1428 = arith.addf %1422, %1427 : vector<8x1xf32>
    %1429 = vector.shape_cast %1428 : vector<8x1xf32> to vector<1x8x1xf32>
    %cst_252 = arith.constant dense<0.000000e+00> : vector<1xf32>
    %1430 = vector.multi_reduction <add>, %1429, %cst_252 [1, 2] : vector<1x8x1xf32> to vector<1xf32>
    %1431 = vector.shape_cast %1430 : vector<1xf32> to vector<1x1x1xf32>
    %1432 = vector.extract %1431[0, 0, 0] : f32 from vector<1x1x1xf32>
    %1433 = vector.broadcast %1432 : f32 to vector<1x1xf32>
    %cst_253 = arith.constant dense<0xFF800000> : vector<8xf32>
    %1434 = vector.multi_reduction <maximumf>, %785, %cst_253 [1] : vector<8x3xf32> to vector<8xf32>
    %1435 = vector.shape_cast %1434 : vector<8xf32> to vector<8x1xf32>
    %1436 = vector.extract_strided_slice %785 {offsets = [0, 0], sizes = [8, 1], strides = [1, 1]} : vector<8x3xf32> to vector<8x1xf32>
    %1437 = arith.cmpf olt, %1436, %1435 : vector<8x1xf32>
    %1438 = arith.extui %1437 : vector<8x1xi1> to vector<8x1xi32>
    %1439 = arith.sitofp %1438 : vector<8x1xi32> to vector<8x1xf32>
    %1440 = vector.shape_cast %1439 : vector<8x1xf32> to vector<1x8x1xf32>
    %cst_254 = arith.constant dense<0.000000e+00> : vector<1xf32>
    %1441 = vector.multi_reduction <add>, %1440, %cst_254 [1, 2] : vector<1x8x1xf32> to vector<1xf32>
    %1442 = vector.shape_cast %1441 : vector<1xf32> to vector<1x1x1xf32>
    %1443 = vector.extract %1442[0, 0, 0] : f32 from vector<1x1x1xf32>
    %1444 = vector.broadcast %1443 : f32 to vector<1x1xf32>
    %1445 = arith.extui %773 : vector<1x4xi1> to vector<1x4xi32>
    %1446 = arith.sitofp %1445 : vector<1x4xi32> to vector<1x4xf32>
    %1447 = vector.shape_cast %1446 : vector<1x4xf32> to vector<1x1x4xf32>
    %cst_255 = arith.constant dense<0.000000e+00> : vector<1xf32>
    %1448 = vector.multi_reduction <add>, %1447, %cst_255 [1, 2] : vector<1x1x4xf32> to vector<1xf32>
    %1449 = vector.shape_cast %1448 : vector<1xf32> to vector<1x1x1xf32>
    %1450 = vector.extract %1449[0, 0, 0] : f32 from vector<1x1x1xf32>
    %1451 = vector.broadcast %1450 : f32 to vector<1x1xf32>
    %1452 = arith.subf %1444, %1451 : vector<1x1xf32>
    %1453 = math.absf %1452 : vector<1x1xf32>
    %cst_256 = arith.constant 0.000000e+00 : f32
    %1454 = vector.broadcast %cst_256 : f32 to vector<1x128xf32>
    %c0_i32_257 = arith.constant 0 : i32
    %1455 = vector.broadcast %c0_i32_257 : i32 to vector<1x128xi32>
    %1456 = arith.cmpi eq, %0, %1455 : vector<1x128xi32>
    %1457 = arith.extui %1456 : vector<1x128xi1> to vector<1x128xi32>
    %1458 = arith.sitofp %1457 : vector<1x128xi32> to vector<1x128xf32>
    %1459 = vector.broadcast %1409 : vector<1x1xf32> to vector<1x128xf32>
    %1460 = arith.mulf %1459, %1458 : vector<1x128xf32>
    %1461 = arith.addf %1454, %1460 : vector<1x128xf32>
    %c1_i32_258 = arith.constant 1 : i32
    %1462 = vector.broadcast %c1_i32_258 : i32 to vector<1x128xi32>
    %1463 = arith.cmpi eq, %0, %1462 : vector<1x128xi32>
    %1464 = arith.extui %1463 : vector<1x128xi1> to vector<1x128xi32>
    %1465 = arith.sitofp %1464 : vector<1x128xi32> to vector<1x128xf32>
    %1466 = vector.broadcast %1417 : vector<1x1xf32> to vector<1x128xf32>
    %1467 = arith.mulf %1466, %1465 : vector<1x128xf32>
    %1468 = arith.addf %1461, %1467 : vector<1x128xf32>
    %c2_i32_259 = arith.constant 2 : i32
    %1469 = vector.broadcast %c2_i32_259 : i32 to vector<1x128xi32>
    %1470 = arith.cmpi eq, %0, %1469 : vector<1x128xi32>
    %1471 = arith.extui %1470 : vector<1x128xi1> to vector<1x128xi32>
    %1472 = arith.sitofp %1471 : vector<1x128xi32> to vector<1x128xf32>
    %1473 = vector.broadcast %1357 : vector<1x1xf32> to vector<1x128xf32>
    %1474 = arith.mulf %1473, %1472 : vector<1x128xf32>
    %1475 = arith.addf %1468, %1474 : vector<1x128xf32>
    %c3_i32_260 = arith.constant 3 : i32
    %1476 = vector.broadcast %c3_i32_260 : i32 to vector<1x128xi32>
    %1477 = arith.cmpi eq, %0, %1476 : vector<1x128xi32>
    %1478 = arith.extui %1477 : vector<1x128xi1> to vector<1x128xi32>
    %1479 = arith.sitofp %1478 : vector<1x128xi32> to vector<1x128xf32>
    %1480 = vector.broadcast %1334 : vector<1x1xf32> to vector<1x128xf32>
    %1481 = arith.mulf %1480, %1479 : vector<1x128xf32>
    %1482 = arith.addf %1475, %1481 : vector<1x128xf32>
    %c4_i32_261 = arith.constant 4 : i32
    %1483 = vector.broadcast %c4_i32_261 : i32 to vector<1x128xi32>
    %1484 = arith.cmpi eq, %0, %1483 : vector<1x128xi32>
    %1485 = arith.extui %1484 : vector<1x128xi1> to vector<1x128xi32>
    %1486 = arith.sitofp %1485 : vector<1x128xi32> to vector<1x128xf32>
    %1487 = vector.broadcast %1342 : vector<1x1xf32> to vector<1x128xf32>
    %1488 = arith.mulf %1487, %1486 : vector<1x128xf32>
    %1489 = arith.addf %1482, %1488 : vector<1x128xf32>
    %c5_i32_262 = arith.constant 5 : i32
    %1490 = vector.broadcast %c5_i32_262 : i32 to vector<1x128xi32>
    %1491 = arith.cmpi eq, %0, %1490 : vector<1x128xi32>
    %1492 = arith.extui %1491 : vector<1x128xi1> to vector<1x128xi32>
    %1493 = arith.sitofp %1492 : vector<1x128xi32> to vector<1x128xf32>
    %1494 = vector.broadcast %1350 : vector<1x1xf32> to vector<1x128xf32>
    %1495 = arith.mulf %1494, %1493 : vector<1x128xf32>
    %1496 = arith.addf %1489, %1495 : vector<1x128xf32>
    %c6_i32_263 = arith.constant 6 : i32
    %1497 = vector.broadcast %c6_i32_263 : i32 to vector<1x128xi32>
    %1498 = arith.cmpi eq, %0, %1497 : vector<1x128xi32>
    %1499 = arith.extui %1498 : vector<1x128xi1> to vector<1x128xi32>
    %1500 = arith.sitofp %1499 : vector<1x128xi32> to vector<1x128xf32>
    %1501 = vector.broadcast %1433 : vector<1x1xf32> to vector<1x128xf32>
    %1502 = arith.mulf %1501, %1500 : vector<1x128xf32>
    %1503 = arith.addf %1496, %1502 : vector<1x128xf32>
    %c7_i32_264 = arith.constant 7 : i32
    %1504 = vector.broadcast %c7_i32_264 : i32 to vector<1x128xi32>
    %1505 = arith.cmpi eq, %0, %1504 : vector<1x128xi32>
    %1506 = arith.extui %1505 : vector<1x128xi1> to vector<1x128xi32>
    %1507 = arith.sitofp %1506 : vector<1x128xi32> to vector<1x128xf32>
    %1508 = vector.broadcast %1453 : vector<1x1xf32> to vector<1x128xf32>
    %1509 = arith.mulf %1508, %1507 : vector<1x128xf32>
    %1510 = arith.addf %1503, %1509 : vector<1x128xf32>
    %c1_265 = arith.constant 1 : index
    %c0_266 = arith.constant 0 : index
    %c0_267 = arith.constant 0 : index
    %1511 = vector.load %arg3[%c1_265, %c0_266, %c0_267] : memref<2x1x128xf32, #tpu.memory_space<vmem>>, vector<1x1x128xf32>
    %1512 = vector.shape_cast %1511 : vector<1x1x128xf32> to vector<1x128xf32>
    %1513 = vector.shape_cast %1510 : vector<1x128xf32> to vector<1x1x128xf32>
    tpu.vector_store %arg3[%c1_265, %c0_266, %c0_267], %1513 {strides = array<i32>} : memref<2x1x128xf32, #tpu.memory_space<vmem>>, vector<1x1x128xf32>,
    %c1_268 = arith.constant 1 : index
    %c0_269 = arith.constant 0 : index
    %c0_270 = arith.constant 0 : index
    %1514 = vector.load %arg4[%c1_268, %c0_269, %c0_270] : memref<2x1x128xi32, #tpu.memory_space<vmem>>, vector<1x1x128xi32>
    %1515 = vector.shape_cast %1514 : vector<1x1x128xi32> to vector<1x128xi32>
    %1516 = vector.shape_cast %1371 : vector<1x128xi32> to vector<1x1x128xi32>
    tpu.vector_store %arg4[%c1_268, %c0_269, %c0_270], %1516 {strides = array<i32>} : memref<2x1x128xi32, #tpu.memory_space<vmem>>, vector<1x1x128xi32>,
    return
  }
}

</mosaic_0001>

<llo_original>
// kernel: _criterion.1
$region0: #{_criterion.1}
  #allocation0 [shape = 'u32[]', space=smem, size = 0x4, offset = 0x4, fixed_abs, tag = 'smem constant byte address 0x4 - core index']
  #allocation1 [shape = 'u32[72,128]{1,0:T(1,128)}', space=vmem, size = 0x9000, scoped, tag = 'internal scratch']
  %s0 = inlined_call_operand.vmem [shape: f32[2,8,7], index: 0, kind: input, shape index: {}]
  %s1 = inlined_call_operand.vmem [shape: f32[2,8,7], index: 1, kind: input, shape index: {}]
  %s2 = inlined_call_operand.vmem [shape: f32[2,6,32], index: 2, kind: input, shape index: {}]
  %s3 = inlined_call_operand.vmem [shape: f32[2,1,128], index: 3, kind: output, shape index: {0}]
  %s4 = inlined_call_operand.hbm [shape: s32[2,1,128], index: 4, kind: output, shape index: {1}]
  %5 = xla_tuple %s3, %s4
  %s6 = sld [smem:[#allocation0]]
  $region30: #{_criterion.1} parent=0
    _
  %s8 = ssub.s32 1, %s6
  %s9 = scalar_select 0, %s8, %s6
  $region1: #{_criterion.1} parent=0
    #allocation2 [shape = 'u8[1024]{0}', space=vmem, size = 0x400, scoped, tag = 'output window, operand 1, single buffered']
    #allocation3 [shape = 's32[1]{0}', space=sflag, size = 0x4, scoped, tag = 'scoped memory for _criterion.1']
    %10 = vsyncpa [#allocation3], 0
    // Predicated region
    $region2: #{_criterion.1} parent=1 // pred_check
      _
    $region3: #{_criterion.1} parent=1 // pred_check_branch
      %12 = sbr.rel (0) target = $region5
    $region4: #{_criterion.1} parent=1 // pred_region
      _
    $region5: #{_criterion.1} parent=1 // pred_fallthru
      _
    // Predicated region
    $region6: #{_criterion.1} parent=1 // pred_check
      _
    $region7: #{_criterion.1} parent=1 // pred_check_branch
      %14 = sbr.rel (0) target = $region9
    $region8: #{_criterion.1} parent=1 // pred_region
      _
    $region9: #{_criterion.1} parent=1 // pred_fallthru
      _
    // Predicated region
    $region10: #{_criterion.1} parent=1 // pred_check
      _
    $region11: #{_criterion.1} parent=1 // pred_check_branch
      %16 = sbr.rel (0) target = $region13
    $region12: #{_criterion.1} parent=1 // pred_region
      _
    $region13: #{_criterion.1} parent=1 // pred_fallthru
      _
    %v17 = vlaneseq
    %v18 = vand.u32 %v17, 127
    %v19 = vlaneseq
    %v20 = vshrl.u32 %v19, 7
    %v21 = vld [vmem:[%s0] sm:$0xff]
    %v22 = vld [vmem:[%s1] sm:$0xff]
    %v23 = vld [vmem:[%s2] sm:$0x3f]
    %vm24 = vcmp.gt.f32.partialorder %v23, 0.0
    %v25 = vadd.f32 %v23, 0.5
    %v26 = vmul.f32 %v25, 0.1
    %v27 = vfloor.f32 %v26
    %v28 = vmul.f32 %v27, 10.0
    %v29 = vsub.f32 %v23, %v28
    %v30 = vadd.f32 %v29, 0.5
    %v31 = vfloor.f32 %v30
    %vm32 = vcmask 23552
    %v33 = vsel %vm32, %v21, -inf
    %34 = vmax.xlane.f32.xlu0 %v33
    %v35 = vpop.xlane.xlu0 %34
    %v36 = vsub.f32 %v21, %v35
    %v37 = vmul.f32 %v36, 1.442695
    %v38 = vpow.pop %v37
    %v39 = vsel %vm32, %v38, 0.0
    %40 = vadd.xlane.f32.xlu0 %v39
    %v41 = vpop.xlane.xlu0 %40
    %v42 = vrcp.pop %v41
    %v43 = vmul.f32 %v38, %v42
    %vm44 = vcmask 48152
    %v45 = vsel %vm44, %v21, -inf
    %46 = vmax.xlane.f32.xlu0 %v45
    %v47 = vpop.xlane.xlu0 %46
    %v48 = vsub.f32 %v21, %v47
    %v49 = vmul.f32 %v48, 1.442695
    %v50 = vpow.pop %v49
    %52 = vrot.lane.b32.xlu0 %v50, 125
    %v53 = vpop.permute.xlu0 %52
    %v55 = vsel %vm32, %v53, 0.0
    %56 = vadd.xlane.f32.xlu0 %v55
    %v57 = vpop.xlane.xlu0 %56
    %v58 = vrcp.pop %v57
    %v59 = vmul.f32 %v50, %v58
    %61 = vset.pattern.permute.xlu0 3
    %62 = vperm.xlu0 %61, %v22
    %v63 = vpop.permute.xlu0 %62
    %v65 = vperm.slane %v23, 5
    %v66 = vmul.f32 %v63, %v65
    %67 = vset.pattern.permute.xlu0 4
    %68 = vperm.xlu0 %67, %v22
    %v69 = vpop.permute.xlu0 %68
    %v71 = vadd.f32 %v66, %v69
    %v72 = vmul.f32 %v71, %v65
    %73 = vset.pattern.permute.xlu0 5
    %74 = vperm.xlu0 %73, %v22
    %v75 = vpop.permute.xlu0 %74
    %v77 = vadd.f32 %v72, %v75
    %v78 = vmul.f32 %v77, %v65
    %79 = vset.pattern.permute.xlu0 6
    %80 = vperm.xlu0 %79, %v22
    %v81 = vpop.permute.xlu0 %80
    %v83 = vadd.f32 %v78, %v81
    %v84 = vperm.slane %v23, 4
    %v85 = vsub.f32 %v83, %v84
    %v86 = vand.u32 2147483647, %v85
    %vm87 = vcmp.ge.f32.partialorder %v23, 0.0
    %v88 = vsel %vm24, 1, 0
    %89 = vset.pattern.permute.xlu0 0
    %90 = vperm.xlu0 %89, %v88
    %v91 = vpop.permute.xlu0 %90
    %vm92 = vcmp.eq.s32.totalorder %v91, 1
    %v93 = vsel %vm92, 1, 0
    %v94 = vrot.slane %v93, 4
    %vm95 = vcmp.ne.s32.totalorder %v94, 0
    %vm96 = vmand %vm87, %vm95
    %v97 = vsel %vm96, 1, 0
    %v98 = vcvt.s32.f32 %v97
    %v100 = vrot.slane %v98, 4
    %vm102 = vcmask 57344
    %v103 = vsel %vm102, %v100, 0.0
    %104 = vadd.xlane.f32.xlu0 %v103
    %v105 = vpop.xlane.xlu0 %104
    %v106 = vrot.slane %v105, 4
    %v107 = vadd.f32 %v105, %v106
    %v108 = vrot.slane %v107, 2
    %v109 = vadd.f32 %v107, %v108
    %v110 = vrot.slane %v109, 1
    %v111 = vadd.f32 %v109, %v110
    %s112 = vtos %v111
    %v113 = vstv %s112
    %114 = vset.pattern.permute.xlu0 1
    %115 = vperm.xlu0 %114, %v88
    %v116 = vpop.permute.xlu0 %115
    %vm117 = vcmp.eq.s32.totalorder %v116, 1
    %v118 = vsel %vm117, 1, 0
    %v119 = vrot.slane %v118, 4
    %vm120 = vcmp.ne.s32.totalorder %v119, 0
    %vm121 = vmand %vm87, %vm120
    %v122 = vsel %vm121, 1, 0
    %v123 = vcvt.s32.f32 %v122
    %v125 = vrot.slane %v123, 4
    %126 = vrot.lane.b32.xlu0 %v125, 120
    %v127 = vpop.permute.xlu0 %126
    %v129 = vsel %vm102, %v127, 0.0
    %130 = vadd.xlane.f32.xlu0 %v129
    %v131 = vpop.xlane.xlu0 %130
    %v132 = vrot.slane %v131, 4
    %v133 = vadd.f32 %v131, %v132
    %v134 = vrot.slane %v133, 2
    %v135 = vadd.f32 %v133, %v134
    %v136 = vrot.slane %v135, 1
    %v137 = vadd.f32 %v135, %v136
    %s138 = vtos %v137
    %v139 = vstv %s138
    %140 = vset.pattern.permute.xlu0 2
    %141 = vperm.xlu0 %140, %v88
    %v142 = vpop.permute.xlu0 %141
    %vm143 = vcmp.eq.s32.totalorder %v142, 1
    %v144 = vsel %vm143, 1, 0
    %v145 = vrot.slane %v144, 4
    %vm146 = vcmp.ne.s32.totalorder %v145, 0
    %vm147 = vmand %vm87, %vm146
    %v148 = vsel %vm147, 1, 0
    %v149 = vcvt.s32.f32 %v148
    %v151 = vrot.slane %v149, 4
    %152 = vrot.lane.b32.xlu0 %v151, 112
    %v153 = vpop.permute.xlu0 %152
    %v155 = vsel %vm102, %v153, 0.0
    %156 = vadd.xlane.f32.xlu0 %v155
    %v157 = vpop.xlane.xlu0 %156
    %v158 = vrot.slane %v157, 4
    %v159 = vadd.f32 %v157, %v158
    %v160 = vrot.slane %v159, 2
    %v161 = vadd.f32 %v159, %v160
    %v162 = vrot.slane %v161, 1
    %v163 = vadd.f32 %v161, %v162
    %s164 = vtos %v163
    %v165 = vstv %s164
    %166 = vset.pattern.permute.xlu0 3
    %167 = vperm.xlu0 %166, %v88
    %v168 = vpop.permute.xlu0 %167
    %vm169 = vcmp.eq.s32.totalorder %v168, 1
    %v170 = vsel %vm169, 1, 0
    %v171 = vrot.slane %v170, 4
    %vm172 = vcmp.ne.s32.totalorder %v171, 0
    %vm173 = vmand %vm87, %vm172
    %v174 = vsel %vm173, 1, 0
    %v175 = vcvt.s32.f32 %v174
    %v177 = vrot.slane %v175, 4
    %178 = vrot.lane.b32.xlu0 %v177, 104
    %v179 = vpop.permute.xlu0 %178
    %v181 = vsel %vm102, %v179, 0.0
    %182 = vadd.xlane.f32.xlu0 %v181
    %v183 = vpop.xlane.xlu0 %182
    %v184 = vrot.slane %v183, 4
    %v185 = vadd.f32 %v183, %v184
    %v186 = vrot.slane %v185, 2
    %v187 = vadd.f32 %v185, %v186
    %v188 = vrot.slane %v187, 1
    %v189 = vadd.f32 %v187, %v188
    %s190 = vtos %v189
    %v191 = vstv %s190
    %v192 = vadd.f32 %v113, %v139
    %v193 = vadd.f32 %v192, %v165
    %v194 = vadd.f32 %v193, %v191
    %v195 = vmax.f32 %v113, 1.0
    %v196 = vrcp.pop %v195
    %v197 = vmul.f32 %v195, %v196
    %v198 = vsub.f32 1.0, %v197
    %v199 = vmul.f32 %v196, %v198
    %v200 = vadd.f32 %v196, %v199
    %vm201 = vweird.f32 %v195
    %vm202 = vweird.f32 %v196
    %vm203 = vmor %vm201, %vm202
    %v204 = vsel %vm203, %v196, %v200
    %v205 = vand.u32 2147483647, %v195
    %vm206 = vcmp.eq.f32.partialorder %v205, 8.507059e+37
    %v207 = vand.u32 %v195, 2147483648
    %v208 = vor.u32 1.1754944e-38, %v207
    %v209 = vsel %vm206, %v208, %v204
    %v210 = vmul.f32 %v194, %v209
    %v211 = vrsqrt.pop %v210
    %v212 = vmul.f32 %v211, %v210
    %v213 = vmul.f32 %v212, %v211
    %v214 = vmul.f32 0.5, %v213
    %v215 = vsub.f32 1.5, %v214
    %v216 = vmul.f32 %v211, %v215
    %v217 = vmul.f32 %v210, %v216
    %vm218 = vcmp.eq.f32.partialorder %v210, inf
    %v219 = vsel %vm218, %v210, %v217
    %vm220 = vcmp.eq.f32.partialorder %v210, 0.0
    %v221 = vand.u32 %v210, 2147483648
    %v222 = vsel %vm220, %v221, %v219
    %v223 = vsel %vm24, %v222, 0.0
    %v224 = vmax.f32 %v139, 1.0
    %v225 = vrcp.pop %v224
    %v226 = vmul.f32 %v224, %v225
    %v227 = vsub.f32 1.0, %v226
    %v228 = vmul.f32 %v225, %v227
    %v229 = vadd.f32 %v225, %v228
    %vm230 = vweird.f32 %v224
    %vm231 = vweird.f32 %v225
    %vm232 = vmor %vm230, %vm231
    %v233 = vsel %vm232, %v225, %v229
    %v234 = vand.u32 2147483647, %v224
    %vm235 = vcmp.eq.f32.partialorder %v234, 8.507059e+37
    %v236 = vand.u32 %v224, 2147483648
    %v237 = vor.u32 1.1754944e-38, %v236
    %v238 = vsel %vm235, %v237, %v233
    %v239 = vmul.f32 %v194, %v238
    %v240 = vrsqrt.pop %v239
    %v241 = vmul.f32 %v240, %v239
    %v242 = vmul.f32 %v241, %v240
    %v243 = vmul.f32 0.5, %v242
    %v244 = vsub.f32 1.5, %v243
    %v245 = vmul.f32 %v240, %v244
    %v246 = vmul.f32 %v239, %v245
    %vm247 = vcmp.eq.f32.partialorder %v239, inf
    %v248 = vsel %vm247, %v239, %v246
    %vm249 = vcmp.eq.f32.partialorder %v239, 0.0
    %v250 = vand.u32 %v239, 2147483648
    %v251 = vsel %vm249, %v250, %v248
    %v252 = vsel %vm24, %v251, 0.0
    %v253 = vmax.f32 %v165, 1.0
    %v254 = vrcp.pop %v253
    %v255 = vmul.f32 %v253, %v254
    %v256 = vsub.f32 1.0, %v255
    %v257 = vmul.f32 %v254, %v256
    %v258 = vadd.f32 %v254, %v257
    %vm259 = vweird.f32 %v253
    %vm260 = vweird.f32 %v254
    %vm261 = vmor %vm259, %vm260
    %v262 = vsel %vm261, %v254, %v258
    %v263 = vand.u32 2147483647, %v253
    %vm264 = vcmp.eq.f32.partialorder %v263, 8.507059e+37
    %v265 = vand.u32 %v253, 2147483648
    %v266 = vor.u32 1.1754944e-38, %v265
    %v267 = vsel %vm264, %v266, %v262
    %v268 = vmul.f32 %v194, %v267
    %v269 = vrsqrt.pop %v268
    %v270 = vmul.f32 %v269, %v268
    %v271 = vmul.f32 %v270, %v269
    %v272 = vmul.f32 0.5, %v271
    %v273 = vsub.f32 1.5, %v272
    %v274 = vmul.f32 %v269, %v273
    %v275 = vmul.f32 %v268, %v274
    %vm276 = vcmp.eq.f32.partialorder %v268, inf
    %v277 = vsel %vm276, %v268, %v275
    %vm278 = vcmp.eq.f32.partialorder %v268, 0.0
    %v279 = vand.u32 %v268, 2147483648
    %v280 = vsel %vm278, %v279, %v277
    %v281 = vsel %vm24, %v280, 0.0
    %v282 = vmax.f32 %v191, 1.0
    %v283 = vrcp.pop %v282
    %v284 = vmul.f32 %v282, %v283
    %v285 = vsub.f32 1.0, %v284
    %v286 = vmul.f32 %v283, %v285
    %v287 = vadd.f32 %v283, %v286
    %vm288 = vweird.f32 %v282
    %vm289 = vweird.f32 %v283
    %vm290 = vmor %vm288, %vm289
    %v291 = vsel %vm290, %v283, %v287
    %v292 = vand.u32 2147483647, %v282
    %vm293 = vcmp.eq.f32.partialorder %v292, 8.507059e+37
    %v294 = vand.u32 %v282, 2147483648
    %v295 = vor.u32 1.1754944e-38, %v294
    %v296 = vsel %vm293, %v295, %v291
    %v297 = vmul.f32 %v194, %v296
    %v298 = vrsqrt.pop %v297
    %v299 = vmul.f32 %v298, %v297
    %v300 = vmul.f32 %v299, %v298
    %v301 = vmul.f32 0.5, %v300
    %v302 = vsub.f32 1.5, %v301
    %v303 = vmul.f32 %v298, %v302
    %v304 = vmul.f32 %v297, %v303
    %vm305 = vcmp.eq.f32.partialorder %v297, inf
    %v306 = vsel %vm305, %v297, %v304
    %vm307 = vcmp.eq.f32.partialorder %v297, 0.0
    %v308 = vand.u32 %v297, 2147483648
    %v309 = vsel %vm307, %v308, %v306
    %v310 = vsel %vm24, %v309, 0.0
    %312 = vrot.lane.b32.xlu0 %v252, 127
    %v313 = vpop.permute.xlu0 %312
    %v315 = vmax.f32 %v223, %v313
    %317 = vrot.lane.b32.xlu0 %v281, 126
    %v318 = vpop.permute.xlu0 %317
    %v320 = vmax.f32 %v315, %v318
    %322 = vrot.lane.b32.xlu0 %v310, 125
    %v323 = vpop.permute.xlu0 %322
    %v325 = vmax.f32 %v320, %v323
    %v326 = vmax.f32 %v325, 1e-06
    %v327 = vrcp.pop %v326
    %v328 = vmul.f32 %v326, %v327
    %v329 = vsub.f32 1.0, %v328
    %v330 = vmul.f32 %v327, %v329
    %v331 = vadd.f32 %v327, %v330
    %vm332 = vweird.f32 %v326
    %vm333 = vweird.f32 %v327
    %vm334 = vmor %vm332, %vm333
    %v335 = vsel %vm334, %v327, %v331
    %v336 = vand.u32 2147483647, %v326
    %vm337 = vcmp.eq.f32.partialorder %v336, 8.507059e+37
    %v338 = vand.u32 %v326, 2147483648
    %v339 = vor.u32 1.1754944e-38, %v338
    %v340 = vsel %vm337, %v339, %v335
    %v341 = vmul.f32 1.0, %v340
    %v342 = vmul.f32 %v223, %v341
    %344 = vrot.lane.b32.xlu0 %v341, 1
    %v345 = vpop.permute.xlu0 %344
    %v347 = vmul.f32 %v252, %v345
    %348 = vrot.lane.b32.xlu0 %v341, 2
    %v349 = vpop.permute.xlu0 %348
    %v351 = vmul.f32 %v281, %v349
    %352 = vrot.lane.b32.xlu0 %v341, 3
    %v353 = vpop.permute.xlu0 %352
    %v355 = vmul.f32 %v310, %v353
    %v356 = vperm.slane %v98, 4
    %v357 = vmul.f32 %v86, %v356
    %vm358 = vcmask 64512
    %v359 = vsel %vm358, %v357, 0.0
    %360 = vadd.xlane.f32.xlu0 %v359
    %v361 = vpop.xlane.xlu0 %360
    %v362 = vperm.slane %v342, 0
    %v363 = vmul.f32 %v361, %v362
    %v364 = vperm.slane %v123, 4
    %v365 = vmul.f32 %v86, %v364
    %367 = vrot.lane.b32.xlu0 %v365, 120
    %v368 = vpop.permute.xlu0 %367
    %v370 = vsel %vm358, %v368, 0.0
    %371 = vadd.xlane.f32.xlu0 %v370
    %v372 = vpop.xlane.xlu0 %371
    %v373 = vperm.slane %v347, 0
    %v374 = vmul.f32 %v372, %v373
    %v375 = vperm.slane %v149, 4
    %v376 = vmul.f32 %v86, %v375
    %378 = vrot.lane.b32.xlu0 %v376, 112
    %v379 = vpop.permute.xlu0 %378
    %v381 = vsel %vm358, %v379, 0.0
    %382 = vadd.xlane.f32.xlu0 %v381
    %v383 = vpop.xlane.xlu0 %382
    %v384 = vperm.slane %v351, 0
    %v385 = vmul.f32 %v383, %v384
    %v386 = vperm.slane %v175, 4
    %v387 = vmul.f32 %v86, %v386
    %389 = vrot.lane.b32.xlu0 %v387, 104
    %v390 = vpop.permute.xlu0 %389
    %v392 = vsel %vm358, %v390, 0.0
    %393 = vadd.xlane.f32.xlu0 %v392
    %v394 = vpop.xlane.xlu0 %393
    %v395 = vperm.slane %v355, 0
    %v396 = vmul.f32 %v394, %v395
    %vm397 = vcmp.eq.f32.partialorder %v27, 0.0
    %v398 = vsel %vm397, 1, 0
    %v399 = vcvt.s32.f32 %v398
    %401 = vset.pattern.permute.xlu0 0
    %402 = vperm.xlu0 %401, %v43
    %v403 = vpop.permute.xlu0 %402
    %v405 = vperm.slane %v399, 0
    %v406 = vmul.f32 %v403, %v405
    %v407 = vsub.f32 0.0, %v406
    %vm408 = vcmp.eq.f32.partialorder %v31, 0.0
    %v409 = vsel %vm408, 1, 0
    %v410 = vcvt.s32.f32 %v409
    %412 = vset.pattern.permute.xlu0 3
    %413 = vperm.xlu0 %412, %v59
    %v414 = vpop.permute.xlu0 %413
    %v416 = vperm.slane %v410, 0
    %v417 = vmul.f32 %v414, %v416
    %v418 = vsub.f32 0.0, %v417
    %vm419 = vcmp.eq.f32.partialorder %v27, 1.0
    %v420 = vsel %vm419, 1, 0
    %v421 = vcvt.s32.f32 %v420
    %422 = vset.pattern.permute.xlu0 1
    %423 = vperm.xlu0 %422, %v43
    %v424 = vpop.permute.xlu0 %423
    %v426 = vperm.slane %v421, 0
    %v427 = vmul.f32 %v424, %v426
    %v428 = vsub.f32 %v407, %v427
    %vm429 = vcmp.eq.f32.partialorder %v31, 1.0
    %v430 = vsel %vm429, 1, 0
    %v431 = vcvt.s32.f32 %v430
    %432 = vset.pattern.permute.xlu0 4
    %433 = vperm.xlu0 %432, %v59
    %v434 = vpop.permute.xlu0 %433
    %v436 = vperm.slane %v431, 0
    %v437 = vmul.f32 %v434, %v436
    %v438 = vsub.f32 %v418, %v437
    %vm439 = vcmp.eq.f32.partialorder %v27, 2.0
    %v440 = vsel %vm439, 1, 0
    %v441 = vcvt.s32.f32 %v440
    %442 = vset.pattern.permute.xlu0 2
    %443 = vperm.xlu0 %442, %v43
    %v444 = vpop.permute.xlu0 %443
    %v446 = vperm.slane %v441, 0
    %v447 = vmul.f32 %v444, %v446
    %v448 = vsub.f32 %v428, %v447
    %vm449 = vcmp.eq.f32.partialorder %v31, 2.0
    %v450 = vsel %vm449, 1, 0
    %v451 = vcvt.s32.f32 %v450
    %452 = vset.pattern.permute.xlu0 5
    %453 = vperm.xlu0 %452, %v59
    %v454 = vpop.permute.xlu0 %453
    %v456 = vperm.slane %v451, 0
    %v457 = vmul.f32 %v454, %v456
    %v458 = vsub.f32 %v438, %v457
    %459 = vset.pattern.permute.xlu0 0
    %460 = vperm.xlu0 %459, %v22
    %v461 = vpop.permute.xlu0 %460
    %v463 = vperm.slane %v23, 1
    %v464 = vsub.f32 %v461, %v463
    %v465 = vand.u32 2147483647, %v464
    %466 = vset.pattern.permute.xlu0 1
    %467 = vperm.xlu0 %466, %v22
    %v468 = vpop.permute.xlu0 %467
    %v470 = vperm.slane %v23, 2
    %v471 = vsub.f32 %v468, %v470
    %v472 = vand.u32 2147483647, %v471
    %473 = vset.pattern.permute.xlu0 2
    %474 = vperm.xlu0 %473, %v22
    %v475 = vpop.permute.xlu0 %474
    %v477 = vperm.slane %v23, 3
    %v478 = vsub.f32 %v475, %v477
    %v479 = vand.u32 2147483647, %v478
    %v480 = vmul.f32 %v448, 3.0
    %v481 = vmul.f32 %v458, 3.0
    %v482 = vadd.f32 %v480, %v481
    %v483 = vmul.f32 %v465, 2.0
    %v484 = vadd.f32 %v482, %v483
    %v485 = vmul.f32 %v472, 2.0
    %v486 = vadd.f32 %v484, %v485
    %v487 = vmul.f32 %v479, 2.5
    %v488 = vadd.f32 %v486, %v487
    %v489 = vmul.f32 %v363, 5.0
    %v490 = vadd.f32 %v488, %v489
    %v491 = vperm.slane %v88, 0
    %vm492 = vcmp.eq.s32.totalorder %v491, 1
    %v493 = vsel %vm492, %v490, 1e+09
    %v494 = vadd.f32 %v493, 0.0
    %vm495 = vcmask 7168
    %v496 = vsel %vm495, %v494, inf
    %497 = vmin.xlane.f32.xlu0 %v496
    %v498 = vpop.xlane.xlu0 %497
    %v499 = vrot.slane %v498, 4
    %v500 = vmin.f32 %v498, %v499
    %v501 = vrot.slane %v500, 2
    %v502 = vmin.f32 %v500, %v501
    %v503 = vrot.slane %v502, 1
    %v504 = vmin.f32 %v502, %v503
    %s505 = vtos %v504
    %v506 = vstv %s505
    %vm507 = vcmp.le.f32.partialorder %v494, %v506
    %v508 = vsel %vm507, %v20, 8
    %v509 = vsel %vm495, %v508, 2147483647
    %v510 = vand.u32 %v509, 65535
    %v511 = vshra.s32 %v509, 16
    %v512 = vcvt.s32.f32 %v510
    %v513 = vcvt.s32.f32 %v511
    %514 = vmin.xlane.f32.xlu0 %v513
    %v515 = vpop.xlane.xlu0 %514
    %vm516 = vcmp.eq.f32.partialorder %v513, %v515
    %v517 = vsel %vm516, %v512, inf
    %518 = vmin.xlane.f32.xlu0 %v517
    %v519 = vpop.xlane.xlu0 %518
    %v520 = vcvt.f32.s32 %v519
    %v521 = vcvt.f32.s32 %v515
    %v522 = vshll.u32 %v521, 16
    %v523 = vadd.s32 %v522, %v520
    %v524 = vrot.slane %v523, 4
    %vm525 = vcmp.lt.s32.totalorder %v523, %v524
    %v526 = vsel %vm525, %v523, %v524
    %v527 = vrot.slane %v526, 2
    %vm528 = vcmp.lt.s32.totalorder %v526, %v527
    %v529 = vsel %vm528, %v526, %v527
    %v530 = vrot.slane %v529, 1
    %vm531 = vcmp.lt.s32.totalorder %v529, %v530
    %v532 = vsel %vm531, %v529, %v530
    %s533 = vtos %v532
    %v534 = vstv %s533
    %vm535 = vcmp.eq.s32.totalorder %v20, %v534
    %vm536 = vmand %vm535, %vm492
    %v537 = vsel %vm536, 1, 0
    %v538 = vcvt.s32.f32 %v537
    %v539 = vmul.f32 %v538, 1e+09
    %v540 = vadd.f32 %v539, 0.0
    %v541 = vadd.f32 %v538, 0.0
    %v542 = vperm.slane %v27, 0
    %v543 = vmul.f32 %v538, %v542
    %v544 = vadd.f32 %v543, 0.0
    %v545 = vperm.slane %v31, 0
    %v546 = vmul.f32 %v538, %v545
    %v547 = vadd.f32 %v546, 0.0
    %v548 = vmul.f32 %v538, %v465
    %v549 = vsel %vm495, %v548, 0.0
    %550 = vadd.xlane.f32.xlu0 %v549
    %v551 = vpop.xlane.xlu0 %550
    %v552 = vrot.slane %v551, 4
    %v553 = vadd.f32 %v551, %v552
    %v554 = vrot.slane %v553, 2
    %v555 = vadd.f32 %v553, %v554
    %v556 = vrot.slane %v555, 1
    %v557 = vadd.f32 %v555, %v556
    %s558 = vtos %v557
    %v559 = vstv %s558
    %v560 = vadd.f32 %v559, 0.0
    %v561 = vmul.f32 %v538, %v472
    %v562 = vsel %vm495, %v561, 0.0
    %563 = vadd.xlane.f32.xlu0 %v562
    %v564 = vpop.xlane.xlu0 %563
    %v565 = vrot.slane %v564, 4
    %v566 = vadd.f32 %v564, %v565
    %v567 = vrot.slane %v566, 2
    %v568 = vadd.f32 %v566, %v567
    %v569 = vrot.slane %v568, 1
    %v570 = vadd.f32 %v568, %v569
    %s571 = vtos %v570
    %v572 = vstv %s571
    %v573 = vadd.f32 %v572, 0.0
    %v574 = vmul.f32 %v538, %v479
    %v575 = vsel %vm495, %v574, 0.0
    %576 = vadd.xlane.f32.xlu0 %v575
    %v577 = vpop.xlane.xlu0 %576
    %v578 = vrot.slane %v577, 4
    %v579 = vadd.f32 %v577, %v578
    %v580 = vrot.slane %v579, 2
    %v581 = vadd.f32 %v579, %v580
    %v582 = vrot.slane %v581, 1
    %v583 = vadd.f32 %v581, %v582
    %s584 = vtos %v583
    %v585 = vstv %s584
    %v586 = vadd.f32 %v585, 0.0
    %v587 = vmul.f32 %v538, %v363
    %v588 = vsel %vm495, %v587, 0.0
    %589 = vadd.xlane.f32.xlu0 %v588
    %v590 = vpop.xlane.xlu0 %589
    %v591 = vrot.slane %v590, 4
    %v592 = vadd.f32 %v590, %v591
    %v593 = vrot.slane %v592, 2
    %v594 = vadd.f32 %v592, %v593
    %v595 = vrot.slane %v594, 1
    %v596 = vadd.f32 %v594, %v595
    %s597 = vtos %v596
    %v598 = vstv %s597
    %v599 = vadd.f32 %v598, 0.0
    %v600 = vmul.u32 %v534, %v88
    %v601 = vsub.s32 1, %v88
    %v602 = vsub.s32 %v600, %v601
    %v603 = vadd.s32 %v602, 1
    %vm604 = vcmp.eq.s32.totalorder %v18, 0
    %v605 = vsel %vm604, 1, 0
    %606 = vset.pattern.permute.xlu0 0
    %607 = vperm.xlu0 %606, %v603
    %v608 = vpop.permute.xlu0 %607
    %v609 = vmul.u32 %v608, %v605
    %v610 = vadd.s32 %v609, 4294967295
    %v611 = vmul.f32 %v374, 5.0
    %v612 = vadd.f32 %v488, %v611
    %v613 = vsel %vm492, %v612, 1e+09
    %615 = vrot.lane.b32.xlu0 %v540, 1
    %v616 = vpop.permute.xlu0 %615
    %v618 = vadd.f32 %v613, %v616
    %vm619 = vcmask 15368
    %v620 = vsel %vm619, %v618, inf
    %621 = vmin.xlane.f32.xlu0 %v620
    %v622 = vpop.xlane.xlu0 %621
    %v623 = vrot.slane %v622, 4
    %v624 = vmin.f32 %v622, %v623
    %v625 = vrot.slane %v624, 2
    %v626 = vmin.f32 %v624, %v625
    %v627 = vrot.slane %v626, 1
    %v628 = vmin.f32 %v626, %v627
    %s629 = vtos %v628
    %v630 = vstv %s629
    %vm631 = vcmp.le.f32.partialorder %v618, %v630
    %v632 = vsel %vm631, %v20, 8
    %v633 = vsel %vm619, %v632, 2147483647
    %v634 = vand.u32 %v633, 65535
    %v635 = vshra.s32 %v633, 16
    %v636 = vcvt.s32.f32 %v634
    %v637 = vcvt.s32.f32 %v635
    %638 = vmin.xlane.f32.xlu0 %v637
    %v639 = vpop.xlane.xlu0 %638
    %vm640 = vcmp.eq.f32.partialorder %v637, %v639
    %v641 = vsel %vm640, %v636, inf
    %642 = vmin.xlane.f32.xlu0 %v641
    %v643 = vpop.xlane.xlu0 %642
    %v644 = vcvt.f32.s32 %v643
    %v645 = vcvt.f32.s32 %v639
    %v646 = vshll.u32 %v645, 16
    %v647 = vadd.s32 %v646, %v644
    %v648 = vrot.slane %v647, 4
    %vm649 = vcmp.lt.s32.totalorder %v647, %v648
    %v650 = vsel %vm649, %v647, %v648
    %v651 = vrot.slane %v650, 2
    %vm652 = vcmp.lt.s32.totalorder %v650, %v651
    %v653 = vsel %vm652, %v650, %v651
    %v654 = vrot.slane %v653, 1
    %vm655 = vcmp.lt.s32.totalorder %v653, %v654
    %v656 = vsel %vm655, %v653, %v654
    %s657 = vtos %v656
    %v658 = vstv %s657
    %vm659 = vcmp.eq.s32.totalorder %v20, %v658
    %vm660 = vmand %vm659, %vm492
    %v661 = vsel %vm660, 1, 0
    %v662 = vcvt.s32.f32 %v661
    %v663 = vmul.f32 %v662, 1e+09
    %665 = vrot.lane.b32.xlu0 %v663, 127
    %v666 = vpop.permute.xlu0 %665
    %v668 = vadd.f32 %v540, %v666
    %670 = vrot.lane.b32.xlu0 %v662, 127
    %v671 = vpop.permute.xlu0 %670
    %v673 = vadd.f32 %v541, %v671
    %v674 = vmul.f32 %v662, %v542
    %676 = vrot.lane.b32.xlu0 %v674, 127
    %v677 = vpop.permute.xlu0 %676
    %v679 = vadd.f32 %v544, %v677
    %v680 = vmul.f32 %v662, %v545
    %682 = vrot.lane.b32.xlu0 %v680, 127
    %v683 = vpop.permute.xlu0 %682
    %v685 = vadd.f32 %v547, %v683
    %v686 = vmul.f32 %v662, %v465
    %688 = vrot.lane.b32.xlu0 %v686, 127
    %v689 = vpop.permute.xlu0 %688
    %v691 = vsel %vm495, %v689, 0.0
    %692 = vadd.xlane.f32.xlu0 %v691
    %v693 = vpop.xlane.xlu0 %692
    %v694 = vrot.slane %v693, 4
    %v695 = vadd.f32 %v693, %v694
    %v696 = vrot.slane %v695, 2
    %v697 = vadd.f32 %v695, %v696
    %v698 = vrot.slane %v697, 1
    %v699 = vadd.f32 %v697, %v698
    %s700 = vtos %v699
    %v701 = vstv %s700
    %v702 = vadd.f32 %v560, %v701
    %v703 = vmul.f32 %v662, %v472
    %705 = vrot.lane.b32.xlu0 %v703, 127
    %v706 = vpop.permute.xlu0 %705
    %v708 = vsel %vm495, %v706, 0.0
    %709 = vadd.xlane.f32.xlu0 %v708
    %v710 = vpop.xlane.xlu0 %709
    %v711 = vrot.slane %v710, 4
    %v712 = vadd.f32 %v710, %v711
    %v713 = vrot.slane %v712, 2
    %v714 = vadd.f32 %v712, %v713
    %v715 = vrot.slane %v714, 1
    %v716 = vadd.f32 %v714, %v715
    %s717 = vtos %v716
    %v718 = vstv %s717
    %v719 = vadd.f32 %v573, %v718
    %v720 = vmul.f32 %v662, %v479
    %722 = vrot.lane.b32.xlu0 %v720, 127
    %v723 = vpop.permute.xlu0 %722
    %v725 = vsel %vm495, %v723, 0.0
    %726 = vadd.xlane.f32.xlu0 %v725
    %v727 = vpop.xlane.xlu0 %726
    %v728 = vrot.slane %v727, 4
    %v729 = vadd.f32 %v727, %v728
    %v730 = vrot.slane %v729, 2
    %v731 = vadd.f32 %v729, %v730
    %v732 = vrot.slane %v731, 1
    %v733 = vadd.f32 %v731, %v732
    %s734 = vtos %v733
    %v735 = vstv %s734
    %v736 = vadd.f32 %v586, %v735
    %v737 = vmul.f32 %v662, %v374
    %739 = vrot.lane.b32.xlu0 %v737, 127
    %v740 = vpop.permute.xlu0 %739
    %v742 = vsel %vm495, %v740, 0.0
    %743 = vadd.xlane.f32.xlu0 %v742
    %v744 = vpop.xlane.xlu0 %743
    %v745 = vrot.slane %v744, 4
    %v746 = vadd.f32 %v744, %v745
    %v747 = vrot.slane %v746, 2
    %v748 = vadd.f32 %v746, %v747
    %v749 = vrot.slane %v748, 1
    %v750 = vadd.f32 %v748, %v749
    %s751 = vtos %v750
    %v752 = vstv %s751
    %v753 = vadd.f32 %v599, %v752
    %v754 = vmul.u32 %v658, %v88
    %v755 = vsub.s32 %v754, %v601
    %v756 = vadd.s32 %v755, 1
    %vm757 = vcmp.eq.s32.totalorder %v18, 1
    %v758 = vsel %vm757, 1, 0
    %759 = vset.pattern.permute.xlu0 1
    %760 = vperm.xlu0 %759, %v756
    %v761 = vpop.permute.xlu0 %760
    %v762 = vmul.u32 %v761, %v758
    %v763 = vadd.s32 %v610, %v762
    %v764 = vmul.f32 %v385, 5.0
    %v765 = vadd.f32 %v488, %v764
    %v766 = vsel %vm492, %v765, 1e+09
    %768 = vrot.lane.b32.xlu0 %v668, 2
    %v769 = vpop.permute.xlu0 %768
    %v771 = vadd.f32 %v766, %v769
    %vm772 = vcmask 23568
    %v773 = vsel %vm772, %v771, inf
    %774 = vmin.xlane.f32.xlu0 %v773
    %v775 = vpop.xlane.xlu0 %774
    %v776 = vrot.slane %v775, 4
    %v777 = vmin.f32 %v775, %v776
    %v778 = vrot.slane %v777, 2
    %v779 = vmin.f32 %v777, %v778
    %v780 = vrot.slane %v779, 1
    %v781 = vmin.f32 %v779, %v780
    %s782 = vtos %v781
    %v783 = vstv %s782
    %vm784 = vcmp.le.f32.partialorder %v771, %v783
    %v785 = vsel %vm784, %v20, 8
    %v786 = vsel %vm772, %v785, 2147483647
    %v787 = vand.u32 %v786, 65535
    %v788 = vshra.s32 %v786, 16
    %v789 = vcvt.s32.f32 %v787
    %v790 = vcvt.s32.f32 %v788
    %791 = vmin.xlane.f32.xlu0 %v790
    %v792 = vpop.xlane.xlu0 %791
    %vm793 = vcmp.eq.f32.partialorder %v790, %v792
    %v794 = vsel %vm793, %v789, inf
    %795 = vmin.xlane.f32.xlu0 %v794
    %v796 = vpop.xlane.xlu0 %795
    %v797 = vcvt.f32.s32 %v796
    %v798 = vcvt.f32.s32 %v792
    %v799 = vshll.u32 %v798, 16
    %v800 = vadd.s32 %v799, %v797
    %v801 = vrot.slane %v800, 4
    %vm802 = vcmp.lt.s32.totalorder %v800, %v801
    %v803 = vsel %vm802, %v800, %v801
    %v804 = vrot.slane %v803, 2
    %vm805 = vcmp.lt.s32.totalorder %v803, %v804
    %v806 = vsel %vm805, %v803, %v804
    %v807 = vrot.slane %v806, 1
    %vm808 = vcmp.lt.s32.totalorder %v806, %v807
    %v809 = vsel %vm808, %v806, %v807
    %s810 = vtos %v809
    %v811 = vstv %s810
    %vm812 = vcmp.eq.s32.totalorder %v20, %v811
    %vm813 = vmand %vm812, %vm492
    %v814 = vsel %vm813, 1, 0
    %v815 = vcvt.s32.f32 %v814
    %v816 = vmul.f32 %v815, 1e+09
    %818 = vrot.lane.b32.xlu0 %v816, 126
    %v819 = vpop.permute.xlu0 %818
    %v821 = vadd.f32 %v668, %v819
    %823 = vrot.lane.b32.xlu0 %v815, 126
    %v824 = vpop.permute.xlu0 %823
    %v826 = vadd.f32 %v673, %v824
    %v827 = vmul.f32 %v815, %v542
    %829 = vrot.lane.b32.xlu0 %v827, 126
    %v830 = vpop.permute.xlu0 %829
    %v832 = vadd.f32 %v679, %v830
    %v833 = vmul.f32 %v815, %v545
    %835 = vrot.lane.b32.xlu0 %v833, 126
    %v836 = vpop.permute.xlu0 %835
    %v838 = vadd.f32 %v685, %v836
    %v839 = vmul.f32 %v815, %v465
    %841 = vrot.lane.b32.xlu0 %v839, 126
    %v842 = vpop.permute.xlu0 %841
    %v844 = vsel %vm495, %v842, 0.0
    %845 = vadd.xlane.f32.xlu0 %v844
    %v846 = vpop.xlane.xlu0 %845
    %v847 = vrot.slane %v846, 4
    %v848 = vadd.f32 %v846, %v847
    %v849 = vrot.slane %v848, 2
    %v850 = vadd.f32 %v848, %v849
    %v851 = vrot.slane %v850, 1
    %v852 = vadd.f32 %v850, %v851
    %s853 = vtos %v852
    %v854 = vstv %s853
    %v855 = vadd.f32 %v702, %v854
    %v856 = vmul.f32 %v815, %v472
    %858 = vrot.lane.b32.xlu0 %v856, 126
    %v859 = vpop.permute.xlu0 %858
    %v861 = vsel %vm495, %v859, 0.0
    %862 = vadd.xlane.f32.xlu0 %v861
    %v863 = vpop.xlane.xlu0 %862
    %v864 = vrot.slane %v863, 4
    %v865 = vadd.f32 %v863, %v864
    %v866 = vrot.slane %v865, 2
    %v867 = vadd.f32 %v865, %v866
    %v868 = vrot.slane %v867, 1
    %v869 = vadd.f32 %v867, %v868
    %s870 = vtos %v869
    %v871 = vstv %s870
    %v872 = vadd.f32 %v719, %v871
    %v873 = vmul.f32 %v815, %v479
    %875 = vrot.lane.b32.xlu0 %v873, 126
    %v876 = vpop.permute.xlu0 %875
    %v878 = vsel %vm495, %v876, 0.0
    %879 = vadd.xlane.f32.xlu0 %v878
    %v880 = vpop.xlane.xlu0 %879
    %v881 = vrot.slane %v880, 4
    %v882 = vadd.f32 %v880, %v881
    %v883 = vrot.slane %v882, 2
    %v884 = vadd.f32 %v882, %v883
    %v885 = vrot.slane %v884, 1
    %v886 = vadd.f32 %v884, %v885
    %s887 = vtos %v886
    %v888 = vstv %s887
    %v889 = vadd.f32 %v736, %v888
    %v890 = vmul.f32 %v815, %v385
    %892 = vrot.lane.b32.xlu0 %v890, 126
    %v893 = vpop.permute.xlu0 %892
    %v895 = vsel %vm495, %v893, 0.0
    %896 = vadd.xlane.f32.xlu0 %v895
    %v897 = vpop.xlane.xlu0 %896
    %v898 = vrot.slane %v897, 4
    %v899 = vadd.f32 %v897, %v898
    %v900 = vrot.slane %v899, 2
    %v901 = vadd.f32 %v899, %v900
    %v902 = vrot.slane %v901, 1
    %v903 = vadd.f32 %v901, %v902
    %s904 = vtos %v903
    %v905 = vstv %s904
    %v906 = vadd.f32 %v753, %v905
    %v907 = vmul.u32 %v811, %v88
    %v908 = vsub.s32 %v907, %v601
    %v909 = vadd.s32 %v908, 1
    %vm910 = vcmp.eq.s32.totalorder %v18, 2
    %v911 = vsel %vm910, 1, 0
    %912 = vset.pattern.permute.xlu0 2
    %913 = vperm.xlu0 %912, %v909
    %v914 = vpop.permute.xlu0 %913
    %v915 = vmul.u32 %v914, %v911
    %v916 = vadd.s32 %v763, %v915
    %v917 = vmul.f32 %v396, 5.0
    %v918 = vadd.f32 %v488, %v917
    %v919 = vsel %vm492, %v918, 1e+09
    %921 = vrot.lane.b32.xlu0 %v821, 3
    %v922 = vpop.permute.xlu0 %921
    %v924 = vadd.f32 %v919, %v922
    %vm925 = vcmask 31768
    %v926 = vsel %vm925, %v924, inf
    %927 = vmin.xlane.f32.xlu0 %v926
    %v928 = vpop.xlane.xlu0 %927
    %v929 = vrot.slane %v928, 4
    %v930 = vmin.f32 %v928, %v929
    %v931 = vrot.slane %v930, 2
    %v932 = vmin.f32 %v930, %v931
    %v933 = vrot.slane %v932, 1
    %v934 = vmin.f32 %v932, %v933
    %s935 = vtos %v934
    %v936 = vstv %s935
    %vm937 = vcmp.le.f32.partialorder %v924, %v936
    %v938 = vsel %vm937, %v20, 8
    %v939 = vsel %vm925, %v938, 2147483647
    %v940 = vand.u32 %v939, 65535
    %v941 = vshra.s32 %v939, 16
    %v942 = vcvt.s32.f32 %v940
    %v943 = vcvt.s32.f32 %v941
    %944 = vmin.xlane.f32.xlu0 %v943
    %v945 = vpop.xlane.xlu0 %944
    %vm946 = vcmp.eq.f32.partialorder %v943, %v945
    %v947 = vsel %vm946, %v942, inf
    %948 = vmin.xlane.f32.xlu0 %v947
    %v949 = vpop.xlane.xlu0 %948
    %v950 = vcvt.f32.s32 %v949
    %v951 = vcvt.f32.s32 %v945
    %v952 = vshll.u32 %v951, 16
    %v953 = vadd.s32 %v952, %v950
    %v954 = vrot.slane %v953, 4
    %vm955 = vcmp.lt.s32.totalorder %v953, %v954
    %v956 = vsel %vm955, %v953, %v954
    %v957 = vrot.slane %v956, 2
    %vm958 = vcmp.lt.s32.totalorder %v956, %v957
    %v959 = vsel %vm958, %v956, %v957
    %v960 = vrot.slane %v959, 1
    %vm961 = vcmp.lt.s32.totalorder %v959, %v960
    %v962 = vsel %vm961, %v959, %v960
    %s963 = vtos %v962
    %v964 = vstv %s963
    %vm965 = vcmp.eq.s32.totalorder %v20, %v964
    %vm966 = vmand %vm965, %vm492
    %v967 = vsel %vm966, 1, 0
    %v968 = vcvt.s32.f32 %v967
    %970 = vrot.lane.b32.xlu0 %v968, 125
    %v971 = vpop.permute.xlu0 %970
    %v973 = vadd.f32 %v826, %v971
    %v974 = vmul.f32 %v968, %v542
    %976 = vrot.lane.b32.xlu0 %v974, 125
    %v977 = vpop.permute.xlu0 %976
    %v979 = vadd.f32 %v832, %v977
    %v980 = vmul.f32 %v968, %v545
    %982 = vrot.lane.b32.xlu0 %v980, 125
    %v983 = vpop.permute.xlu0 %982
    %v985 = vadd.f32 %v838, %v983
    %v986 = vmul.f32 %v968, %v465
    %988 = vrot.lane.b32.xlu0 %v986, 125
    %v989 = vpop.permute.xlu0 %988
    %v991 = vsel %vm495, %v989, 0.0
    %992 = vadd.xlane.f32.xlu0 %v991
    %v993 = vpop.xlane.xlu0 %992
    %v994 = vrot.slane %v993, 4
    %v995 = vadd.f32 %v993, %v994
    %v996 = vrot.slane %v995, 2
    %v997 = vadd.f32 %v995, %v996
    %v998 = vrot.slane %v997, 1
    %v999 = vadd.f32 %v997, %v998
    %s1000 = vtos %v999
    %v1001 = vstv %s1000
    %v1002 = vadd.f32 %v855, %v1001
    %v1003 = vmul.f32 %v968, %v472
    %1005 = vrot.lane.b32.xlu0 %v1003, 125
    %v1006 = vpop.permute.xlu0 %1005
    %v1008 = vsel %vm495, %v1006, 0.0
    %1009 = vadd.xlane.f32.xlu0 %v1008
    %v1010 = vpop.xlane.xlu0 %1009
    %v1011 = vrot.slane %v1010, 4
    %v1012 = vadd.f32 %v1010, %v1011
    %v1013 = vrot.slane %v1012, 2
    %v1014 = vadd.f32 %v1012, %v1013
    %v1015 = vrot.slane %v1014, 1
    %v1016 = vadd.f32 %v1014, %v1015
    %s1017 = vtos %v1016
    %v1018 = vstv %s1017
    %v1019 = vadd.f32 %v872, %v1018
    %v1020 = vmul.f32 %v968, %v479
    %1022 = vrot.lane.b32.xlu0 %v1020, 125
    %v1023 = vpop.permute.xlu0 %1022
    %v1025 = vsel %vm495, %v1023, 0.0
    %1026 = vadd.xlane.f32.xlu0 %v1025
    %v1027 = vpop.xlane.xlu0 %1026
    %v1028 = vrot.slane %v1027, 4
    %v1029 = vadd.f32 %v1027, %v1028
    %v1030 = vrot.slane %v1029, 2
    %v1031 = vadd.f32 %v1029, %v1030
    %v1032 = vrot.slane %v1031, 1
    %v1033 = vadd.f32 %v1031, %v1032
    %s1034 = vtos %v1033
    %v1035 = vstv %s1034
    %v1036 = vadd.f32 %v889, %v1035
    %v1037 = vmul.f32 %v968, %v396
    %1039 = vrot.lane.b32.xlu0 %v1037, 125
    %v1040 = vpop.permute.xlu0 %1039
    %v1042 = vsel %vm495, %v1040, 0.0
    %1043 = vadd.xlane.f32.xlu0 %v1042
    %v1044 = vpop.xlane.xlu0 %1043
    %v1045 = vrot.slane %v1044, 4
    %v1046 = vadd.f32 %v1044, %v1045
    %v1047 = vrot.slane %v1046, 2
    %v1048 = vadd.f32 %v1046, %v1047
    %v1049 = vrot.slane %v1048, 1
    %v1050 = vadd.f32 %v1048, %v1049
    %s1051 = vtos %v1050
    %v1052 = vstv %s1051
    %v1053 = vadd.f32 %v906, %v1052
    %v1054 = vmul.u32 %v964, %v88
    %v1055 = vsub.s32 %v1054, %v601
    %v1056 = vadd.s32 %v1055, 1
    %vm1057 = vcmp.eq.s32.totalorder %v18, 3
    %v1058 = vsel %vm1057, 1, 0
    %1059 = vset.pattern.permute.xlu0 3
    %1060 = vperm.xlu0 %1059, %v1056
    %v1061 = vpop.permute.xlu0 %1060
    %v1062 = vmul.u32 %v1061, %v1058
    %v1063 = vadd.s32 %v916, %v1062
    %v1064 = vlog2.pop %v41
    %v1065 = vmul.f32 %v1064, 0.6931472
    %v1066 = vsub.f32 %v36, %v1065
    %v1067 = vlog2.pop %v57
    %v1068 = vmul.f32 %v1067, 0.6931472
    %v1069 = vsub.f32 %v48, %v1068
    %v1070 = vcvt.f32.s32.to.zero.pseudo %v979
    %1071 = vset.pattern.permute.xlu0 0
    %1072 = vperm.xlu0 %1071, %v1070
    %v1073 = vpop.permute.xlu0 %1072
    %vm1074 = vcmp.eq.s32.totalorder %v18, %v1073
    %v1075 = vsel %vm1074, 1, 0
    %v1076 = vcvt.s32.f32 %v1075
    %v1077 = vcvt.f32.s32.to.zero.pseudo %v985
    %1078 = vset.pattern.permute.xlu0 0
    %1079 = vperm.xlu0 %1078, %v1077
    %v1080 = vpop.permute.xlu0 %1079
    %vm1081 = vcmp.eq.s32.totalorder %v18, %v1080
    %v1082 = vsel %vm1081, 1, 0
    %v1083 = vcvt.s32.f32 %v1082
    %v1084 = vmul.f32 %v1066, %v1076
    %v1085 = vsel %vm32, %v1084, 0.0
    %1086 = vadd.xlane.f32.xlu0 %v1085
    %v1087 = vpop.xlane.xlu0 %1086
    %v1088 = vrot.slane %v1087, 4
    %v1089 = vadd.f32 %v1087, %v1088
    %v1090 = vrot.slane %v1089, 2
    %v1091 = vadd.f32 %v1089, %v1090
    %v1092 = vrot.slane %v1091, 1
    %v1093 = vadd.f32 %v1091, %v1092
    %s1094 = vtos %v1093
    %v1095 = vstv %s1094
    %v1096 = vsub.f32 0.0, %v1095
    %1098 = vrot.lane.b32.xlu0 %v1083, 3
    %v1099 = vpop.permute.xlu0 %1098
    %v1101 = vmul.f32 %v1069, %v1099
    %1103 = vrot.lane.b32.xlu0 %v1101, 125
    %v1104 = vpop.permute.xlu0 %1103
    %v1106 = vsel %vm32, %v1104, 0.0
    %1107 = vadd.xlane.f32.xlu0 %v1106
    %v1108 = vpop.xlane.xlu0 %1107
    %v1109 = vrot.slane %v1108, 4
    %v1110 = vadd.f32 %v1108, %v1109
    %v1111 = vrot.slane %v1110, 2
    %v1112 = vadd.f32 %v1110, %v1111
    %v1113 = vrot.slane %v1112, 1
    %v1114 = vadd.f32 %v1112, %v1113
    %s1115 = vtos %v1114
    %v1116 = vstv %s1115
    %v1117 = vsub.f32 0.0, %v1116
    %v1118 = vmax.f32 %v21, 0.0
    %1120 = vrot.lane.b32.xlu0 %v973, 6
    %v1121 = vpop.permute.xlu0 %1120
    %v1123 = vmul.f32 %v21, %v1121
    %v1124 = vsub.f32 %v1118, %v1123
    %v1125 = vand.u32 2147483647, %v21
    %v1126 = vsub.f32 0.0, %v1125
    %v1127 = vmul.f32 %v1126, 1.442695
    %v1128 = vpow.pop %v1127
    %v1129 = vadd.f32 %v1128, 1.0
    %v1130 = vlog2.pop %v1129
    %v1131 = vmul.f32 %v1130, 0.6931472
    %v1132 = vmul.f32 -0.5, %v1128
    %v1133 = vadd.f32 %v1132, 1.0
    %v1134 = vmul.f32 %v1133, %v1128
    %v1135 = vand.u32 2147483647, %v1128
    %vm1136 = vcmp.lt.f32.partialorder %v1135, 0.0004427343
    %v1137 = vsel %vm1136, %v1134, %v1131
    %v1138 = vadd.f32 %v1124, %v1137
    %1140 = vrot.lane.b32.xlu0 %v1138, 122
    %v1141 = vpop.permute.xlu0 %1140
    %v1143 = vsel %vm495, %v1141, 0.0
    %1144 = vadd.xlane.f32.xlu0 %v1143
    %v1145 = vpop.xlane.xlu0 %1144
    %v1146 = vrot.slane %v1145, 4
    %v1147 = vadd.f32 %v1145, %v1146
    %v1148 = vrot.slane %v1147, 2
    %v1149 = vadd.f32 %v1147, %v1148
    %v1150 = vrot.slane %v1149, 1
    %v1151 = vadd.f32 %v1149, %v1150
    %s1152 = vtos %v1151
    %vm1153 = vcmp.lt.f32.partialorder %v21, %v35
    %v1154 = vsel %vm1153, 1, 0
    %v1155 = vcvt.s32.f32 %v1154
    %v1156 = vsel %vm495, %v1155, 0.0
    %1157 = vadd.xlane.f32.xlu0 %v1156
    %v1158 = vpop.xlane.xlu0 %1157
    %v1159 = vrot.slane %v1158, 4
    %v1160 = vadd.f32 %v1158, %v1159
    %v1161 = vrot.slane %v1160, 2
    %v1162 = vadd.f32 %v1160, %v1161
    %v1163 = vrot.slane %v1162, 1
    %v1164 = vadd.f32 %v1162, %v1163
    %s1165 = vtos %v1164
    %v1166 = vstv %s1165
    %v1167 = vcvt.s32.f32 %v88
    %vm1168 = vcmask 24576
    %v1169 = vsel %vm1168, %v1167, 0.0
    %1170 = vadd.xlane.f32.xlu0 %v1169
    %v1171 = vpop.xlane.xlu0 %1170
    %v1172 = vrot.slane %v1171, 4
    %v1173 = vadd.f32 %v1171, %v1172
    %v1174 = vrot.slane %v1173, 2
    %v1175 = vadd.f32 %v1173, %v1174
    %v1176 = vrot.slane %v1175, 1
    %v1177 = vadd.f32 %v1175, %v1176
    %s1178 = vtos %v1177
    %v1179 = vstv %s1178
    %v1180 = vsub.f32 %v1166, %v1179
    %v1181 = vand.u32 2147483647, %v1180
    %v1182 = vcvt.s32.f32 %v605
    %v1183 = vmul.f32 %v1096, %v1182
    %v1184 = vadd.f32 %v1183, 0.0
    %v1185 = vcvt.s32.f32 %v758
    %v1186 = vmul.f32 %v1117, %v1185
    %v1187 = vadd.f32 %v1184, %v1186
    %v1188 = vcvt.s32.f32 %v911
    %v1189 = vmul.f32 %v1053, %v1188
    %v1190 = vadd.f32 %v1187, %v1189
    %v1191 = vcvt.s32.f32 %v1058
    %v1192 = vmul.f32 %v1002, %v1191
    %v1193 = vadd.f32 %v1190, %v1192
    %vm1194 = vcmp.eq.s32.totalorder %v18, 4
    %v1195 = vsel %vm1194, 1, 0
    %v1196 = vcvt.s32.f32 %v1195
    %v1197 = vmul.f32 %v1019, %v1196
    %v1198 = vadd.f32 %v1193, %v1197
    %vm1199 = vcmp.eq.s32.totalorder %v18, 5
    %v1200 = vsel %vm1199, 1, 0
    %v1201 = vcvt.s32.f32 %v1200
    %v1202 = vmul.f32 %v1036, %v1201
    %v1203 = vadd.f32 %v1198, %v1202
    %vm1204 = vcmp.eq.s32.totalorder %v18, 6
    %v1205 = vsel %vm1204, 1, 0
    %v1206 = vcvt.s32.f32 %v1205
    %v1207 = vstv %s1152
    %v1208 = vmul.f32 %v1207, %v1206
    %v1209 = vadd.f32 %v1203, %v1208
    %vm1210 = vcmp.eq.s32.totalorder %v18, 7
    %v1211 = vsel %vm1210, 1, 0
    %v1212 = vcvt.s32.f32 %v1211
    %v1213 = vmul.f32 %v1181, %v1212
    %v1214 = vadd.f32 %v1209, %v1213
    %1215 = vst [vmem:[%s3] sm:$0x1] %v1214
    %1216 = vst [vmem:[#allocation2] sm:$0x1] %v1063
    %s1217 = scalar_lea.vmem %s0, 8
    %v1218 = vld [vmem:[%s1217] sm:$0xff]
    %s1219 = scalar_lea.vmem %s1, 8
    %v1220 = vld [vmem:[%s1219] sm:$0xff]
    %s1221 = scalar_lea.vmem %s2, 8
    %v1222 = vld [vmem:[%s1221] sm:$0x3f]
    %vm1223 = vcmp.gt.f32.partialorder %v1222, 0.0
    %v1224 = vadd.f32 %v1222, 0.5
    %v1225 = vmul.f32 %v1224, 0.1
    %v1226 = vfloor.f32 %v1225
    %v1227 = vmul.f32 %v1226, 10.0
    %v1228 = vsub.f32 %v1222, %v1227
    %v1229 = vadd.f32 %v1228, 0.5
    %v1230 = vfloor.f32 %v1229
    %v1231 = vsel %vm32, %v1218, -inf
    %1232 = vmax.xlane.f32.xlu0 %v1231
    %v1233 = vpop.xlane.xlu0 %1232
    %v1234 = vsub.f32 %v1218, %v1233
    %v1235 = vmul.f32 %v1234, 1.442695
    %v1236 = vpow.pop %v1235
    %v1237 = vsel %vm32, %v1236, 0.0
    %1238 = vadd.xlane.f32.xlu0 %v1237
    %v1239 = vpop.xlane.xlu0 %1238
    %v1240 = vrcp.pop %v1239
    %v1241 = vmul.f32 %v1236, %v1240
    %v1242 = vsel %vm44, %v1218, -inf
    %1243 = vmax.xlane.f32.xlu0 %v1242
    %v1244 = vpop.xlane.xlu0 %1243
    %v1245 = vsub.f32 %v1218, %v1244
    %v1246 = vmul.f32 %v1245, 1.442695
    %v1247 = vpow.pop %v1246
    %1249 = vrot.lane.b32.xlu0 %v1247, 125
    %v1250 = vpop.permute.xlu0 %1249
    %v1252 = vsel %vm32, %v1250, 0.0
    %1253 = vadd.xlane.f32.xlu0 %v1252
    %v1254 = vpop.xlane.xlu0 %1253
    %v1255 = vrcp.pop %v1254
    %v1256 = vmul.f32 %v1247, %v1255
    %1258 = vset.pattern.permute.xlu0 3
    %1259 = vperm.xlu0 %1258, %v1220
    %v1260 = vpop.permute.xlu0 %1259
    %v1262 = vperm.slane %v1222, 5
    %v1263 = vmul.f32 %v1260, %v1262
    %1264 = vset.pattern.permute.xlu0 4
    %1265 = vperm.xlu0 %1264, %v1220
    %v1266 = vpop.permute.xlu0 %1265
    %v1268 = vadd.f32 %v1263, %v1266
    %v1269 = vmul.f32 %v1268, %v1262
    %1270 = vset.pattern.permute.xlu0 5
    %1271 = vperm.xlu0 %1270, %v1220
    %v1272 = vpop.permute.xlu0 %1271
    %v1274 = vadd.f32 %v1269, %v1272
    %v1275 = vmul.f32 %v1274, %v1262
    %1276 = vset.pattern.permute.xlu0 6
    %1277 = vperm.xlu0 %1276, %v1220
    %v1278 = vpop.permute.xlu0 %1277
    %v1280 = vadd.f32 %v1275, %v1278
    %v1281 = vperm.slane %v1222, 4
    %v1282 = vsub.f32 %v1280, %v1281
    %v1283 = vand.u32 2147483647, %v1282
    %vm1284 = vcmp.ge.f32.partialorder %v1222, 0.0
    %v1285 = vsel %vm1223, 1, 0
    %1286 = vset.pattern.permute.xlu0 0
    %1287 = vperm.xlu0 %1286, %v1285
    %v1288 = vpop.permute.xlu0 %1287
    %vm1289 = vcmp.eq.s32.totalorder %v1288, 1
    %v1290 = vsel %vm1289, 1, 0
    %v1291 = vrot.slane %v1290, 4
    %vm1292 = vcmp.ne.s32.totalorder %v1291, 0
    %vm1293 = vmand %vm1284, %vm1292
    %v1294 = vsel %vm1293, 1, 0
    %v1295 = vcvt.s32.f32 %v1294
    %v1297 = vrot.slane %v1295, 4
    %v1299 = vsel %vm102, %v1297, 0.0
    %1300 = vadd.xlane.f32.xlu0 %v1299
    %v1301 = vpop.xlane.xlu0 %1300
    %v1302 = vrot.slane %v1301, 4
    %v1303 = vadd.f32 %v1301, %v1302
    %v1304 = vrot.slane %v1303, 2
    %v1305 = vadd.f32 %v1303, %v1304
    %v1306 = vrot.slane %v1305, 1
    %v1307 = vadd.f32 %v1305, %v1306
    %s1308 = vtos %v1307
    %v1309 = vstv %s1308
    %1310 = vset.pattern.permute.xlu0 1
    %1311 = vperm.xlu0 %1310, %v1285
    %v1312 = vpop.permute.xlu0 %1311
    %vm1313 = vcmp.eq.s32.totalorder %v1312, 1
    %v1314 = vsel %vm1313, 1, 0
    %v1315 = vrot.slane %v1314, 4
    %vm1316 = vcmp.ne.s32.totalorder %v1315, 0
    %vm1317 = vmand %vm1284, %vm1316
    %v1318 = vsel %vm1317, 1, 0
    %v1319 = vcvt.s32.f32 %v1318
    %v1321 = vrot.slane %v1319, 4
    %1322 = vrot.lane.b32.xlu0 %v1321, 120
    %v1323 = vpop.permute.xlu0 %1322
    %v1325 = vsel %vm102, %v1323, 0.0
    %1326 = vadd.xlane.f32.xlu0 %v1325
    %v1327 = vpop.xlane.xlu0 %1326
    %v1328 = vrot.slane %v1327, 4
    %v1329 = vadd.f32 %v1327, %v1328
    %v1330 = vrot.slane %v1329, 2
    %v1331 = vadd.f32 %v1329, %v1330
    %v1332 = vrot.slane %v1331, 1
    %v1333 = vadd.f32 %v1331, %v1332
    %s1334 = vtos %v1333
    %v1335 = vstv %s1334
    %1336 = vset.pattern.permute.xlu0 2
    %1337 = vperm.xlu0 %1336, %v1285
    %v1338 = vpop.permute.xlu0 %1337
    %vm1339 = vcmp.eq.s32.totalorder %v1338, 1
    %v1340 = vsel %vm1339, 1, 0
    %v1341 = vrot.slane %v1340, 4
    %vm1342 = vcmp.ne.s32.totalorder %v1341, 0
    %vm1343 = vmand %vm1284, %vm1342
    %v1344 = vsel %vm1343, 1, 0
    %v1345 = vcvt.s32.f32 %v1344
    %v1347 = vrot.slane %v1345, 4
    %1348 = vrot.lane.b32.xlu0 %v1347, 112
    %v1349 = vpop.permute.xlu0 %1348
    %v1351 = vsel %vm102, %v1349, 0.0
    %1352 = vadd.xlane.f32.xlu0 %v1351
    %v1353 = vpop.xlane.xlu0 %1352
    %v1354 = vrot.slane %v1353, 4
    %v1355 = vadd.f32 %v1353, %v1354
    %v1356 = vrot.slane %v1355, 2
    %v1357 = vadd.f32 %v1355, %v1356
    %v1358 = vrot.slane %v1357, 1
    %v1359 = vadd.f32 %v1357, %v1358
    %s1360 = vtos %v1359
    %v1361 = vstv %s1360
    %1362 = vset.pattern.permute.xlu0 3
    %1363 = vperm.xlu0 %1362, %v1285
    %v1364 = vpop.permute.xlu0 %1363
    %vm1365 = vcmp.eq.s32.totalorder %v1364, 1
    %v1366 = vsel %vm1365, 1, 0
    %v1367 = vrot.slane %v1366, 4
    %vm1368 = vcmp.ne.s32.totalorder %v1367, 0
    %vm1369 = vmand %vm1284, %vm1368
    %v1370 = vsel %vm1369, 1, 0
    %v1371 = vcvt.s32.f32 %v1370
    %v1373 = vrot.slane %v1371, 4
    %1374 = vrot.lane.b32.xlu0 %v1373, 104
    %v1375 = vpop.permute.xlu0 %1374
    %v1377 = vsel %vm102, %v1375, 0.0
    %1378 = vadd.xlane.f32.xlu0 %v1377
    %v1379 = vpop.xlane.xlu0 %1378
    %v1380 = vrot.slane %v1379, 4
    %v1381 = vadd.f32 %v1379, %v1380
    %v1382 = vrot.slane %v1381, 2
    %v1383 = vadd.f32 %v1381, %v1382
    %v1384 = vrot.slane %v1383, 1
    %v1385 = vadd.f32 %v1383, %v1384
    %s1386 = vtos %v1385
    %v1387 = vstv %s1386
    %v1388 = vadd.f32 %v1309, %v1335
    %v1389 = vadd.f32 %v1388, %v1361
    %v1390 = vadd.f32 %v1389, %v1387
    %v1391 = vmax.f32 %v1309, 1.0
    %v1392 = vrcp.pop %v1391
    %v1393 = vmul.f32 %v1391, %v1392
    %v1394 = vsub.f32 1.0, %v1393
    %v1395 = vmul.f32 %v1392, %v1394
    %v1396 = vadd.f32 %v1392, %v1395
    %vm1397 = vweird.f32 %v1391
    %vm1398 = vweird.f32 %v1392
    %vm1399 = vmor %vm1397, %vm1398
    %v1400 = vsel %vm1399, %v1392, %v1396
    %v1401 = vand.u32 2147483647, %v1391
    %vm1402 = vcmp.eq.f32.partialorder %v1401, 8.507059e+37
    %v1403 = vand.u32 %v1391, 2147483648
    %v1404 = vor.u32 1.1754944e-38, %v1403
    %v1405 = vsel %vm1402, %v1404, %v1400
    %v1406 = vmul.f32 %v1390, %v1405
    %v1407 = vrsqrt.pop %v1406
    %v1408 = vmul.f32 %v1407, %v1406
    %v1409 = vmul.f32 %v1408, %v1407
    %v1410 = vmul.f32 0.5, %v1409
    %v1411 = vsub.f32 1.5, %v1410
    %v1412 = vmul.f32 %v1407, %v1411
    %v1413 = vmul.f32 %v1406, %v1412
    %vm1414 = vcmp.eq.f32.partialorder %v1406, inf
    %v1415 = vsel %vm1414, %v1406, %v1413
    %vm1416 = vcmp.eq.f32.partialorder %v1406, 0.0
    %v1417 = vand.u32 %v1406, 2147483648
    %v1418 = vsel %vm1416, %v1417, %v1415
    %v1419 = vsel %vm1223, %v1418, 0.0
    %v1420 = vmax.f32 %v1335, 1.0
    %v1421 = vrcp.pop %v1420
    %v1422 = vmul.f32 %v1420, %v1421
    %v1423 = vsub.f32 1.0, %v1422
    %v1424 = vmul.f32 %v1421, %v1423
    %v1425 = vadd.f32 %v1421, %v1424
    %vm1426 = vweird.f32 %v1420
    %vm1427 = vweird.f32 %v1421
    %vm1428 = vmor %vm1426, %vm1427
    %v1429 = vsel %vm1428, %v1421, %v1425
    %v1430 = vand.u32 2147483647, %v1420
    %vm1431 = vcmp.eq.f32.partialorder %v1430, 8.507059e+37
    %v1432 = vand.u32 %v1420, 2147483648
    %v1433 = vor.u32 1.1754944e-38, %v1432
    %v1434 = vsel %vm1431, %v1433, %v1429
    %v1435 = vmul.f32 %v1390, %v1434
    %v1436 = vrsqrt.pop %v1435
    %v1437 = vmul.f32 %v1436, %v1435
    %v1438 = vmul.f32 %v1437, %v1436
    %v1439 = vmul.f32 0.5, %v1438
    %v1440 = vsub.f32 1.5, %v1439
    %v1441 = vmul.f32 %v1436, %v1440
    %v1442 = vmul.f32 %v1435, %v1441
    %vm1443 = vcmp.eq.f32.partialorder %v1435, inf
    %v1444 = vsel %vm1443, %v1435, %v1442
    %vm1445 = vcmp.eq.f32.partialorder %v1435, 0.0
    %v1446 = vand.u32 %v1435, 2147483648
    %v1447 = vsel %vm1445, %v1446, %v1444
    %v1448 = vsel %vm1223, %v1447, 0.0
    %v1449 = vmax.f32 %v1361, 1.0
    %v1450 = vrcp.pop %v1449
    %v1451 = vmul.f32 %v1449, %v1450
    %v1452 = vsub.f32 1.0, %v1451
    %v1453 = vmul.f32 %v1450, %v1452
    %v1454 = vadd.f32 %v1450, %v1453
    %vm1455 = vweird.f32 %v1449
    %vm1456 = vweird.f32 %v1450
    %vm1457 = vmor %vm1455, %vm1456
    %v1458 = vsel %vm1457, %v1450, %v1454
    %v1459 = vand.u32 2147483647, %v1449
    %vm1460 = vcmp.eq.f32.partialorder %v1459, 8.507059e+37
    %v1461 = vand.u32 %v1449, 2147483648
    %v1462 = vor.u32 1.1754944e-38, %v1461
    %v1463 = vsel %vm1460, %v1462, %v1458
    %v1464 = vmul.f32 %v1390, %v1463
    %v1465 = vrsqrt.pop %v1464
    %v1466 = vmul.f32 %v1465, %v1464
    %v1467 = vmul.f32 %v1466, %v1465
    %v1468 = vmul.f32 0.5, %v1467
    %v1469 = vsub.f32 1.5, %v1468
    %v1470 = vmul.f32 %v1465, %v1469
    %v1471 = vmul.f32 %v1464, %v1470
    %vm1472 = vcmp.eq.f32.partialorder %v1464, inf
    %v1473 = vsel %vm1472, %v1464, %v1471
    %vm1474 = vcmp.eq.f32.partialorder %v1464, 0.0
    %v1475 = vand.u32 %v1464, 2147483648
    %v1476 = vsel %vm1474, %v1475, %v1473
    %v1477 = vsel %vm1223, %v1476, 0.0
    %v1478 = vmax.f32 %v1387, 1.0
    %v1479 = vrcp.pop %v1478
    %v1480 = vmul.f32 %v1478, %v1479
    %v1481 = vsub.f32 1.0, %v1480
    %v1482 = vmul.f32 %v1479, %v1481
    %v1483 = vadd.f32 %v1479, %v1482
    %vm1484 = vweird.f32 %v1478
    %vm1485 = vweird.f32 %v1479
    %vm1486 = vmor %vm1484, %vm1485
    %v1487 = vsel %vm1486, %v1479, %v1483
    %v1488 = vand.u32 2147483647, %v1478
    %vm1489 = vcmp.eq.f32.partialorder %v1488, 8.507059e+37
    %v1490 = vand.u32 %v1478, 2147483648
    %v1491 = vor.u32 1.1754944e-38, %v1490
    %v1492 = vsel %vm1489, %v1491, %v1487
    %v1493 = vmul.f32 %v1390, %v1492
    %v1494 = vrsqrt.pop %v1493
    %v1495 = vmul.f32 %v1494, %v1493
    %v1496 = vmul.f32 %v1495, %v1494
    %v1497 = vmul.f32 0.5, %v1496
    %v1498 = vsub.f32 1.5, %v1497
    %v1499 = vmul.f32 %v1494, %v1498
    %v1500 = vmul.f32 %v1493, %v1499
    %vm1501 = vcmp.eq.f32.partialorder %v1493, inf
    %v1502 = vsel %vm1501, %v1493, %v1500
    %vm1503 = vcmp.eq.f32.partialorder %v1493, 0.0
    %v1504 = vand.u32 %v1493, 2147483648
    %v1505 = vsel %vm1503, %v1504, %v1502
    %v1506 = vsel %vm1223, %v1505, 0.0
    %1508 = vrot.lane.b32.xlu0 %v1448, 127
    %v1509 = vpop.permute.xlu0 %1508
    %v1511 = vmax.f32 %v1419, %v1509
    %1513 = vrot.lane.b32.xlu0 %v1477, 126
    %v1514 = vpop.permute.xlu0 %1513
    %v1516 = vmax.f32 %v1511, %v1514
    %1518 = vrot.lane.b32.xlu0 %v1506, 125
    %v1519 = vpop.permute.xlu0 %1518
    %v1521 = vmax.f32 %v1516, %v1519
    %v1522 = vmax.f32 %v1521, 1e-06
    %v1523 = vrcp.pop %v1522
    %v1524 = vmul.f32 %v1522, %v1523
    %v1525 = vsub.f32 1.0, %v1524
    %v1526 = vmul.f32 %v1523, %v1525
    %v1527 = vadd.f32 %v1523, %v1526
    %vm1528 = vweird.f32 %v1522
    %vm1529 = vweird.f32 %v1523
    %vm1530 = vmor %vm1528, %vm1529
    %v1531 = vsel %vm1530, %v1523, %v1527
    %v1532 = vand.u32 2147483647, %v1522
    %vm1533 = vcmp.eq.f32.partialorder %v1532, 8.507059e+37
    %v1534 = vand.u32 %v1522, 2147483648
    %v1535 = vor.u32 1.1754944e-38, %v1534
    %v1536 = vsel %vm1533, %v1535, %v1531
    %v1537 = vmul.f32 1.0, %v1536
    %v1538 = vmul.f32 %v1419, %v1537
    %1540 = vrot.lane.b32.xlu0 %v1537, 1
    %v1541 = vpop.permute.xlu0 %1540
    %v1543 = vmul.f32 %v1448, %v1541
    %1544 = vrot.lane.b32.xlu0 %v1537, 2
    %v1545 = vpop.permute.xlu0 %1544
    %v1547 = vmul.f32 %v1477, %v1545
    %1548 = vrot.lane.b32.xlu0 %v1537, 3
    %v1549 = vpop.permute.xlu0 %1548
    %v1551 = vmul.f32 %v1506, %v1549
    %v1552 = vperm.slane %v1295, 4
    %v1553 = vmul.f32 %v1283, %v1552
    %v1554 = vsel %vm358, %v1553, 0.0
    %1555 = vadd.xlane.f32.xlu0 %v1554
    %v1556 = vpop.xlane.xlu0 %1555
    %v1557 = vperm.slane %v1538, 0
    %v1558 = vmul.f32 %v1556, %v1557
    %v1559 = vperm.slane %v1319, 4
    %v1560 = vmul.f32 %v1283, %v1559
    %1562 = vrot.lane.b32.xlu0 %v1560, 120
    %v1563 = vpop.permute.xlu0 %1562
    %v1565 = vsel %vm358, %v1563, 0.0
    %1566 = vadd.xlane.f32.xlu0 %v1565
    %v1567 = vpop.xlane.xlu0 %1566
    %v1568 = vperm.slane %v1543, 0
    %v1569 = vmul.f32 %v1567, %v1568
    %v1570 = vperm.slane %v1345, 4
    %v1571 = vmul.f32 %v1283, %v1570
    %1573 = vrot.lane.b32.xlu0 %v1571, 112
    %v1574 = vpop.permute.xlu0 %1573
    %v1576 = vsel %vm358, %v1574, 0.0
    %1577 = vadd.xlane.f32.xlu0 %v1576
    %v1578 = vpop.xlane.xlu0 %1577
    %v1579 = vperm.slane %v1547, 0
    %v1580 = vmul.f32 %v1578, %v1579
    %v1581 = vperm.slane %v1371, 4
    %v1582 = vmul.f32 %v1283, %v1581
    %1584 = vrot.lane.b32.xlu0 %v1582, 104
    %v1585 = vpop.permute.xlu0 %1584
    %v1587 = vsel %vm358, %v1585, 0.0
    %1588 = vadd.xlane.f32.xlu0 %v1587
    %v1589 = vpop.xlane.xlu0 %1588
    %v1590 = vperm.slane %v1551, 0
    %v1591 = vmul.f32 %v1589, %v1590
    %vm1592 = vcmp.eq.f32.partialorder %v1226, 0.0
    %v1593 = vsel %vm1592, 1, 0
    %v1594 = vcvt.s32.f32 %v1593
    %1596 = vset.pattern.permute.xlu0 0
    %1597 = vperm.xlu0 %1596, %v1241
    %v1598 = vpop.permute.xlu0 %1597
    %v1600 = vperm.slane %v1594, 0
    %v1601 = vmul.f32 %v1598, %v1600
    %v1602 = vsub.f32 0.0, %v1601
    %vm1603 = vcmp.eq.f32.partialorder %v1230, 0.0
    %v1604 = vsel %vm1603, 1, 0
    %v1605 = vcvt.s32.f32 %v1604
    %1607 = vset.pattern.permute.xlu0 3
    %1608 = vperm.xlu0 %1607, %v1256
    %v1609 = vpop.permute.xlu0 %1608
    %v1611 = vperm.slane %v1605, 0
    %v1612 = vmul.f32 %v1609, %v1611
    %v1613 = vsub.f32 0.0, %v1612
    %vm1614 = vcmp.eq.f32.partialorder %v1226, 1.0
    %v1615 = vsel %vm1614, 1, 0
    %v1616 = vcvt.s32.f32 %v1615
    %1617 = vset.pattern.permute.xlu0 1
    %1618 = vperm.xlu0 %1617, %v1241
    %v1619 = vpop.permute.xlu0 %1618
    %v1621 = vperm.slane %v1616, 0
    %v1622 = vmul.f32 %v1619, %v1621
    %v1623 = vsub.f32 %v1602, %v1622
    %vm1624 = vcmp.eq.f32.partialorder %v1230, 1.0
    %v1625 = vsel %vm1624, 1, 0
    %v1626 = vcvt.s32.f32 %v1625
    %1627 = vset.pattern.permute.xlu0 4
    %1628 = vperm.xlu0 %1627, %v1256
    %v1629 = vpop.permute.xlu0 %1628
    %v1631 = vperm.slane %v1626, 0
    %v1632 = vmul.f32 %v1629, %v1631
    %v1633 = vsub.f32 %v1613, %v1632
    %vm1634 = vcmp.eq.f32.partialorder %v1226, 2.0
    %v1635 = vsel %vm1634, 1, 0
    %v1636 = vcvt.s32.f32 %v1635
    %1637 = vset.pattern.permute.xlu0 2
    %1638 = vperm.xlu0 %1637, %v1241
    %v1639 = vpop.permute.xlu0 %1638
    %v1641 = vperm.slane %v1636, 0
    %v1642 = vmul.f32 %v1639, %v1641
    %v1643 = vsub.f32 %v1623, %v1642
    %vm1644 = vcmp.eq.f32.partialorder %v1230, 2.0
    %v1645 = vsel %vm1644, 1, 0
    %v1646 = vcvt.s32.f32 %v1645
    %1647 = vset.pattern.permute.xlu0 5
    %1648 = vperm.xlu0 %1647, %v1256
    %v1649 = vpop.permute.xlu0 %1648
    %v1651 = vperm.slane %v1646, 0
    %v1652 = vmul.f32 %v1649, %v1651
    %v1653 = vsub.f32 %v1633, %v1652
    %1654 = vset.pattern.permute.xlu0 0
    %1655 = vperm.xlu0 %1654, %v1220
    %v1656 = vpop.permute.xlu0 %1655
    %v1658 = vperm.slane %v1222, 1
    %v1659 = vsub.f32 %v1656, %v1658
    %v1660 = vand.u32 2147483647, %v1659
    %1661 = vset.pattern.permute.xlu0 1
    %1662 = vperm.xlu0 %1661, %v1220
    %v1663 = vpop.permute.xlu0 %1662
    %v1665 = vperm.slane %v1222, 2
    %v1666 = vsub.f32 %v1663, %v1665
    %v1667 = vand.u32 2147483647, %v1666
    %1668 = vset.pattern.permute.xlu0 2
    %1669 = vperm.xlu0 %1668, %v1220
    %v1670 = vpop.permute.xlu0 %1669
    %v1672 = vperm.slane %v1222, 3
    %v1673 = vsub.f32 %v1670, %v1672
    %v1674 = vand.u32 2147483647, %v1673
    %v1675 = vmul.f32 %v1643, 3.0
    %v1676 = vmul.f32 %v1653, 3.0
    %v1677 = vadd.f32 %v1675, %v1676
    %v1678 = vmul.f32 %v1660, 2.0
    %v1679 = vadd.f32 %v1677, %v1678
    %v1680 = vmul.f32 %v1667, 2.0
    %v1681 = vadd.f32 %v1679, %v1680
    %v1682 = vmul.f32 %v1674, 2.5
    %v1683 = vadd.f32 %v1681, %v1682
    %v1684 = vmul.f32 %v1558, 5.0
    %v1685 = vadd.f32 %v1683, %v1684
    %v1686 = vperm.slane %v1285, 0
    %vm1687 = vcmp.eq.s32.totalorder %v1686, 1
    %v1688 = vsel %vm1687, %v1685, 1e+09
    %v1689 = vadd.f32 %v1688, 0.0
    %v1690 = vsel %vm495, %v1689, inf
    %1691 = vmin.xlane.f32.xlu0 %v1690
    %v1692 = vpop.xlane.xlu0 %1691
    %v1693 = vrot.slane %v1692, 4
    %v1694 = vmin.f32 %v1692, %v1693
    %v1695 = vrot.slane %v1694, 2
    %v1696 = vmin.f32 %v1694, %v1695
    %v1697 = vrot.slane %v1696, 1
    %v1698 = vmin.f32 %v1696, %v1697
    %s1699 = vtos %v1698
    %v1700 = vstv %s1699
    %vm1701 = vcmp.le.f32.partialorder %v1689, %v1700
    %v1702 = vsel %vm1701, %v20, 8
    %v1703 = vsel %vm495, %v1702, 2147483647
    %v1704 = vand.u32 %v1703, 65535
    %v1705 = vshra.s32 %v1703, 16
    %v1706 = vcvt.s32.f32 %v1704
    %v1707 = vcvt.s32.f32 %v1705
    %1708 = vmin.xlane.f32.xlu0 %v1707
    %v1709 = vpop.xlane.xlu0 %1708
    %vm1710 = vcmp.eq.f32.partialorder %v1707, %v1709
    %v1711 = vsel %vm1710, %v1706, inf
    %1712 = vmin.xlane.f32.xlu0 %v1711
    %v1713 = vpop.xlane.xlu0 %1712
    %v1714 = vcvt.f32.s32 %v1713
    %v1715 = vcvt.f32.s32 %v1709
    %v1716 = vshll.u32 %v1715, 16
    %v1717 = vadd.s32 %v1716, %v1714
    %v1718 = vrot.slane %v1717, 4
    %vm1719 = vcmp.lt.s32.totalorder %v1717, %v1718
    %v1720 = vsel %vm1719, %v1717, %v1718
    %v1721 = vrot.slane %v1720, 2
    %vm1722 = vcmp.lt.s32.totalorder %v1720, %v1721
    %v1723 = vsel %vm1722, %v1720, %v1721
    %v1724 = vrot.slane %v1723, 1
    %vm1725 = vcmp.lt.s32.totalorder %v1723, %v1724
    %v1726 = vsel %vm1725, %v1723, %v1724
    %s1727 = vtos %v1726
    %v1728 = vstv %s1727
    %vm1729 = vcmp.eq.s32.totalorder %v20, %v1728
    %vm1730 = vmand %vm1729, %vm1687
    %v1731 = vsel %vm1730, 1, 0
    %v1732 = vcvt.s32.f32 %v1731
    %v1733 = vmul.f32 %v1732, 1e+09
    %v1734 = vadd.f32 %v1733, 0.0
    %v1735 = vadd.f32 %v1732, 0.0
    %v1736 = vperm.slane %v1226, 0
    %v1737 = vmul.f32 %v1732, %v1736
    %v1738 = vadd.f32 %v1737, 0.0
    %v1739 = vperm.slane %v1230, 0
    %v1740 = vmul.f32 %v1732, %v1739
    %v1741 = vadd.f32 %v1740, 0.0
    %v1742 = vmul.f32 %v1732, %v1660
    %v1743 = vsel %vm495, %v1742, 0.0
    %1744 = vadd.xlane.f32.xlu0 %v1743
    %v1745 = vpop.xlane.xlu0 %1744
    %v1746 = vrot.slane %v1745, 4
    %v1747 = vadd.f32 %v1745, %v1746
    %v1748 = vrot.slane %v1747, 2
    %v1749 = vadd.f32 %v1747, %v1748
    %v1750 = vrot.slane %v1749, 1
    %v1751 = vadd.f32 %v1749, %v1750
    %s1752 = vtos %v1751
    %v1753 = vstv %s1752
    %v1754 = vadd.f32 %v1753, 0.0
    %v1755 = vmul.f32 %v1732, %v1667
    %v1756 = vsel %vm495, %v1755, 0.0
    %1757 = vadd.xlane.f32.xlu0 %v1756
    %v1758 = vpop.xlane.xlu0 %1757
    %v1759 = vrot.slane %v1758, 4
    %v1760 = vadd.f32 %v1758, %v1759
    %v1761 = vrot.slane %v1760, 2
    %v1762 = vadd.f32 %v1760, %v1761
    %v1763 = vrot.slane %v1762, 1
    %v1764 = vadd.f32 %v1762, %v1763
    %s1765 = vtos %v1764
    %v1766 = vstv %s1765
    %v1767 = vadd.f32 %v1766, 0.0
    %v1768 = vmul.f32 %v1732, %v1674
    %v1769 = vsel %vm495, %v1768, 0.0
    %1770 = vadd.xlane.f32.xlu0 %v1769
    %v1771 = vpop.xlane.xlu0 %1770
    %v1772 = vrot.slane %v1771, 4
    %v1773 = vadd.f32 %v1771, %v1772
    %v1774 = vrot.slane %v1773, 2
    %v1775 = vadd.f32 %v1773, %v1774
    %v1776 = vrot.slane %v1775, 1
    %v1777 = vadd.f32 %v1775, %v1776
    %s1778 = vtos %v1777
    %v1779 = vstv %s1778
    %v1780 = vadd.f32 %v1779, 0.0
    %v1781 = vmul.f32 %v1732, %v1558
    %v1782 = vsel %vm495, %v1781, 0.0
    %1783 = vadd.xlane.f32.xlu0 %v1782
    %v1784 = vpop.xlane.xlu0 %1783
    %v1785 = vrot.slane %v1784, 4
    %v1786 = vadd.f32 %v1784, %v1785
    %v1787 = vrot.slane %v1786, 2
    %v1788 = vadd.f32 %v1786, %v1787
    %v1789 = vrot.slane %v1788, 1
    %v1790 = vadd.f32 %v1788, %v1789
    %s1791 = vtos %v1790
    %v1792 = vstv %s1791
    %v1793 = vadd.f32 %v1792, 0.0
    %v1794 = vmul.u32 %v1728, %v1285
    %v1795 = vsub.s32 1, %v1285
    %v1796 = vsub.s32 %v1794, %v1795
    %v1797 = vadd.s32 %v1796, 1
    %1798 = vset.pattern.permute.xlu0 0
    %1799 = vperm.xlu0 %1798, %v1797
    %v1800 = vpop.permute.xlu0 %1799
    %v1801 = vmul.u32 %v1800, %v605
    %v1802 = vadd.s32 %v1801, 4294967295
    %v1803 = vmul.f32 %v1569, 5.0
    %v1804 = vadd.f32 %v1683, %v1803
    %v1805 = vsel %vm1687, %v1804, 1e+09
    %1807 = vrot.lane.b32.xlu0 %v1734, 1
    %v1808 = vpop.permute.xlu0 %1807
    %v1810 = vadd.f32 %v1805, %v1808
    %v1811 = vsel %vm619, %v1810, inf
    %1812 = vmin.xlane.f32.xlu0 %v1811
    %v1813 = vpop.xlane.xlu0 %1812
    %v1814 = vrot.slane %v1813, 4
    %v1815 = vmin.f32 %v1813, %v1814
    %v1816 = vrot.slane %v1815, 2
    %v1817 = vmin.f32 %v1815, %v1816
    %v1818 = vrot.slane %v1817, 1
    %v1819 = vmin.f32 %v1817, %v1818
    %s1820 = vtos %v1819
    %v1821 = vstv %s1820
    %vm1822 = vcmp.le.f32.partialorder %v1810, %v1821
    %v1823 = vsel %vm1822, %v20, 8
    %v1824 = vsel %vm619, %v1823, 2147483647
    %v1825 = vand.u32 %v1824, 65535
    %v1826 = vshra.s32 %v1824, 16
    %v1827 = vcvt.s32.f32 %v1825
    %v1828 = vcvt.s32.f32 %v1826
    %1829 = vmin.xlane.f32.xlu0 %v1828
    %v1830 = vpop.xlane.xlu0 %1829
    %vm1831 = vcmp.eq.f32.partialorder %v1828, %v1830
    %v1832 = vsel %vm1831, %v1827, inf
    %1833 = vmin.xlane.f32.xlu0 %v1832
    %v1834 = vpop.xlane.xlu0 %1833
    %v1835 = vcvt.f32.s32 %v1834
    %v1836 = vcvt.f32.s32 %v1830
    %v1837 = vshll.u32 %v1836, 16
    %v1838 = vadd.s32 %v1837, %v1835
    %v1839 = vrot.slane %v1838, 4
    %vm1840 = vcmp.lt.s32.totalorder %v1838, %v1839
    %v1841 = vsel %vm1840, %v1838, %v1839
    %v1842 = vrot.slane %v1841, 2
    %vm1843 = vcmp.lt.s32.totalorder %v1841, %v1842
    %v1844 = vsel %vm1843, %v1841, %v1842
    %v1845 = vrot.slane %v1844, 1
    %vm1846 = vcmp.lt.s32.totalorder %v1844, %v1845
    %v1847 = vsel %vm1846, %v1844, %v1845
    %s1848 = vtos %v1847
    %v1849 = vstv %s1848
    %vm1850 = vcmp.eq.s32.totalorder %v20, %v1849
    %vm1851 = vmand %vm1850, %vm1687
    %v1852 = vsel %vm1851, 1, 0
    %v1853 = vcvt.s32.f32 %v1852
    %v1854 = vmul.f32 %v1853, 1e+09
    %1856 = vrot.lane.b32.xlu0 %v1854, 127
    %v1857 = vpop.permute.xlu0 %1856
    %v1859 = vadd.f32 %v1734, %v1857
    %1861 = vrot.lane.b32.xlu0 %v1853, 127
    %v1862 = vpop.permute.xlu0 %1861
    %v1864 = vadd.f32 %v1735, %v1862
    %v1865 = vmul.f32 %v1853, %v1736
    %1867 = vrot.lane.b32.xlu0 %v1865, 127
    %v1868 = vpop.permute.xlu0 %1867
    %v1870 = vadd.f32 %v1738, %v1868
    %v1871 = vmul.f32 %v1853, %v1739
    %1873 = vrot.lane.b32.xlu0 %v1871, 127
    %v1874 = vpop.permute.xlu0 %1873
    %v1876 = vadd.f32 %v1741, %v1874
    %v1877 = vmul.f32 %v1853, %v1660
    %1879 = vrot.lane.b32.xlu0 %v1877, 127
    %v1880 = vpop.permute.xlu0 %1879
    %v1882 = vsel %vm495, %v1880, 0.0
    %1883 = vadd.xlane.f32.xlu0 %v1882
    %v1884 = vpop.xlane.xlu0 %1883
    %v1885 = vrot.slane %v1884, 4
    %v1886 = vadd.f32 %v1884, %v1885
    %v1887 = vrot.slane %v1886, 2
    %v1888 = vadd.f32 %v1886, %v1887
    %v1889 = vrot.slane %v1888, 1
    %v1890 = vadd.f32 %v1888, %v1889
    %s1891 = vtos %v1890
    %v1892 = vstv %s1891
    %v1893 = vadd.f32 %v1754, %v1892
    %v1894 = vmul.f32 %v1853, %v1667
    %1896 = vrot.lane.b32.xlu0 %v1894, 127
    %v1897 = vpop.permute.xlu0 %1896
    %v1899 = vsel %vm495, %v1897, 0.0
    %1900 = vadd.xlane.f32.xlu0 %v1899
    %v1901 = vpop.xlane.xlu0 %1900
    %v1902 = vrot.slane %v1901, 4
    %v1903 = vadd.f32 %v1901, %v1902
    %v1904 = vrot.slane %v1903, 2
    %v1905 = vadd.f32 %v1903, %v1904
    %v1906 = vrot.slane %v1905, 1
    %v1907 = vadd.f32 %v1905, %v1906
    %s1908 = vtos %v1907
    %v1909 = vstv %s1908
    %v1910 = vadd.f32 %v1767, %v1909
    %v1911 = vmul.f32 %v1853, %v1674
    %1913 = vrot.lane.b32.xlu0 %v1911, 127
    %v1914 = vpop.permute.xlu0 %1913
    %v1916 = vsel %vm495, %v1914, 0.0
    %1917 = vadd.xlane.f32.xlu0 %v1916
    %v1918 = vpop.xlane.xlu0 %1917
    %v1919 = vrot.slane %v1918, 4
    %v1920 = vadd.f32 %v1918, %v1919
    %v1921 = vrot.slane %v1920, 2
    %v1922 = vadd.f32 %v1920, %v1921
    %v1923 = vrot.slane %v1922, 1
    %v1924 = vadd.f32 %v1922, %v1923
    %s1925 = vtos %v1924
    %v1926 = vstv %s1925
    %v1927 = vadd.f32 %v1780, %v1926
    %v1928 = vmul.f32 %v1853, %v1569
    %1930 = vrot.lane.b32.xlu0 %v1928, 127
    %v1931 = vpop.permute.xlu0 %1930
    %v1933 = vsel %vm495, %v1931, 0.0
    %1934 = vadd.xlane.f32.xlu0 %v1933
    %v1935 = vpop.xlane.xlu0 %1934
    %v1936 = vrot.slane %v1935, 4
    %v1937 = vadd.f32 %v1935, %v1936
    %v1938 = vrot.slane %v1937, 2
    %v1939 = vadd.f32 %v1937, %v1938
    %v1940 = vrot.slane %v1939, 1
    %v1941 = vadd.f32 %v1939, %v1940
    %s1942 = vtos %v1941
    %v1943 = vstv %s1942
    %v1944 = vadd.f32 %v1793, %v1943
    %v1945 = vmul.u32 %v1849, %v1285
    %v1946 = vsub.s32 %v1945, %v1795
    %v1947 = vadd.s32 %v1946, 1
    %1948 = vset.pattern.permute.xlu0 1
    %1949 = vperm.xlu0 %1948, %v1947
    %v1950 = vpop.permute.xlu0 %1949
    %v1951 = vmul.u32 %v1950, %v758
    %v1952 = vadd.s32 %v1802, %v1951
    %v1953 = vmul.f32 %v1580, 5.0
    %v1954 = vadd.f32 %v1683, %v1953
    %v1955 = vsel %vm1687, %v1954, 1e+09
    %1957 = vrot.lane.b32.xlu0 %v1859, 2
    %v1958 = vpop.permute.xlu0 %1957
    %v1960 = vadd.f32 %v1955, %v1958
    %v1961 = vsel %vm772, %v1960, inf
    %1962 = vmin.xlane.f32.xlu0 %v1961
    %v1963 = vpop.xlane.xlu0 %1962
    %v1964 = vrot.slane %v1963, 4
    %v1965 = vmin.f32 %v1963, %v1964
    %v1966 = vrot.slane %v1965, 2
    %v1967 = vmin.f32 %v1965, %v1966
    %v1968 = vrot.slane %v1967, 1
    %v1969 = vmin.f32 %v1967, %v1968
    %s1970 = vtos %v1969
    %v1971 = vstv %s1970
    %vm1972 = vcmp.le.f32.partialorder %v1960, %v1971
    %v1973 = vsel %vm1972, %v20, 8
    %v1974 = vsel %vm772, %v1973, 2147483647
    %v1975 = vand.u32 %v1974, 65535
    %v1976 = vshra.s32 %v1974, 16
    %v1977 = vcvt.s32.f32 %v1975
    %v1978 = vcvt.s32.f32 %v1976
    %1979 = vmin.xlane.f32.xlu0 %v1978
    %v1980 = vpop.xlane.xlu0 %1979
    %vm1981 = vcmp.eq.f32.partialorder %v1978, %v1980
    %v1982 = vsel %vm1981, %v1977, inf
    %1983 = vmin.xlane.f32.xlu0 %v1982
    %v1984 = vpop.xlane.xlu0 %1983
    %v1985 = vcvt.f32.s32 %v1984
    %v1986 = vcvt.f32.s32 %v1980
    %v1987 = vshll.u32 %v1986, 16
    %v1988 = vadd.s32 %v1987, %v1985
    %v1989 = vrot.slane %v1988, 4
    %vm1990 = vcmp.lt.s32.totalorder %v1988, %v1989
    %v1991 = vsel %vm1990, %v1988, %v1989
    %v1992 = vrot.slane %v1991, 2
    %vm1993 = vcmp.lt.s32.totalorder %v1991, %v1992
    %v1994 = vsel %vm1993, %v1991, %v1992
    %v1995 = vrot.slane %v1994, 1
    %vm1996 = vcmp.lt.s32.totalorder %v1994, %v1995
    %v1997 = vsel %vm1996, %v1994, %v1995
    %s1998 = vtos %v1997
    %v1999 = vstv %s1998
    %vm2000 = vcmp.eq.s32.totalorder %v20, %v1999
    %vm2001 = vmand %vm2000, %vm1687
    %v2002 = vsel %vm2001, 1, 0
    %v2003 = vcvt.s32.f32 %v2002
    %v2004 = vmul.f32 %v2003, 1e+09
    %2006 = vrot.lane.b32.xlu0 %v2004, 126
    %v2007 = vpop.permute.xlu0 %2006
    %v2009 = vadd.f32 %v1859, %v2007
    %2011 = vrot.lane.b32.xlu0 %v2003, 126
    %v2012 = vpop.permute.xlu0 %2011
    %v2014 = vadd.f32 %v1864, %v2012
    %v2015 = vmul.f32 %v2003, %v1736
    %2017 = vrot.lane.b32.xlu0 %v2015, 126
    %v2018 = vpop.permute.xlu0 %2017
    %v2020 = vadd.f32 %v1870, %v2018
    %v2021 = vmul.f32 %v2003, %v1739
    %2023 = vrot.lane.b32.xlu0 %v2021, 126
    %v2024 = vpop.permute.xlu0 %2023
    %v2026 = vadd.f32 %v1876, %v2024
    %v2027 = vmul.f32 %v2003, %v1660
    %2029 = vrot.lane.b32.xlu0 %v2027, 126
    %v2030 = vpop.permute.xlu0 %2029
    %v2032 = vsel %vm495, %v2030, 0.0
    %2033 = vadd.xlane.f32.xlu0 %v2032
    %v2034 = vpop.xlane.xlu0 %2033
    %v2035 = vrot.slane %v2034, 4
    %v2036 = vadd.f32 %v2034, %v2035
    %v2037 = vrot.slane %v2036, 2
    %v2038 = vadd.f32 %v2036, %v2037
    %v2039 = vrot.slane %v2038, 1
    %v2040 = vadd.f32 %v2038, %v2039
    %s2041 = vtos %v2040
    %v2042 = vstv %s2041
    %v2043 = vadd.f32 %v1893, %v2042
    %v2044 = vmul.f32 %v2003, %v1667
    %2046 = vrot.lane.b32.xlu0 %v2044, 126
    %v2047 = vpop.permute.xlu0 %2046
    %v2049 = vsel %vm495, %v2047, 0.0
    %2050 = vadd.xlane.f32.xlu0 %v2049
    %v2051 = vpop.xlane.xlu0 %2050
    %v2052 = vrot.slane %v2051, 4
    %v2053 = vadd.f32 %v2051, %v2052
    %v2054 = vrot.slane %v2053, 2
    %v2055 = vadd.f32 %v2053, %v2054
    %v2056 = vrot.slane %v2055, 1
    %v2057 = vadd.f32 %v2055, %v2056
    %s2058 = vtos %v2057
    %v2059 = vstv %s2058
    %v2060 = vadd.f32 %v1910, %v2059
    %v2061 = vmul.f32 %v2003, %v1674
    %2063 = vrot.lane.b32.xlu0 %v2061, 126
    %v2064 = vpop.permute.xlu0 %2063
    %v2066 = vsel %vm495, %v2064, 0.0
    %2067 = vadd.xlane.f32.xlu0 %v2066
    %v2068 = vpop.xlane.xlu0 %2067
    %v2069 = vrot.slane %v2068, 4
    %v2070 = vadd.f32 %v2068, %v2069
    %v2071 = vrot.slane %v2070, 2
    %v2072 = vadd.f32 %v2070, %v2071
    %v2073 = vrot.slane %v2072, 1
    %v2074 = vadd.f32 %v2072, %v2073
    %s2075 = vtos %v2074
    %v2076 = vstv %s2075
    %v2077 = vadd.f32 %v1927, %v2076
    %v2078 = vmul.f32 %v2003, %v1580
    %2080 = vrot.lane.b32.xlu0 %v2078, 126
    %v2081 = vpop.permute.xlu0 %2080
    %v2083 = vsel %vm495, %v2081, 0.0
    %2084 = vadd.xlane.f32.xlu0 %v2083
    %v2085 = vpop.xlane.xlu0 %2084
    %v2086 = vrot.slane %v2085, 4
    %v2087 = vadd.f32 %v2085, %v2086
    %v2088 = vrot.slane %v2087, 2
    %v2089 = vadd.f32 %v2087, %v2088
    %v2090 = vrot.slane %v2089, 1
    %v2091 = vadd.f32 %v2089, %v2090
    %s2092 = vtos %v2091
    %v2093 = vstv %s2092
    %v2094 = vadd.f32 %v1944, %v2093
    %v2095 = vmul.u32 %v1999, %v1285
    %v2096 = vsub.s32 %v2095, %v1795
    %v2097 = vadd.s32 %v2096, 1
    %2098 = vset.pattern.permute.xlu0 2
    %2099 = vperm.xlu0 %2098, %v2097
    %v2100 = vpop.permute.xlu0 %2099
    %v2101 = vmul.u32 %v2100, %v911
    %v2102 = vadd.s32 %v1952, %v2101
    %v2103 = vmul.f32 %v1591, 5.0
    %v2104 = vadd.f32 %v1683, %v2103
    %v2105 = vsel %vm1687, %v2104, 1e+09
    %2107 = vrot.lane.b32.xlu0 %v2009, 3
    %v2108 = vpop.permute.xlu0 %2107
    %v2110 = vadd.f32 %v2105, %v2108
    %v2111 = vsel %vm925, %v2110, inf
    %2112 = vmin.xlane.f32.xlu0 %v2111
    %v2113 = vpop.xlane.xlu0 %2112
    %v2114 = vrot.slane %v2113, 4
    %v2115 = vmin.f32 %v2113, %v2114
    %v2116 = vrot.slane %v2115, 2
    %v2117 = vmin.f32 %v2115, %v2116
    %v2118 = vrot.slane %v2117, 1
    %v2119 = vmin.f32 %v2117, %v2118
    %s2120 = vtos %v2119
    %v2121 = vstv %s2120
    %vm2122 = vcmp.le.f32.partialorder %v2110, %v2121
    %v2123 = vsel %vm2122, %v20, 8
    %v2124 = vsel %vm925, %v2123, 2147483647
    %v2125 = vand.u32 %v2124, 65535
    %v2126 = vshra.s32 %v2124, 16
    %v2127 = vcvt.s32.f32 %v2125
    %v2128 = vcvt.s32.f32 %v2126
    %2129 = vmin.xlane.f32.xlu0 %v2128
    %v2130 = vpop.xlane.xlu0 %2129
    %vm2131 = vcmp.eq.f32.partialorder %v2128, %v2130
    %v2132 = vsel %vm2131, %v2127, inf
    %2133 = vmin.xlane.f32.xlu0 %v2132
    %v2134 = vpop.xlane.xlu0 %2133
    %v2135 = vcvt.f32.s32 %v2134
    %v2136 = vcvt.f32.s32 %v2130
    %v2137 = vshll.u32 %v2136, 16
    %v2138 = vadd.s32 %v2137, %v2135
    %v2139 = vrot.slane %v2138, 4
    %vm2140 = vcmp.lt.s32.totalorder %v2138, %v2139
    %v2141 = vsel %vm2140, %v2138, %v2139
    %v2142 = vrot.slane %v2141, 2
    %vm2143 = vcmp.lt.s32.totalorder %v2141, %v2142
    %v2144 = vsel %vm2143, %v2141, %v2142
    %v2145 = vrot.slane %v2144, 1
    %vm2146 = vcmp.lt.s32.totalorder %v2144, %v2145
    %v2147 = vsel %vm2146, %v2144, %v2145
    %s2148 = vtos %v2147
    %v2149 = vstv %s2148
    %vm2150 = vcmp.eq.s32.totalorder %v20, %v2149
    %vm2151 = vmand %vm2150, %vm1687
    %v2152 = vsel %vm2151, 1, 0
    %v2153 = vcvt.s32.f32 %v2152
    %2155 = vrot.lane.b32.xlu0 %v2153, 125
    %v2156 = vpop.permute.xlu0 %2155
    %v2158 = vadd.f32 %v2014, %v2156
    %v2159 = vmul.f32 %v2153, %v1736
    %2161 = vrot.lane.b32.xlu0 %v2159, 125
    %v2162 = vpop.permute.xlu0 %2161
    %v2164 = vadd.f32 %v2020, %v2162
    %v2165 = vmul.f32 %v2153, %v1739
    %2167 = vrot.lane.b32.xlu0 %v2165, 125
    %v2168 = vpop.permute.xlu0 %2167
    %v2170 = vadd.f32 %v2026, %v2168
    %v2171 = vmul.f32 %v2153, %v1660
    %2173 = vrot.lane.b32.xlu0 %v2171, 125
    %v2174 = vpop.permute.xlu0 %2173
    %v2176 = vsel %vm495, %v2174, 0.0
    %2177 = vadd.xlane.f32.xlu0 %v2176
    %v2178 = vpop.xlane.xlu0 %2177
    %v2179 = vrot.slane %v2178, 4
    %v2180 = vadd.f32 %v2178, %v2179
    %v2181 = vrot.slane %v2180, 2
    %v2182 = vadd.f32 %v2180, %v2181
    %v2183 = vrot.slane %v2182, 1
    %v2184 = vadd.f32 %v2182, %v2183
    %s2185 = vtos %v2184
    %v2186 = vstv %s2185
    %v2187 = vadd.f32 %v2043, %v2186
    %v2188 = vmul.f32 %v2153, %v1667
    %2190 = vrot.lane.b32.xlu0 %v2188, 125
    %v2191 = vpop.permute.xlu0 %2190
    %v2193 = vsel %vm495, %v2191, 0.0
    %2194 = vadd.xlane.f32.xlu0 %v2193
    %v2195 = vpop.xlane.xlu0 %2194
    %v2196 = vrot.slane %v2195, 4
    %v2197 = vadd.f32 %v2195, %v2196
    %v2198 = vrot.slane %v2197, 2
    %v2199 = vadd.f32 %v2197, %v2198
    %v2200 = vrot.slane %v2199, 1
    %v2201 = vadd.f32 %v2199, %v2200
    %s2202 = vtos %v2201
    %v2203 = vstv %s2202
    %v2204 = vadd.f32 %v2060, %v2203
    %v2205 = vmul.f32 %v2153, %v1674
    %2207 = vrot.lane.b32.xlu0 %v2205, 125
    %v2208 = vpop.permute.xlu0 %2207
    %v2210 = vsel %vm495, %v2208, 0.0
    %2211 = vadd.xlane.f32.xlu0 %v2210
    %v2212 = vpop.xlane.xlu0 %2211
    %v2213 = vrot.slane %v2212, 4
    %v2214 = vadd.f32 %v2212, %v2213
    %v2215 = vrot.slane %v2214, 2
    %v2216 = vadd.f32 %v2214, %v2215
    %v2217 = vrot.slane %v2216, 1
    %v2218 = vadd.f32 %v2216, %v2217
    %s2219 = vtos %v2218
    %v2220 = vstv %s2219
    %v2221 = vadd.f32 %v2077, %v2220
    %v2222 = vmul.f32 %v2153, %v1591
    %2224 = vrot.lane.b32.xlu0 %v2222, 125
    %v2225 = vpop.permute.xlu0 %2224
    %v2227 = vsel %vm495, %v2225, 0.0
    %2228 = vadd.xlane.f32.xlu0 %v2227
    %v2229 = vpop.xlane.xlu0 %2228
    %v2230 = vrot.slane %v2229, 4
    %v2231 = vadd.f32 %v2229, %v2230
    %v2232 = vrot.slane %v2231, 2
    %v2233 = vadd.f32 %v2231, %v2232
    %v2234 = vrot.slane %v2233, 1
    %v2235 = vadd.f32 %v2233, %v2234
    %s2236 = vtos %v2235
    %v2237 = vstv %s2236
    %v2238 = vadd.f32 %v2094, %v2237
    %v2239 = vmul.u32 %v2149, %v1285
    %v2240 = vsub.s32 %v2239, %v1795
    %v2241 = vadd.s32 %v2240, 1
    %2242 = vset.pattern.permute.xlu0 3
    %2243 = vperm.xlu0 %2242, %v2241
    %v2244 = vpop.permute.xlu0 %2243
    %v2245 = vmul.u32 %v2244, %v1058
    %v2246 = vadd.s32 %v2102, %v2245
    %v2247 = vlog2.pop %v1239
    %v2248 = vmul.f32 %v2247, 0.6931472
    %v2249 = vsub.f32 %v1234, %v2248
    %v2250 = vlog2.pop %v1254
    %v2251 = vmul.f32 %v2250, 0.6931472
    %v2252 = vsub.f32 %v1245, %v2251
    %v2253 = vcvt.f32.s32.to.zero.pseudo %v2164
    %2254 = vset.pattern.permute.xlu0 0
    %2255 = vperm.xlu0 %2254, %v2253
    %v2256 = vpop.permute.xlu0 %2255
    %vm2257 = vcmp.eq.s32.totalorder %v18, %v2256
    %v2258 = vsel %vm2257, 1, 0
    %v2259 = vcvt.s32.f32 %v2258
    %v2260 = vcvt.f32.s32.to.zero.pseudo %v2170
    %2261 = vset.pattern.permute.xlu0 0
    %2262 = vperm.xlu0 %2261, %v2260
    %v2263 = vpop.permute.xlu0 %2262
    %vm2264 = vcmp.eq.s32.totalorder %v18, %v2263
    %v2265 = vsel %vm2264, 1, 0
    %v2266 = vcvt.s32.f32 %v2265
    %v2267 = vmul.f32 %v2249, %v2259
    %v2268 = vsel %vm32, %v2267, 0.0
    %2269 = vadd.xlane.f32.xlu0 %v2268
    %v2270 = vpop.xlane.xlu0 %2269
    %v2271 = vrot.slane %v2270, 4
    %v2272 = vadd.f32 %v2270, %v2271
    %v2273 = vrot.slane %v2272, 2
    %v2274 = vadd.f32 %v2272, %v2273
    %v2275 = vrot.slane %v2274, 1
    %v2276 = vadd.f32 %v2274, %v2275
    %s2277 = vtos %v2276
    %v2278 = vstv %s2277
    %v2279 = vsub.f32 0.0, %v2278
    %2281 = vrot.lane.b32.xlu0 %v2266, 3
    %v2282 = vpop.permute.xlu0 %2281
    %v2284 = vmul.f32 %v2252, %v2282
    %2286 = vrot.lane.b32.xlu0 %v2284, 125
    %v2287 = vpop.permute.xlu0 %2286
    %v2289 = vsel %vm32, %v2287, 0.0
    %2290 = vadd.xlane.f32.xlu0 %v2289
    %v2291 = vpop.xlane.xlu0 %2290
    %v2292 = vrot.slane %v2291, 4
    %v2293 = vadd.f32 %v2291, %v2292
    %v2294 = vrot.slane %v2293, 2
    %v2295 = vadd.f32 %v2293, %v2294
    %v2296 = vrot.slane %v2295, 1
    %v2297 = vadd.f32 %v2295, %v2296
    %s2298 = vtos %v2297
    %v2299 = vstv %s2298
    %v2300 = vsub.f32 0.0, %v2299
    %v2301 = vmax.f32 %v1218, 0.0
    %2303 = vrot.lane.b32.xlu0 %v2158, 6
    %v2304 = vpop.permute.xlu0 %2303
    %v2306 = vmul.f32 %v1218, %v2304
    %v2307 = vsub.f32 %v2301, %v2306
    %v2308 = vand.u32 2147483647, %v1218
    %v2309 = vsub.f32 0.0, %v2308
    %v2310 = vmul.f32 %v2309, 1.442695
    %v2311 = vpow.pop %v2310
    %v2312 = vadd.f32 %v2311, 1.0
    %v2313 = vlog2.pop %v2312
    %v2314 = vmul.f32 %v2313, 0.6931472
    %v2315 = vmul.f32 -0.5, %v2311
    %v2316 = vadd.f32 %v2315, 1.0
    %v2317 = vmul.f32 %v2316, %v2311
    %v2318 = vand.u32 2147483647, %v2311
    %vm2319 = vcmp.lt.f32.partialorder %v2318, 0.0004427343
    %v2320 = vsel %vm2319, %v2317, %v2314
    %v2321 = vadd.f32 %v2307, %v2320
    %2323 = vrot.lane.b32.xlu0 %v2321, 122
    %v2324 = vpop.permute.xlu0 %2323
    %v2326 = vsel %vm495, %v2324, 0.0
    %2327 = vadd.xlane.f32.xlu0 %v2326
    %v2328 = vpop.xlane.xlu0 %2327
    %v2329 = vrot.slane %v2328, 4
    %v2330 = vadd.f32 %v2328, %v2329
    %v2331 = vrot.slane %v2330, 2
    %v2332 = vadd.f32 %v2330, %v2331
    %v2333 = vrot.slane %v2332, 1
    %v2334 = vadd.f32 %v2332, %v2333
    %s2335 = vtos %v2334
    %vm2336 = vcmp.lt.f32.partialorder %v1218, %v1233
    %v2337 = vsel %vm2336, 1, 0
    %v2338 = vcvt.s32.f32 %v2337
    %v2339 = vsel %vm495, %v2338, 0.0
    %2340 = vadd.xlane.f32.xlu0 %v2339
    %v2341 = vpop.xlane.xlu0 %2340
    %v2342 = vrot.slane %v2341, 4
    %v2343 = vadd.f32 %v2341, %v2342
    %v2344 = vrot.slane %v2343, 2
    %v2345 = vadd.f32 %v2343, %v2344
    %v2346 = vrot.slane %v2345, 1
    %v2347 = vadd.f32 %v2345, %v2346
    %s2348 = vtos %v2347
    %v2349 = vstv %s2348
    %v2350 = vcvt.s32.f32 %v1285
    %v2351 = vsel %vm1168, %v2350, 0.0
    %2352 = vadd.xlane.f32.xlu0 %v2351
    %v2353 = vpop.xlane.xlu0 %2352
    %v2354 = vrot.slane %v2353, 4
    %v2355 = vadd.f32 %v2353, %v2354
    %v2356 = vrot.slane %v2355, 2
    %v2357 = vadd.f32 %v2355, %v2356
    %v2358 = vrot.slane %v2357, 1
    %v2359 = vadd.f32 %v2357, %v2358
    %s2360 = vtos %v2359
    %v2361 = vstv %s2360
    %v2362 = vsub.f32 %v2349, %v2361
    %v2363 = vand.u32 2147483647, %v2362
    %v2364 = vmul.f32 %v2279, %v1182
    %v2365 = vadd.f32 %v2364, 0.0
    %v2366 = vmul.f32 %v2300, %v1185
    %v2367 = vadd.f32 %v2365, %v2366
    %v2368 = vmul.f32 %v2238, %v1188
    %v2369 = vadd.f32 %v2367, %v2368
    %v2370 = vmul.f32 %v2187, %v1191
    %v2371 = vadd.f32 %v2369, %v2370
    %v2372 = vmul.f32 %v2204, %v1196
    %v2373 = vadd.f32 %v2371, %v2372
    %v2374 = vmul.f32 %v2221, %v1201
    %v2375 = vadd.f32 %v2373, %v2374
    %v2376 = vstv %s2335
    %v2377 = vmul.f32 %v2376, %v1206
    %v2378 = vadd.f32 %v2375, %v2377
    %v2379 = vmul.f32 %v2363, %v1212
    %v2380 = vadd.f32 %v2378, %v2379
    %s2381 = scalar_lea.vmem %s3, 1
    %2382 = vst [vmem:[%s2381] sm:$0x1] %v2380
    %s2383 = scalar_lea.vmem [#allocation2], 1
    %2384 = vst [vmem:[%s2383] sm:$0x1] %v2246
    // Predicated region
    $region14: #{_criterion.1} parent=1 // pred_check
      _
    $region15: #{_criterion.1} parent=1 // pred_check_branch
      %2386 = sbr.rel (0) target = $region17
    $region16: #{_criterion.1} parent=1 // pred_region
      _
    $region17: #{_criterion.1} parent=1 // pred_fallthru
      _
    // Predicated region
    $region18: #{_criterion.1} parent=1 // pred_check
      _
    $region19: #{_criterion.1} parent=1 // pred_check_branch
      %2388 = sbr.rel (0) target = $region21
    $region20: #{_criterion.1} parent=1 // pred_region
      %2390 = vsyncadd [#allocation3], 0
      %s2391 = sshll.u32 [#allocation2], 4
      %s2392 = int_to_ptr.vmem [resolvable:$true] %s2391
      %s2393 = sshll.u32 %s4, 4
      %s2394 = int_to_ptr.hbm [resolvable:$true] %s2393
      %2399 = dma.vmem_to_hbm [thread:$0]  %s2392, 32, %s2394, [#allocation3], 16, 16, 1
    $region21: #{_criterion.1} parent=1 // pred_fallthru
      _
    // Predicated region
    $region22: #{_criterion.1} parent=1 // pred_check
      _
    $region23: #{_criterion.1} parent=1 // pred_check_branch
      %2401 = sbr.rel (0) target = $region25
    $region24: #{_criterion.1} parent=1 // pred_region
      _
    $region25: #{_criterion.1} parent=1 // pred_fallthru
      _
    // Predicated region
    $region26: #{_criterion.1} parent=1 // pred_check
      _
    $region27: #{_criterion.1} parent=1 // pred_check_branch
      %2403 = sbr.rel (0) target = $region29
    $region28: #{_criterion.1} parent=1 // pred_region
      %2405 = dma.done [#allocation3], 32
    $region29: #{_criterion.1} parent=1 // pred_fallthru
      _
    %2406 = vsyncpa [#allocation3], 1

</llo_original>
